<compile_context>
chip_gen: v6e
topology: v6e:2x2x1
jax: 0.10.0
libtpu: 0.0.40
codegen_flags: <defaults>
</compile_context>

<pallas_src>
import functools

import numpy as np
import jax
import jax.numpy as jnp
from jax import lax
from jax.experimental import pallas as pl
from jax.experimental.pallas import tpu as pltpu


# ----------------------------------------------------------------------------
# Layer geometry.  Every layer is described as a conv with kernel k, stride
# cs, symmetric padding pad and *input dilation* dil (ConvTranspose2d ==
# dilate-by-stride + pad(k-1-p) + stride-1 conv with the flipped kernel,
# valid because p <= k-1 for all decoder layers), evaluated only at the
# output positions kept by the fused MaxPool (pool kernel pk, stride ps).
# ----------------------------------------------------------------------------
class LayerCfg:
    def __init__(self, hin, cin, cout, k, cs, pad, dil, pk, ps, act):
        self.hin, self.cin, self.cout = hin, cin, cout
        self.k, self.cs, self.pad, self.dil = k, cs, pad, dil
        self.pk, self.ps, self.act = pk, ps, act
        hc = (dil * (hin - 1) + 1 + 2 * pad - k) // cs + 1   # conv output size
        self.ho = (hc - pk) // ps + 1                        # after fused pool


def _conv_cfg(hin, cin, cout, k, stride, padding, act, pool=None):
    pk, ps = pool if pool is not None else (1, 1)
    return LayerCfg(hin, cin, cout, k, stride, padding, 1, pk, ps, act)


def _convT_cfg(hin, cin, cout, k, stride, padding, act):
    assert padding <= k - 1, "ConvTranspose lowering requires padding <= k-1"
    return LayerCfg(hin, cin, cout, k, 1, k - 1 - padding, stride, 1, 1, act)


def make_cfgs(h0):
    c1 = _conv_cfg(h0,     1, 16, 3, 3, 1, "relu", pool=(2, 2))
    c2 = _conv_cfg(c1.ho, 16,  8, 3, 2, 1, "relu", pool=(2, 1))
    c3 = _convT_cfg(c2.ho,  8, 16, 3, 2, 0, "relu")
    c4 = _convT_cfg(c3.ho, 16,  8, 5, 3, 1, "relu")
    c5 = _convT_cfg(c4.ho,  8,  1, 2, 2, 1, "tanh")
    return [c1, c2, c3, c4, c5]


# ----------------------------------------------------------------------------
# Host-side (one-time) packing of the structure + weights into GEMM operands.
# ----------------------------------------------------------------------------
def _src_index(cfg, out_pos, pool_off, tap):
    """Un-dilated source index feeding output `out_pos` via `tap`, else None."""
    r = cfg.cs * (cfg.ps * out_pos + pool_off) + tap - cfg.pad
    if r < 0 or r % cfg.dil:
        return None
    s = r // cfg.dil
    return s if s < cfg.hin else None


def _build_gather(cfg):
    """(k*pk, ho, hin) 0/1 row-gather folding H taps/stride/pad/dilation/pool."""
    S = np.zeros((cfg.k * cfg.pk, cfg.ho, cfg.hin), np.float32)
    for ki in range(cfg.k):
        for pi in range(cfg.pk):
            for i in range(cfg.ho):
                h = _src_index(cfg, i, pi, ki)
                if h is not None:
                    S[ki * cfg.pk + pi, i, h] = 1.0
    return S


def _fold_weights(cfg, w_eff, bias):
    """Fold W-direction taps/stride/pad/dilation/pool offsets into the weights.

    w_eff: (k, k, cin, cout) equivalent-conv weight.
    Returns wbig (k*pk, hin*cin, ho*cout) and bias_row (1, ho*cout), both f32.
    """
    P = np.zeros((cfg.pk, cfg.k, cfg.hin, cfg.ho), np.float32)
    for pj in range(cfg.pk):
        for kj in range(cfg.k):
            for j in range(cfg.ho):
                w = _src_index(cfg, j, pj, kj)
                if w is not None:
                    P[pj, kj, w, j] = 1.0
    P = jnp.asarray(P)
    mats = []
    for ki in range(cfg.k):
        for pj in range(cfg.pk):
            m = jnp.einsum("kwj,kcd->wcjd", P[pj], w_eff[ki])
            mats.append(m.reshape(cfg.hin * cfg.cin, cfg.ho * cfg.cout))
    wbig = jnp.stack(mats, axis=0).astype(jnp.float32)
    bias_row = jnp.tile(bias.astype(jnp.float32), cfg.ho).reshape(1, cfg.ho * cfg.cout)
    return wbig, bias_row


def prepare_params(params, h0=28):
    """Pack PyTorch-layout weights into kernel operands (call once)."""
    cfgs = make_cfgs(h0)

    def conv_w(w):    # Conv2d (cout, cin, k, k) -> (k, k, cin, cout)
        return jnp.transpose(w, (2, 3, 1, 0))

    def convT_w(w):   # ConvTranspose2d (cin, cout, k, k) -> flipped conv weight
        return jnp.transpose(jnp.flip(w, (2, 3)), (2, 3, 0, 1))

    w_effs = [conv_w(params["e1_w"]), conv_w(params["e2_w"]),
              convT_w(params["d1_w"]), convT_w(params["d2_w"]),
              convT_w(params["d3_w"])]
    biases = [params["e1_b"], params["e2_b"], params["d1_b"],
              params["d2_b"], params["d3_b"]]

    packed = []
    for cfg, we, b in zip(cfgs, w_effs, biases):
        wbig, bias_row = _fold_weights(cfg, we, b)
        packed += [jnp.asarray(_build_gather(cfg)), wbig, bias_row]
    return packed


# ----------------------------------------------------------------------------
# Pallas kernel: whole autoencoder forward for one sample per grid step.
# ----------------------------------------------------------------------------
def _layer(x, s_ref, w_ref, b_ref, cfg):
    """x: (hin, hin*cin) f32  ->  (ho, ho*cout) f32."""
    # H-direction row gathers (shared across the W pool offsets).
    A = [[jnp.dot(s_ref[ki * cfg.pk + pi], x, preferred_element_type=jnp.float32)
          for pi in range(cfg.pk)]
         for ki in range(cfg.k)]
    pooled = None
    for pi in range(cfg.pk):
        for pj in range(cfg.pk):
            acc = None
            for ki in range(cfg.k):
                t = jnp.dot(A[ki][pi], w_ref[ki * cfg.pk + pj],
                            preferred_element_type=jnp.float32)
                acc = t if acc is None else acc + t
            pooled = acc if pooled is None else jnp.maximum(pooled, acc)
    pre = pooled + b_ref[...]           # bias/act hoisted out of tap/pool loops
    return jnp.maximum(pre, 0.0) if cfg.act == "relu" else jnp.tanh(pre)


def _autoencoder_kernel(x_ref, *refs, cfgs):
    o_ref = refs[-1]
    h = x_ref[...]                      # (H, W) f32 — one sample, Cin == 1
    for li, cfg in enumerate(cfgs):
        s_ref, w_ref, b_ref = refs[3 * li:3 * li + 3]
        h = _layer(h, s_ref, w_ref, b_ref, cfg)
    # TODO(synk): if the final store path ever matters, pack the (28, 28)
    # result into a lane-dense (1, 784) row; at ~3 KB/sample it is negligible.
    o_ref[...] = h                      # (28, 28), Cout == 1


def autoencoder2d_forward(packed, x):
    """x: (N, 1, H, W) f32 (NCHW) -> (N, 1, H, W) f32."""
    n, _, h0, w0 = x.shape
    assert h0 == w0
    cfgs = make_cfgs(h0)
    hout = cfgs[-1].ho
    x2 = x.reshape(n, h0, w0).astype(jnp.float32)      # C == 1: free relabel

    def full_spec(a):
        zeros = (0,) * a.ndim
        return pl.BlockSpec(a.shape, lambda i, z=zeros: z)

    out = pl.pallas_call(
        functools.partial(_autoencoder_kernel, cfgs=cfgs),
        out_shape=jax.ShapeDtypeStruct((n, hout, hout), jnp.float32),
        grid=(n,),
        in_specs=[pl.BlockSpec((None, h0, w0), lambda i: (i, 0, 0))]
                 + [full_spec(a) for a in packed],
        out_specs=pl.BlockSpec((None, hout, hout), lambda i: (i, 0, 0)),
        compiler_params=pltpu.CompilerParams(
            dimension_semantics=("parallel",)),
    )(x2, *packed)
    return out.reshape(n, 1, hout, hout)


# ----------------------------------------------------------------------------
# Parameters + pure-JAX (XLA) reference of the PyTorch module, for checking.
# ----------------------------------------------------------------------------
def init_params(key):
    ks = jax.random.split(key, 10)
    s = 0.2
    return {
        "e1_w": jax.random.normal(ks[0], (16, 1, 3, 3), jnp.float32) * s,
        "e1_b": jax.random.normal(ks[1], (16,), jnp.float32) * s,
        "e2_w": jax.random.normal(ks[2], (8, 16, 3, 3), jnp.float32) * s,
        "e2_b": jax.random.normal(ks[3], (8,), jnp.float32) * s,
        "d1_w": jax.random.normal(ks[4], (8, 16, 3, 3), jnp.float32) * s,
        "d1_b": jax.random.normal(ks[5], (16,), jnp.float32) * s,
        "d2_w": jax.random.normal(ks[6], (16, 8, 5, 5), jnp.float32) * s,
        "d2_b": jax.random.normal(ks[7], (8,), jnp.float32) * s,
        "d3_w": jax.random.normal(ks[8], (8, 1, 2, 2), jnp.float32) * s,
        "d3_b": jax.random.normal(ks[9], (1,), jnp.float32) * s,
    }


def ref_forward(params, x):
    dn = ("NCHW", "OIHW", "NCHW")
    hi = lax.Precision.HIGHEST

    def conv(h, w, b, stride, pad):
        h = lax.conv_general_dilated(h, w, (stride, stride),
                                     [(pad, pad), (pad, pad)],
                                     dimension_numbers=dn, precision=hi)
        return h + b[None, :, None, None]

    def convT(h, w, b, stride, pad):
        wc = jnp.flip(w, (2, 3)).transpose(1, 0, 2, 3)
        p = w.shape[-1] - 1 - pad
        h = lax.conv_general_dilated(h, wc, (1, 1), [(p, p), (p, p)],
                                     lhs_dilation=(stride, stride),
                                     dimension_numbers=dn, precision=hi)
        return h + b[None, :, None, None]

    def maxpool(h, k, s):
        return lax.reduce_window(h, -jnp.inf, lax.max,
                                 (1, 1, k, k), (1, 1, s, s), "VALID")

    h = maxpool(jax.nn.relu(conv(x, params["e1_w"], params["e1_b"], 3, 1)), 2, 2)
    h = maxpool(jax.nn.relu(conv(h, params["e2_w"], params["e2_b"], 2, 1)), 2, 1)
    h = jax.nn.relu(convT(h, params["d1_w"], params["d1_b"], 2, 0))
    h = jax.nn.relu(convT(h, params["d2_w"], params["d2_b"], 3, 1))
    h = jnp.tanh(convT(h, params["d3_w"], params["d3_b"], 2, 1))
    return h


if __name__ == "__main__":
    key = jax.random.PRNGKey(0)
    pkey, xkey = jax.random.split(key)
    params = init_params(pkey)
    # 28x28 single-channel input (the geometry this autoencoder is built for).
    x = jax.random.normal(xkey, (2, 1, 28, 28), jnp.float32)

    packed = prepare_params(params)                 # one-time weight packing
    y = jax.jit(autoencoder2d_forward)(packed, x)
    y = jax.block_until_ready(y)

    assert y.shape == (2, 1, 28, 28), y.shape
    assert y.dtype == jnp.float32
    assert bool(jnp.all(jnp.isfinite(y)))

    y_ref = ref_forward(params, x)
    err = float(jnp.max(jnp.abs(y - y_ref)))
    assert err < 1e-1, f"max abs err vs reference: {err}"
    print("KERNEL_OK")
</pallas_src>

<mosaic_0001>
module attributes {stable_mosaic.version = 11 : i64} {
  func.func @_autoencoder_kernel(%arg0: i32, %arg1: memref<1x28x28xf32, #tpu.memory_space<vmem>>, %arg2: memref<6x5x28xf32, #tpu.memory_space<vmem>>, %arg3: memref<6x28x80xf32, #tpu.memory_space<vmem>>, %arg4: memref<1x80xf32, #tpu.memory_space<vmem>>, %arg5: memref<6x2x5xf32, #tpu.memory_space<vmem>>, %arg6: memref<6x80x16xf32, #tpu.memory_space<vmem>>, %arg7: memref<1x16xf32, #tpu.memory_space<vmem>>, %arg8: memref<3x5x2xf32, #tpu.memory_space<vmem>>, %arg9: memref<3x16x80xf32, #tpu.memory_space<vmem>>, %arg10: memref<1x80xf32, #tpu.memory_space<vmem>>, %arg11: memref<5x15x5xf32, #tpu.memory_space<vmem>>, %arg12: memref<5x80x120xf32, #tpu.memory_space<vmem>>, %arg13: memref<1x120xf32, #tpu.memory_space<vmem>>, %arg14: memref<2x28x15xf32, #tpu.memory_space<vmem>>, %arg15: memref<2x120x28xf32, #tpu.memory_space<vmem>>, %arg16: memref<1x28xf32, #tpu.memory_space<vmem>>, %arg17: memref<1x28x28xf32, #tpu.memory_space<vmem>>) attributes {dimension_semantics = [#tpu.dimension_semantics<parallel>], iteration_bounds = array<i64: 2>, scalar_prefetch = 0 : i64, scratch_operands = 0 : i64, tpu.core_type = #tpu.core_type<tc>, window_params = [{transform_indices = @transform_0, window_bounds = array<i64: 1, 28, 28>}, {pipeline_mode = #tpu.pipeline_mode<synchronous>, transform_indices = @transform_1, window_bounds = array<i64: 6, 5, 28>}, {pipeline_mode = #tpu.pipeline_mode<synchronous>, transform_indices = @transform_2, window_bounds = array<i64: 6, 28, 80>}, {pipeline_mode = #tpu.pipeline_mode<synchronous>, transform_indices = @transform_3, window_bounds = array<i64: 1, 80>}, {pipeline_mode = #tpu.pipeline_mode<synchronous>, transform_indices = @transform_4, window_bounds = array<i64: 6, 2, 5>}, {pipeline_mode = #tpu.pipeline_mode<synchronous>, transform_indices = @transform_5, window_bounds = array<i64: 6, 80, 16>}, {pipeline_mode = #tpu.pipeline_mode<synchronous>, transform_indices = @transform_6, window_bounds = array<i64: 1, 16>}, {pipeline_mode = #tpu.pipeline_mode<synchronous>, transform_indices = @transform_7, window_bounds = array<i64: 3, 5, 2>}, {pipeline_mode = #tpu.pipeline_mode<synchronous>, transform_indices = @transform_8, window_bounds = array<i64: 3, 16, 80>}, {pipeline_mode = #tpu.pipeline_mode<synchronous>, transform_indices = @transform_9, window_bounds = array<i64: 1, 80>}, {pipeline_mode = #tpu.pipeline_mode<synchronous>, transform_indices = @transform_10, window_bounds = array<i64: 5, 15, 5>}, {pipeline_mode = #tpu.pipeline_mode<synchronous>, transform_indices = @transform_11, window_bounds = array<i64: 5, 80, 120>}, {pipeline_mode = #tpu.pipeline_mode<synchronous>, transform_indices = @transform_12, window_bounds = array<i64: 1, 120>}, {pipeline_mode = #tpu.pipeline_mode<synchronous>, transform_indices = @transform_13, window_bounds = array<i64: 2, 28, 15>}, {pipeline_mode = #tpu.pipeline_mode<synchronous>, transform_indices = @transform_14, window_bounds = array<i64: 2, 120, 28>}, {pipeline_mode = #tpu.pipeline_mode<synchronous>, transform_indices = @transform_15, window_bounds = array<i64: 1, 28>}, {transform_indices = @transform_16, window_bounds = array<i64: 1, 28, 28>}]} {
    %c0 = arith.constant 0 : index
    %c0_0 = arith.constant 0 : index
    %c0_1 = arith.constant 0 : index
    %0 = vector.load %arg1[%c0, %c0_0, %c0_1] : memref<1x28x28xf32, #tpu.memory_space<vmem>>, vector<1x28x28xf32>
    %1 = vector.shape_cast %0 : vector<1x28x28xf32> to vector<28x28xf32>
    %c0_2 = arith.constant 0 : index
    %c0_3 = arith.constant 0 : index
    %c0_4 = arith.constant 0 : index
    %2 = vector.load %arg2[%c0_2, %c0_3, %c0_4] : memref<6x5x28xf32, #tpu.memory_space<vmem>>, vector<1x5x28xf32>
    %3 = vector.shape_cast %2 : vector<1x5x28xf32> to vector<5x28xf32>
    %cst = arith.constant dense<0.000000e+00> : vector<5x28xf32>
    %4 = tpu.matmul %3, %1, %cst {dimension_numbers = #tpu.dot_dimension_numbers<[1], [0], [0], [1], [0, 0, 1, 1], [], []>} : vector<5x28xf32>, vector<28x28xf32>, vector<5x28xf32> -> vector<5x28xf32>
    %c1 = arith.constant 1 : index
    %c0_5 = arith.constant 0 : index
    %c0_6 = arith.constant 0 : index
    %5 = vector.load %arg2[%c1, %c0_5, %c0_6] : memref<6x5x28xf32, #tpu.memory_space<vmem>>, vector<1x5x28xf32>
    %6 = vector.shape_cast %5 : vector<1x5x28xf32> to vector<5x28xf32>
    %cst_7 = arith.constant dense<0.000000e+00> : vector<5x28xf32>
    %7 = tpu.matmul %6, %1, %cst_7 {dimension_numbers = #tpu.dot_dimension_numbers<[1], [0], [0], [1], [0, 0, 1, 1], [], []>} : vector<5x28xf32>, vector<28x28xf32>, vector<5x28xf32> -> vector<5x28xf32>
    %c2 = arith.constant 2 : index
    %c0_8 = arith.constant 0 : index
    %c0_9 = arith.constant 0 : index
    %8 = vector.load %arg2[%c2, %c0_8, %c0_9] : memref<6x5x28xf32, #tpu.memory_space<vmem>>, vector<1x5x28xf32>
    %9 = vector.shape_cast %8 : vector<1x5x28xf32> to vector<5x28xf32>
    %cst_10 = arith.constant dense<0.000000e+00> : vector<5x28xf32>
    %10 = tpu.matmul %9, %1, %cst_10 {dimension_numbers = #tpu.dot_dimension_numbers<[1], [0], [0], [1], [0, 0, 1, 1], [], []>} : vector<5x28xf32>, vector<28x28xf32>, vector<5x28xf32> -> vector<5x28xf32>
    %c3 = arith.constant 3 : index
    %c0_11 = arith.constant 0 : index
    %c0_12 = arith.constant 0 : index
    %11 = vector.load %arg2[%c3, %c0_11, %c0_12] : memref<6x5x28xf32, #tpu.memory_space<vmem>>, vector<1x5x28xf32>
    %12 = vector.shape_cast %11 : vector<1x5x28xf32> to vector<5x28xf32>
    %cst_13 = arith.constant dense<0.000000e+00> : vector<5x28xf32>
    %13 = tpu.matmul %12, %1, %cst_13 {dimension_numbers = #tpu.dot_dimension_numbers<[1], [0], [0], [1], [0, 0, 1, 1], [], []>} : vector<5x28xf32>, vector<28x28xf32>, vector<5x28xf32> -> vector<5x28xf32>
    %c4 = arith.constant 4 : index
    %c0_14 = arith.constant 0 : index
    %c0_15 = arith.constant 0 : index
    %14 = vector.load %arg2[%c4, %c0_14, %c0_15] : memref<6x5x28xf32, #tpu.memory_space<vmem>>, vector<1x5x28xf32>
    %15 = vector.shape_cast %14 : vector<1x5x28xf32> to vector<5x28xf32>
    %cst_16 = arith.constant dense<0.000000e+00> : vector<5x28xf32>
    %16 = tpu.matmul %15, %1, %cst_16 {dimension_numbers = #tpu.dot_dimension_numbers<[1], [0], [0], [1], [0, 0, 1, 1], [], []>} : vector<5x28xf32>, vector<28x28xf32>, vector<5x28xf32> -> vector<5x28xf32>
    %c5 = arith.constant 5 : index
    %c0_17 = arith.constant 0 : index
    %c0_18 = arith.constant 0 : index
    %17 = vector.load %arg2[%c5, %c0_17, %c0_18] : memref<6x5x28xf32, #tpu.memory_space<vmem>>, vector<1x5x28xf32>
    %18 = vector.shape_cast %17 : vector<1x5x28xf32> to vector<5x28xf32>
    %cst_19 = arith.constant dense<0.000000e+00> : vector<5x28xf32>
    %19 = tpu.matmul %18, %1, %cst_19 {dimension_numbers = #tpu.dot_dimension_numbers<[1], [0], [0], [1], [0, 0, 1, 1], [], []>} : vector<5x28xf32>, vector<28x28xf32>, vector<5x28xf32> -> vector<5x28xf32>
    %c0_20 = arith.constant 0 : index
    %c0_21 = arith.constant 0 : index
    %c0_22 = arith.constant 0 : index
    %20 = vector.load %arg3[%c0_20, %c0_21, %c0_22] : memref<6x28x80xf32, #tpu.memory_space<vmem>>, vector<1x28x80xf32>
    %21 = vector.shape_cast %20 : vector<1x28x80xf32> to vector<28x80xf32>
    %cst_23 = arith.constant dense<0.000000e+00> : vector<5x80xf32>
    %22 = tpu.matmul %4, %21, %cst_23 {dimension_numbers = #tpu.dot_dimension_numbers<[1], [0], [0], [1], [0, 0, 1, 1], [], []>} : vector<5x28xf32>, vector<28x80xf32>, vector<5x80xf32> -> vector<5x80xf32>
    %c2_24 = arith.constant 2 : index
    %c0_25 = arith.constant 0 : index
    %c0_26 = arith.constant 0 : index
    %23 = vector.load %arg3[%c2_24, %c0_25, %c0_26] : memref<6x28x80xf32, #tpu.memory_space<vmem>>, vector<1x28x80xf32>
    %24 = vector.shape_cast %23 : vector<1x28x80xf32> to vector<28x80xf32>
    %cst_27 = arith.constant dense<0.000000e+00> : vector<5x80xf32>
    %25 = tpu.matmul %10, %24, %cst_27 {dimension_numbers = #tpu.dot_dimension_numbers<[1], [0], [0], [1], [0, 0, 1, 1], [], []>} : vector<5x28xf32>, vector<28x80xf32>, vector<5x80xf32> -> vector<5x80xf32>
    %26 = arith.addf %22, %25 : vector<5x80xf32>
    %c4_28 = arith.constant 4 : index
    %c0_29 = arith.constant 0 : index
    %c0_30 = arith.constant 0 : index
    %27 = vector.load %arg3[%c4_28, %c0_29, %c0_30] : memref<6x28x80xf32, #tpu.memory_space<vmem>>, vector<1x28x80xf32>
    %28 = vector.shape_cast %27 : vector<1x28x80xf32> to vector<28x80xf32>
    %cst_31 = arith.constant dense<0.000000e+00> : vector<5x80xf32>
    %29 = tpu.matmul %16, %28, %cst_31 {dimension_numbers = #tpu.dot_dimension_numbers<[1], [0], [0], [1], [0, 0, 1, 1], [], []>} : vector<5x28xf32>, vector<28x80xf32>, vector<5x80xf32> -> vector<5x80xf32>
    %30 = arith.addf %26, %29 : vector<5x80xf32>
    %c1_32 = arith.constant 1 : index
    %c0_33 = arith.constant 0 : index
    %c0_34 = arith.constant 0 : index
    %31 = vector.load %arg3[%c1_32, %c0_33, %c0_34] : memref<6x28x80xf32, #tpu.memory_space<vmem>>, vector<1x28x80xf32>
    %32 = vector.shape_cast %31 : vector<1x28x80xf32> to vector<28x80xf32>
    %cst_35 = arith.constant dense<0.000000e+00> : vector<5x80xf32>
    %33 = tpu.matmul %4, %32, %cst_35 {dimension_numbers = #tpu.dot_dimension_numbers<[1], [0], [0], [1], [0, 0, 1, 1], [], []>} : vector<5x28xf32>, vector<28x80xf32>, vector<5x80xf32> -> vector<5x80xf32>
    %c3_36 = arith.constant 3 : index
    %c0_37 = arith.constant 0 : index
    %c0_38 = arith.constant 0 : index
    %34 = vector.load %arg3[%c3_36, %c0_37, %c0_38] : memref<6x28x80xf32, #tpu.memory_space<vmem>>, vector<1x28x80xf32>
    %35 = vector.shape_cast %34 : vector<1x28x80xf32> to vector<28x80xf32>
    %cst_39 = arith.constant dense<0.000000e+00> : vector<5x80xf32>
    %36 = tpu.matmul %10, %35, %cst_39 {dimension_numbers = #tpu.dot_dimension_numbers<[1], [0], [0], [1], [0, 0, 1, 1], [], []>} : vector<5x28xf32>, vector<28x80xf32>, vector<5x80xf32> -> vector<5x80xf32>
    %37 = arith.addf %33, %36 : vector<5x80xf32>
    %c5_40 = arith.constant 5 : index
    %c0_41 = arith.constant 0 : index
    %c0_42 = arith.constant 0 : index
    %38 = vector.load %arg3[%c5_40, %c0_41, %c0_42] : memref<6x28x80xf32, #tpu.memory_space<vmem>>, vector<1x28x80xf32>
    %39 = vector.shape_cast %38 : vector<1x28x80xf32> to vector<28x80xf32>
    %cst_43 = arith.constant dense<0.000000e+00> : vector<5x80xf32>
    %40 = tpu.matmul %16, %39, %cst_43 {dimension_numbers = #tpu.dot_dimension_numbers<[1], [0], [0], [1], [0, 0, 1, 1], [], []>} : vector<5x28xf32>, vector<28x80xf32>, vector<5x80xf32> -> vector<5x80xf32>
    %41 = arith.addf %37, %40 : vector<5x80xf32>
    %42 = arith.maximumf %30, %41 : vector<5x80xf32>
    %c0_44 = arith.constant 0 : index
    %c0_45 = arith.constant 0 : index
    %c0_46 = arith.constant 0 : index
    %43 = vector.load %arg3[%c0_44, %c0_45, %c0_46] : memref<6x28x80xf32, #tpu.memory_space<vmem>>, vector<1x28x80xf32>
    %44 = vector.shape_cast %43 : vector<1x28x80xf32> to vector<28x80xf32>
    %cst_47 = arith.constant dense<0.000000e+00> : vector<5x80xf32>
    %45 = tpu.matmul %7, %44, %cst_47 {dimension_numbers = #tpu.dot_dimension_numbers<[1], [0], [0], [1], [0, 0, 1, 1], [], []>} : vector<5x28xf32>, vector<28x80xf32>, vector<5x80xf32> -> vector<5x80xf32>
    %c2_48 = arith.constant 2 : index
    %c0_49 = arith.constant 0 : index
    %c0_50 = arith.constant 0 : index
    %46 = vector.load %arg3[%c2_48, %c0_49, %c0_50] : memref<6x28x80xf32, #tpu.memory_space<vmem>>, vector<1x28x80xf32>
    %47 = vector.shape_cast %46 : vector<1x28x80xf32> to vector<28x80xf32>
    %cst_51 = arith.constant dense<0.000000e+00> : vector<5x80xf32>
    %48 = tpu.matmul %13, %47, %cst_51 {dimension_numbers = #tpu.dot_dimension_numbers<[1], [0], [0], [1], [0, 0, 1, 1], [], []>} : vector<5x28xf32>, vector<28x80xf32>, vector<5x80xf32> -> vector<5x80xf32>
    %49 = arith.addf %45, %48 : vector<5x80xf32>
    %c4_52 = arith.constant 4 : index
    %c0_53 = arith.constant 0 : index
    %c0_54 = arith.constant 0 : index
    %50 = vector.load %arg3[%c4_52, %c0_53, %c0_54] : memref<6x28x80xf32, #tpu.memory_space<vmem>>, vector<1x28x80xf32>
    %51 = vector.shape_cast %50 : vector<1x28x80xf32> to vector<28x80xf32>
    %cst_55 = arith.constant dense<0.000000e+00> : vector<5x80xf32>
    %52 = tpu.matmul %19, %51, %cst_55 {dimension_numbers = #tpu.dot_dimension_numbers<[1], [0], [0], [1], [0, 0, 1, 1], [], []>} : vector<5x28xf32>, vector<28x80xf32>, vector<5x80xf32> -> vector<5x80xf32>
    %53 = arith.addf %49, %52 : vector<5x80xf32>
    %54 = arith.maximumf %42, %53 : vector<5x80xf32>
    %c1_56 = arith.constant 1 : index
    %c0_57 = arith.constant 0 : index
    %c0_58 = arith.constant 0 : index
    %55 = vector.load %arg3[%c1_56, %c0_57, %c0_58] : memref<6x28x80xf32, #tpu.memory_space<vmem>>, vector<1x28x80xf32>
    %56 = vector.shape_cast %55 : vector<1x28x80xf32> to vector<28x80xf32>
    %cst_59 = arith.constant dense<0.000000e+00> : vector<5x80xf32>
    %57 = tpu.matmul %7, %56, %cst_59 {dimension_numbers = #tpu.dot_dimension_numbers<[1], [0], [0], [1], [0, 0, 1, 1], [], []>} : vector<5x28xf32>, vector<28x80xf32>, vector<5x80xf32> -> vector<5x80xf32>
    %c3_60 = arith.constant 3 : index
    %c0_61 = arith.constant 0 : index
    %c0_62 = arith.constant 0 : index
    %58 = vector.load %arg3[%c3_60, %c0_61, %c0_62] : memref<6x28x80xf32, #tpu.memory_space<vmem>>, vector<1x28x80xf32>
    %59 = vector.shape_cast %58 : vector<1x28x80xf32> to vector<28x80xf32>
    %cst_63 = arith.constant dense<0.000000e+00> : vector<5x80xf32>
    %60 = tpu.matmul %13, %59, %cst_63 {dimension_numbers = #tpu.dot_dimension_numbers<[1], [0], [0], [1], [0, 0, 1, 1], [], []>} : vector<5x28xf32>, vector<28x80xf32>, vector<5x80xf32> -> vector<5x80xf32>
    %61 = arith.addf %57, %60 : vector<5x80xf32>
    %c5_64 = arith.constant 5 : index
    %c0_65 = arith.constant 0 : index
    %c0_66 = arith.constant 0 : index
    %62 = vector.load %arg3[%c5_64, %c0_65, %c0_66] : memref<6x28x80xf32, #tpu.memory_space<vmem>>, vector<1x28x80xf32>
    %63 = vector.shape_cast %62 : vector<1x28x80xf32> to vector<28x80xf32>
    %cst_67 = arith.constant dense<0.000000e+00> : vector<5x80xf32>
    %64 = tpu.matmul %19, %63, %cst_67 {dimension_numbers = #tpu.dot_dimension_numbers<[1], [0], [0], [1], [0, 0, 1, 1], [], []>} : vector<5x28xf32>, vector<28x80xf32>, vector<5x80xf32> -> vector<5x80xf32>
    %65 = arith.addf %61, %64 : vector<5x80xf32>
    %66 = arith.maximumf %54, %65 : vector<5x80xf32>
    %c0_68 = arith.constant 0 : index
    %c0_69 = arith.constant 0 : index
    %67 = vector.load %arg4[%c0_68, %c0_69] : memref<1x80xf32, #tpu.memory_space<vmem>>, vector<1x80xf32>
    %68 = vector.broadcast %67 : vector<1x80xf32> to vector<5x80xf32>
    %69 = arith.addf %66, %68 : vector<5x80xf32>
    %cst_70 = arith.constant 0.000000e+00 : f32
    %70 = vector.broadcast %cst_70 : f32 to vector<5x80xf32>
    %71 = arith.maximumf %69, %70 : vector<5x80xf32>
    %c0_71 = arith.constant 0 : index
    %c0_72 = arith.constant 0 : index
    %c0_73 = arith.constant 0 : index
    %72 = vector.load %arg5[%c0_71, %c0_72, %c0_73] : memref<6x2x5xf32, #tpu.memory_space<vmem>>, vector<1x2x5xf32>
    %73 = vector.shape_cast %72 : vector<1x2x5xf32> to vector<2x5xf32>
    %cst_74 = arith.constant dense<0.000000e+00> : vector<2x80xf32>
    %74 = tpu.matmul %73, %71, %cst_74 {dimension_numbers = #tpu.dot_dimension_numbers<[1], [0], [0], [1], [0, 0, 1, 1], [], []>} : vector<2x5xf32>, vector<5x80xf32>, vector<2x80xf32> -> vector<2x80xf32>
    %c1_75 = arith.constant 1 : index
    %c0_76 = arith.constant 0 : index
    %c0_77 = arith.constant 0 : index
    %75 = vector.load %arg5[%c1_75, %c0_76, %c0_77] : memref<6x2x5xf32, #tpu.memory_space<vmem>>, vector<1x2x5xf32>
    %76 = vector.shape_cast %75 : vector<1x2x5xf32> to vector<2x5xf32>
    %cst_78 = arith.constant dense<0.000000e+00> : vector<2x80xf32>
    %77 = tpu.matmul %76, %71, %cst_78 {dimension_numbers = #tpu.dot_dimension_numbers<[1], [0], [0], [1], [0, 0, 1, 1], [], []>} : vector<2x5xf32>, vector<5x80xf32>, vector<2x80xf32> -> vector<2x80xf32>
    %c2_79 = arith.constant 2 : index
    %c0_80 = arith.constant 0 : index
    %c0_81 = arith.constant 0 : index
    %78 = vector.load %arg5[%c2_79, %c0_80, %c0_81] : memref<6x2x5xf32, #tpu.memory_space<vmem>>, vector<1x2x5xf32>
    %79 = vector.shape_cast %78 : vector<1x2x5xf32> to vector<2x5xf32>
    %cst_82 = arith.constant dense<0.000000e+00> : vector<2x80xf32>
    %80 = tpu.matmul %79, %71, %cst_82 {dimension_numbers = #tpu.dot_dimension_numbers<[1], [0], [0], [1], [0, 0, 1, 1], [], []>} : vector<2x5xf32>, vector<5x80xf32>, vector<2x80xf32> -> vector<2x80xf32>
    %c3_83 = arith.constant 3 : index
    %c0_84 = arith.constant 0 : index
    %c0_85 = arith.constant 0 : index
    %81 = vector.load %arg5[%c3_83, %c0_84, %c0_85] : memref<6x2x5xf32, #tpu.memory_space<vmem>>, vector<1x2x5xf32>
    %82 = vector.shape_cast %81 : vector<1x2x5xf32> to vector<2x5xf32>
    %cst_86 = arith.constant dense<0.000000e+00> : vector<2x80xf32>
    %83 = tpu.matmul %82, %71, %cst_86 {dimension_numbers = #tpu.dot_dimension_numbers<[1], [0], [0], [1], [0, 0, 1, 1], [], []>} : vector<2x5xf32>, vector<5x80xf32>, vector<2x80xf32> -> vector<2x80xf32>
    %c4_87 = arith.constant 4 : index
    %c0_88 = arith.constant 0 : index
    %c0_89 = arith.constant 0 : index
    %84 = vector.load %arg5[%c4_87, %c0_88, %c0_89] : memref<6x2x5xf32, #tpu.memory_space<vmem>>, vector<1x2x5xf32>
    %85 = vector.shape_cast %84 : vector<1x2x5xf32> to vector<2x5xf32>
    %cst_90 = arith.constant dense<0.000000e+00> : vector<2x80xf32>
    %86 = tpu.matmul %85, %71, %cst_90 {dimension_numbers = #tpu.dot_dimension_numbers<[1], [0], [0], [1], [0, 0, 1, 1], [], []>} : vector<2x5xf32>, vector<5x80xf32>, vector<2x80xf32> -> vector<2x80xf32>
    %c5_91 = arith.constant 5 : index
    %c0_92 = arith.constant 0 : index
    %c0_93 = arith.constant 0 : index
    %87 = vector.load %arg5[%c5_91, %c0_92, %c0_93] : memref<6x2x5xf32, #tpu.memory_space<vmem>>, vector<1x2x5xf32>
    %88 = vector.shape_cast %87 : vector<1x2x5xf32> to vector<2x5xf32>
    %cst_94 = arith.constant dense<0.000000e+00> : vector<2x80xf32>
    %89 = tpu.matmul %88, %71, %cst_94 {dimension_numbers = #tpu.dot_dimension_numbers<[1], [0], [0], [1], [0, 0, 1, 1], [], []>} : vector<2x5xf32>, vector<5x80xf32>, vector<2x80xf32> -> vector<2x80xf32>
    %c0_95 = arith.constant 0 : index
    %c0_96 = arith.constant 0 : index
    %c0_97 = arith.constant 0 : index
    %90 = vector.load %arg6[%c0_95, %c0_96, %c0_97] : memref<6x80x16xf32, #tpu.memory_space<vmem>>, vector<1x80x16xf32>
    %91 = vector.shape_cast %90 : vector<1x80x16xf32> to vector<80x16xf32>
    %cst_98 = arith.constant dense<0.000000e+00> : vector<2x16xf32>
    %92 = tpu.matmul %74, %91, %cst_98 {dimension_numbers = #tpu.dot_dimension_numbers<[1], [0], [0], [1], [0, 0, 1, 1], [], []>} : vector<2x80xf32>, vector<80x16xf32>, vector<2x16xf32> -> vector<2x16xf32>
    %c2_99 = arith.constant 2 : index
    %c0_100 = arith.constant 0 : index
    %c0_101 = arith.constant 0 : index
    %93 = vector.load %arg6[%c2_99, %c0_100, %c0_101] : memref<6x80x16xf32, #tpu.memory_space<vmem>>, vector<1x80x16xf32>
    %94 = vector.shape_cast %93 : vector<1x80x16xf32> to vector<80x16xf32>
    %cst_102 = arith.constant dense<0.000000e+00> : vector<2x16xf32>
    %95 = tpu.matmul %80, %94, %cst_102 {dimension_numbers = #tpu.dot_dimension_numbers<[1], [0], [0], [1], [0, 0, 1, 1], [], []>} : vector<2x80xf32>, vector<80x16xf32>, vector<2x16xf32> -> vector<2x16xf32>
    %96 = arith.addf %92, %95 : vector<2x16xf32>
    %c4_103 = arith.constant 4 : index
    %c0_104 = arith.constant 0 : index
    %c0_105 = arith.constant 0 : index
    %97 = vector.load %arg6[%c4_103, %c0_104, %c0_105] : memref<6x80x16xf32, #tpu.memory_space<vmem>>, vector<1x80x16xf32>
    %98 = vector.shape_cast %97 : vector<1x80x16xf32> to vector<80x16xf32>
    %cst_106 = arith.constant dense<0.000000e+00> : vector<2x16xf32>
    %99 = tpu.matmul %86, %98, %cst_106 {dimension_numbers = #tpu.dot_dimension_numbers<[1], [0], [0], [1], [0, 0, 1, 1], [], []>} : vector<2x80xf32>, vector<80x16xf32>, vector<2x16xf32> -> vector<2x16xf32>
    %100 = arith.addf %96, %99 : vector<2x16xf32>
    %c1_107 = arith.constant 1 : index
    %c0_108 = arith.constant 0 : index
    %c0_109 = arith.constant 0 : index
    %101 = vector.load %arg6[%c1_107, %c0_108, %c0_109] : memref<6x80x16xf32, #tpu.memory_space<vmem>>, vector<1x80x16xf32>
    %102 = vector.shape_cast %101 : vector<1x80x16xf32> to vector<80x16xf32>
    %cst_110 = arith.constant dense<0.000000e+00> : vector<2x16xf32>
    %103 = tpu.matmul %74, %102, %cst_110 {dimension_numbers = #tpu.dot_dimension_numbers<[1], [0], [0], [1], [0, 0, 1, 1], [], []>} : vector<2x80xf32>, vector<80x16xf32>, vector<2x16xf32> -> vector<2x16xf32>
    %c3_111 = arith.constant 3 : index
    %c0_112 = arith.constant 0 : index
    %c0_113 = arith.constant 0 : index
    %104 = vector.load %arg6[%c3_111, %c0_112, %c0_113] : memref<6x80x16xf32, #tpu.memory_space<vmem>>, vector<1x80x16xf32>
    %105 = vector.shape_cast %104 : vector<1x80x16xf32> to vector<80x16xf32>
    %cst_114 = arith.constant dense<0.000000e+00> : vector<2x16xf32>
    %106 = tpu.matmul %80, %105, %cst_114 {dimension_numbers = #tpu.dot_dimension_numbers<[1], [0], [0], [1], [0, 0, 1, 1], [], []>} : vector<2x80xf32>, vector<80x16xf32>, vector<2x16xf32> -> vector<2x16xf32>
    %107 = arith.addf %103, %106 : vector<2x16xf32>
    %c5_115 = arith.constant 5 : index
    %c0_116 = arith.constant 0 : index
    %c0_117 = arith.constant 0 : index
    %108 = vector.load %arg6[%c5_115, %c0_116, %c0_117] : memref<6x80x16xf32, #tpu.memory_space<vmem>>, vector<1x80x16xf32>
    %109 = vector.shape_cast %108 : vector<1x80x16xf32> to vector<80x16xf32>
    %cst_118 = arith.constant dense<0.000000e+00> : vector<2x16xf32>
    %110 = tpu.matmul %86, %109, %cst_118 {dimension_numbers = #tpu.dot_dimension_numbers<[1], [0], [0], [1], [0, 0, 1, 1], [], []>} : vector<2x80xf32>, vector<80x16xf32>, vector<2x16xf32> -> vector<2x16xf32>
    %111 = arith.addf %107, %110 : vector<2x16xf32>
    %112 = arith.maximumf %100, %111 : vector<2x16xf32>
    %c0_119 = arith.constant 0 : index
    %c0_120 = arith.constant 0 : index
    %c0_121 = arith.constant 0 : index
    %113 = vector.load %arg6[%c0_119, %c0_120, %c0_121] : memref<6x80x16xf32, #tpu.memory_space<vmem>>, vector<1x80x16xf32>
    %114 = vector.shape_cast %113 : vector<1x80x16xf32> to vector<80x16xf32>
    %cst_122 = arith.constant dense<0.000000e+00> : vector<2x16xf32>
    %115 = tpu.matmul %77, %114, %cst_122 {dimension_numbers = #tpu.dot_dimension_numbers<[1], [0], [0], [1], [0, 0, 1, 1], [], []>} : vector<2x80xf32>, vector<80x16xf32>, vector<2x16xf32> -> vector<2x16xf32>
    %c2_123 = arith.constant 2 : index
    %c0_124 = arith.constant 0 : index
    %c0_125 = arith.constant 0 : index
    %116 = vector.load %arg6[%c2_123, %c0_124, %c0_125] : memref<6x80x16xf32, #tpu.memory_space<vmem>>, vector<1x80x16xf32>
    %117 = vector.shape_cast %116 : vector<1x80x16xf32> to vector<80x16xf32>
    %cst_126 = arith.constant dense<0.000000e+00> : vector<2x16xf32>
    %118 = tpu.matmul %83, %117, %cst_126 {dimension_numbers = #tpu.dot_dimension_numbers<[1], [0], [0], [1], [0, 0, 1, 1], [], []>} : vector<2x80xf32>, vector<80x16xf32>, vector<2x16xf32> -> vector<2x16xf32>
    %119 = arith.addf %115, %118 : vector<2x16xf32>
    %c4_127 = arith.constant 4 : index
    %c0_128 = arith.constant 0 : index
    %c0_129 = arith.constant 0 : index
    %120 = vector.load %arg6[%c4_127, %c0_128, %c0_129] : memref<6x80x16xf32, #tpu.memory_space<vmem>>, vector<1x80x16xf32>
    %121 = vector.shape_cast %120 : vector<1x80x16xf32> to vector<80x16xf32>
    %cst_130 = arith.constant dense<0.000000e+00> : vector<2x16xf32>
    %122 = tpu.matmul %89, %121, %cst_130 {dimension_numbers = #tpu.dot_dimension_numbers<[1], [0], [0], [1], [0, 0, 1, 1], [], []>} : vector<2x80xf32>, vector<80x16xf32>, vector<2x16xf32> -> vector<2x16xf32>
    %123 = arith.addf %119, %122 : vector<2x16xf32>
    %124 = arith.maximumf %112, %123 : vector<2x16xf32>
    %c1_131 = arith.constant 1 : index
    %c0_132 = arith.constant 0 : index
    %c0_133 = arith.constant 0 : index
    %125 = vector.load %arg6[%c1_131, %c0_132, %c0_133] : memref<6x80x16xf32, #tpu.memory_space<vmem>>, vector<1x80x16xf32>
    %126 = vector.shape_cast %125 : vector<1x80x16xf32> to vector<80x16xf32>
    %cst_134 = arith.constant dense<0.000000e+00> : vector<2x16xf32>
    %127 = tpu.matmul %77, %126, %cst_134 {dimension_numbers = #tpu.dot_dimension_numbers<[1], [0], [0], [1], [0, 0, 1, 1], [], []>} : vector<2x80xf32>, vector<80x16xf32>, vector<2x16xf32> -> vector<2x16xf32>
    %c3_135 = arith.constant 3 : index
    %c0_136 = arith.constant 0 : index
    %c0_137 = arith.constant 0 : index
    %128 = vector.load %arg6[%c3_135, %c0_136, %c0_137] : memref<6x80x16xf32, #tpu.memory_space<vmem>>, vector<1x80x16xf32>
    %129 = vector.shape_cast %128 : vector<1x80x16xf32> to vector<80x16xf32>
    %cst_138 = arith.constant dense<0.000000e+00> : vector<2x16xf32>
    %130 = tpu.matmul %83, %129, %cst_138 {dimension_numbers = #tpu.dot_dimension_numbers<[1], [0], [0], [1], [0, 0, 1, 1], [], []>} : vector<2x80xf32>, vector<80x16xf32>, vector<2x16xf32> -> vector<2x16xf32>
    %131 = arith.addf %127, %130 : vector<2x16xf32>
    %c5_139 = arith.constant 5 : index
    %c0_140 = arith.constant 0 : index
    %c0_141 = arith.constant 0 : index
    %132 = vector.load %arg6[%c5_139, %c0_140, %c0_141] : memref<6x80x16xf32, #tpu.memory_space<vmem>>, vector<1x80x16xf32>
    %133 = vector.shape_cast %132 : vector<1x80x16xf32> to vector<80x16xf32>
    %cst_142 = arith.constant dense<0.000000e+00> : vector<2x16xf32>
    %134 = tpu.matmul %89, %133, %cst_142 {dimension_numbers = #tpu.dot_dimension_numbers<[1], [0], [0], [1], [0, 0, 1, 1], [], []>} : vector<2x80xf32>, vector<80x16xf32>, vector<2x16xf32> -> vector<2x16xf32>
    %135 = arith.addf %131, %134 : vector<2x16xf32>
    %136 = arith.maximumf %124, %135 : vector<2x16xf32>
    %c0_143 = arith.constant 0 : index
    %c0_144 = arith.constant 0 : index
    %137 = vector.load %arg7[%c0_143, %c0_144] : memref<1x16xf32, #tpu.memory_space<vmem>>, vector<1x16xf32>
    %138 = vector.broadcast %137 : vector<1x16xf32> to vector<2x16xf32>
    %139 = arith.addf %136, %138 : vector<2x16xf32>
    %cst_145 = arith.constant 0.000000e+00 : f32
    %140 = vector.broadcast %cst_145 : f32 to vector<2x16xf32>
    %141 = arith.maximumf %139, %140 : vector<2x16xf32>
    %c0_146 = arith.constant 0 : index
    %c0_147 = arith.constant 0 : index
    %c0_148 = arith.constant 0 : index
    %142 = vector.load %arg8[%c0_146, %c0_147, %c0_148] : memref<3x5x2xf32, #tpu.memory_space<vmem>>, vector<1x5x2xf32>
    %143 = vector.shape_cast %142 : vector<1x5x2xf32> to vector<5x2xf32>
    %cst_149 = arith.constant dense<0.000000e+00> : vector<5x16xf32>
    %144 = tpu.matmul %143, %141, %cst_149 {dimension_numbers = #tpu.dot_dimension_numbers<[1], [0], [0], [1], [0, 0, 1, 1], [], []>} : vector<5x2xf32>, vector<2x16xf32>, vector<5x16xf32> -> vector<5x16xf32>
    %c1_150 = arith.constant 1 : index
    %c0_151 = arith.constant 0 : index
    %c0_152 = arith.constant 0 : index
    %145 = vector.load %arg8[%c1_150, %c0_151, %c0_152] : memref<3x5x2xf32, #tpu.memory_space<vmem>>, vector<1x5x2xf32>
    %146 = vector.shape_cast %145 : vector<1x5x2xf32> to vector<5x2xf32>
    %cst_153 = arith.constant dense<0.000000e+00> : vector<5x16xf32>
    %147 = tpu.matmul %146, %141, %cst_153 {dimension_numbers = #tpu.dot_dimension_numbers<[1], [0], [0], [1], [0, 0, 1, 1], [], []>} : vector<5x2xf32>, vector<2x16xf32>, vector<5x16xf32> -> vector<5x16xf32>
    %c2_154 = arith.constant 2 : index
    %c0_155 = arith.constant 0 : index
    %c0_156 = arith.constant 0 : index
    %148 = vector.load %arg8[%c2_154, %c0_155, %c0_156] : memref<3x5x2xf32, #tpu.memory_space<vmem>>, vector<1x5x2xf32>
    %149 = vector.shape_cast %148 : vector<1x5x2xf32> to vector<5x2xf32>
    %cst_157 = arith.constant dense<0.000000e+00> : vector<5x16xf32>
    %150 = tpu.matmul %149, %141, %cst_157 {dimension_numbers = #tpu.dot_dimension_numbers<[1], [0], [0], [1], [0, 0, 1, 1], [], []>} : vector<5x2xf32>, vector<2x16xf32>, vector<5x16xf32> -> vector<5x16xf32>
    %c0_158 = arith.constant 0 : index
    %c0_159 = arith.constant 0 : index
    %c0_160 = arith.constant 0 : index
    %151 = vector.load %arg9[%c0_158, %c0_159, %c0_160] : memref<3x16x80xf32, #tpu.memory_space<vmem>>, vector<1x16x80xf32>
    %152 = vector.shape_cast %151 : vector<1x16x80xf32> to vector<16x80xf32>
    %cst_161 = arith.constant dense<0.000000e+00> : vector<5x80xf32>
    %153 = tpu.matmul %144, %152, %cst_161 {dimension_numbers = #tpu.dot_dimension_numbers<[1], [0], [0], [1], [0, 0, 1, 1], [], []>} : vector<5x16xf32>, vector<16x80xf32>, vector<5x80xf32> -> vector<5x80xf32>
    %c1_162 = arith.constant 1 : index
    %c0_163 = arith.constant 0 : index
    %c0_164 = arith.constant 0 : index
    %154 = vector.load %arg9[%c1_162, %c0_163, %c0_164] : memref<3x16x80xf32, #tpu.memory_space<vmem>>, vector<1x16x80xf32>
    %155 = vector.shape_cast %154 : vector<1x16x80xf32> to vector<16x80xf32>
    %cst_165 = arith.constant dense<0.000000e+00> : vector<5x80xf32>
    %156 = tpu.matmul %147, %155, %cst_165 {dimension_numbers = #tpu.dot_dimension_numbers<[1], [0], [0], [1], [0, 0, 1, 1], [], []>} : vector<5x16xf32>, vector<16x80xf32>, vector<5x80xf32> -> vector<5x80xf32>
    %157 = arith.addf %153, %156 : vector<5x80xf32>
    %c2_166 = arith.constant 2 : index
    %c0_167 = arith.constant 0 : index
    %c0_168 = arith.constant 0 : index
    %158 = vector.load %arg9[%c2_166, %c0_167, %c0_168] : memref<3x16x80xf32, #tpu.memory_space<vmem>>, vector<1x16x80xf32>
    %159 = vector.shape_cast %158 : vector<1x16x80xf32> to vector<16x80xf32>
    %cst_169 = arith.constant dense<0.000000e+00> : vector<5x80xf32>
    %160 = tpu.matmul %150, %159, %cst_169 {dimension_numbers = #tpu.dot_dimension_numbers<[1], [0], [0], [1], [0, 0, 1, 1], [], []>} : vector<5x16xf32>, vector<16x80xf32>, vector<5x80xf32> -> vector<5x80xf32>
    %161 = arith.addf %157, %160 : vector<5x80xf32>
    %c0_170 = arith.constant 0 : index
    %c0_171 = arith.constant 0 : index
    %162 = vector.load %arg10[%c0_170, %c0_171] : memref<1x80xf32, #tpu.memory_space<vmem>>, vector<1x80xf32>
    %163 = vector.broadcast %162 : vector<1x80xf32> to vector<5x80xf32>
    %164 = arith.addf %161, %163 : vector<5x80xf32>
    %cst_172 = arith.constant 0.000000e+00 : f32
    %165 = vector.broadcast %cst_172 : f32 to vector<5x80xf32>
    %166 = arith.maximumf %164, %165 : vector<5x80xf32>
    %c0_173 = arith.constant 0 : index
    %c0_174 = arith.constant 0 : index
    %c0_175 = arith.constant 0 : index
    %167 = vector.load %arg11[%c0_173, %c0_174, %c0_175] : memref<5x15x5xf32, #tpu.memory_space<vmem>>, vector<1x15x5xf32>
    %168 = vector.shape_cast %167 : vector<1x15x5xf32> to vector<15x5xf32>
    %cst_176 = arith.constant dense<0.000000e+00> : vector<15x80xf32>
    %169 = tpu.matmul %168, %166, %cst_176 {dimension_numbers = #tpu.dot_dimension_numbers<[1], [0], [0], [1], [0, 0, 1, 1], [], []>} : vector<15x5xf32>, vector<5x80xf32>, vector<15x80xf32> -> vector<15x80xf32>
    %c1_177 = arith.constant 1 : index
    %c0_178 = arith.constant 0 : index
    %c0_179 = arith.constant 0 : index
    %170 = vector.load %arg11[%c1_177, %c0_178, %c0_179] : memref<5x15x5xf32, #tpu.memory_space<vmem>>, vector<1x15x5xf32>
    %171 = vector.shape_cast %170 : vector<1x15x5xf32> to vector<15x5xf32>
    %cst_180 = arith.constant dense<0.000000e+00> : vector<15x80xf32>
    %172 = tpu.matmul %171, %166, %cst_180 {dimension_numbers = #tpu.dot_dimension_numbers<[1], [0], [0], [1], [0, 0, 1, 1], [], []>} : vector<15x5xf32>, vector<5x80xf32>, vector<15x80xf32> -> vector<15x80xf32>
    %c2_181 = arith.constant 2 : index
    %c0_182 = arith.constant 0 : index
    %c0_183 = arith.constant 0 : index
    %173 = vector.load %arg11[%c2_181, %c0_182, %c0_183] : memref<5x15x5xf32, #tpu.memory_space<vmem>>, vector<1x15x5xf32>
    %174 = vector.shape_cast %173 : vector<1x15x5xf32> to vector<15x5xf32>
    %cst_184 = arith.constant dense<0.000000e+00> : vector<15x80xf32>
    %175 = tpu.matmul %174, %166, %cst_184 {dimension_numbers = #tpu.dot_dimension_numbers<[1], [0], [0], [1], [0, 0, 1, 1], [], []>} : vector<15x5xf32>, vector<5x80xf32>, vector<15x80xf32> -> vector<15x80xf32>
    %c3_185 = arith.constant 3 : index
    %c0_186 = arith.constant 0 : index
    %c0_187 = arith.constant 0 : index
    %176 = vector.load %arg11[%c3_185, %c0_186, %c0_187] : memref<5x15x5xf32, #tpu.memory_space<vmem>>, vector<1x15x5xf32>
    %177 = vector.shape_cast %176 : vector<1x15x5xf32> to vector<15x5xf32>
    %cst_188 = arith.constant dense<0.000000e+00> : vector<15x80xf32>
    %178 = tpu.matmul %177, %166, %cst_188 {dimension_numbers = #tpu.dot_dimension_numbers<[1], [0], [0], [1], [0, 0, 1, 1], [], []>} : vector<15x5xf32>, vector<5x80xf32>, vector<15x80xf32> -> vector<15x80xf32>
    %c4_189 = arith.constant 4 : index
    %c0_190 = arith.constant 0 : index
    %c0_191 = arith.constant 0 : index
    %179 = vector.load %arg11[%c4_189, %c0_190, %c0_191] : memref<5x15x5xf32, #tpu.memory_space<vmem>>, vector<1x15x5xf32>
    %180 = vector.shape_cast %179 : vector<1x15x5xf32> to vector<15x5xf32>
    %cst_192 = arith.constant dense<0.000000e+00> : vector<15x80xf32>
    %181 = tpu.matmul %180, %166, %cst_192 {dimension_numbers = #tpu.dot_dimension_numbers<[1], [0], [0], [1], [0, 0, 1, 1], [], []>} : vector<15x5xf32>, vector<5x80xf32>, vector<15x80xf32> -> vector<15x80xf32>
    %c0_193 = arith.constant 0 : index
    %c0_194 = arith.constant 0 : index
    %c0_195 = arith.constant 0 : index
    %182 = vector.load %arg12[%c0_193, %c0_194, %c0_195] : memref<5x80x120xf32, #tpu.memory_space<vmem>>, vector<1x80x120xf32>
    %183 = vector.shape_cast %182 : vector<1x80x120xf32> to vector<80x120xf32>
    %cst_196 = arith.constant dense<0.000000e+00> : vector<15x120xf32>
    %184 = tpu.matmul %169, %183, %cst_196 {dimension_numbers = #tpu.dot_dimension_numbers<[1], [0], [0], [1], [0, 0, 1, 1], [], []>} : vector<15x80xf32>, vector<80x120xf32>, vector<15x120xf32> -> vector<15x120xf32>
    %c1_197 = arith.constant 1 : index
    %c0_198 = arith.constant 0 : index
    %c0_199 = arith.constant 0 : index
    %185 = vector.load %arg12[%c1_197, %c0_198, %c0_199] : memref<5x80x120xf32, #tpu.memory_space<vmem>>, vector<1x80x120xf32>
    %186 = vector.shape_cast %185 : vector<1x80x120xf32> to vector<80x120xf32>
    %cst_200 = arith.constant dense<0.000000e+00> : vector<15x120xf32>
    %187 = tpu.matmul %172, %186, %cst_200 {dimension_numbers = #tpu.dot_dimension_numbers<[1], [0], [0], [1], [0, 0, 1, 1], [], []>} : vector<15x80xf32>, vector<80x120xf32>, vector<15x120xf32> -> vector<15x120xf32>
    %188 = arith.addf %184, %187 : vector<15x120xf32>
    %c2_201 = arith.constant 2 : index
    %c0_202 = arith.constant 0 : index
    %c0_203 = arith.constant 0 : index
    %189 = vector.load %arg12[%c2_201, %c0_202, %c0_203] : memref<5x80x120xf32, #tpu.memory_space<vmem>>, vector<1x80x120xf32>
    %190 = vector.shape_cast %189 : vector<1x80x120xf32> to vector<80x120xf32>
    %cst_204 = arith.constant dense<0.000000e+00> : vector<15x120xf32>
    %191 = tpu.matmul %175, %190, %cst_204 {dimension_numbers = #tpu.dot_dimension_numbers<[1], [0], [0], [1], [0, 0, 1, 1], [], []>} : vector<15x80xf32>, vector<80x120xf32>, vector<15x120xf32> -> vector<15x120xf32>
    %192 = arith.addf %188, %191 : vector<15x120xf32>
    %c3_205 = arith.constant 3 : index
    %c0_206 = arith.constant 0 : index
    %c0_207 = arith.constant 0 : index
    %193 = vector.load %arg12[%c3_205, %c0_206, %c0_207] : memref<5x80x120xf32, #tpu.memory_space<vmem>>, vector<1x80x120xf32>
    %194 = vector.shape_cast %193 : vector<1x80x120xf32> to vector<80x120xf32>
    %cst_208 = arith.constant dense<0.000000e+00> : vector<15x120xf32>
    %195 = tpu.matmul %178, %194, %cst_208 {dimension_numbers = #tpu.dot_dimension_numbers<[1], [0], [0], [1], [0, 0, 1, 1], [], []>} : vector<15x80xf32>, vector<80x120xf32>, vector<15x120xf32> -> vector<15x120xf32>
    %196 = arith.addf %192, %195 : vector<15x120xf32>
    %c4_209 = arith.constant 4 : index
    %c0_210 = arith.constant 0 : index
    %c0_211 = arith.constant 0 : index
    %197 = vector.load %arg12[%c4_209, %c0_210, %c0_211] : memref<5x80x120xf32, #tpu.memory_space<vmem>>, vector<1x80x120xf32>
    %198 = vector.shape_cast %197 : vector<1x80x120xf32> to vector<80x120xf32>
    %cst_212 = arith.constant dense<0.000000e+00> : vector<15x120xf32>
    %199 = tpu.matmul %181, %198, %cst_212 {dimension_numbers = #tpu.dot_dimension_numbers<[1], [0], [0], [1], [0, 0, 1, 1], [], []>} : vector<15x80xf32>, vector<80x120xf32>, vector<15x120xf32> -> vector<15x120xf32>
    %200 = arith.addf %196, %199 : vector<15x120xf32>
    %c0_213 = arith.constant 0 : index
    %c0_214 = arith.constant 0 : index
    %201 = vector.load %arg13[%c0_213, %c0_214] : memref<1x120xf32, #tpu.memory_space<vmem>>, vector<1x120xf32>
    %202 = vector.broadcast %201 : vector<1x120xf32> to vector<15x120xf32>
    %203 = arith.addf %200, %202 : vector<15x120xf32>
    %cst_215 = arith.constant 0.000000e+00 : f32
    %204 = vector.broadcast %cst_215 : f32 to vector<15x120xf32>
    %205 = arith.maximumf %203, %204 : vector<15x120xf32>
    %c0_216 = arith.constant 0 : index
    %c0_217 = arith.constant 0 : index
    %c0_218 = arith.constant 0 : index
    %206 = vector.load %arg14[%c0_216, %c0_217, %c0_218] : memref<2x28x15xf32, #tpu.memory_space<vmem>>, vector<1x28x15xf32>
    %207 = vector.shape_cast %206 : vector<1x28x15xf32> to vector<28x15xf32>
    %cst_219 = arith.constant dense<0.000000e+00> : vector<28x120xf32>
    %208 = tpu.matmul %207, %205, %cst_219 {dimension_numbers = #tpu.dot_dimension_numbers<[1], [0], [0], [1], [0, 0, 1, 1], [], []>} : vector<28x15xf32>, vector<15x120xf32>, vector<28x120xf32> -> vector<28x120xf32>
    %c1_220 = arith.constant 1 : index
    %c0_221 = arith.constant 0 : index
    %c0_222 = arith.constant 0 : index
    %209 = vector.load %arg14[%c1_220, %c0_221, %c0_222] : memref<2x28x15xf32, #tpu.memory_space<vmem>>, vector<1x28x15xf32>
    %210 = vector.shape_cast %209 : vector<1x28x15xf32> to vector<28x15xf32>
    %cst_223 = arith.constant dense<0.000000e+00> : vector<28x120xf32>
    %211 = tpu.matmul %210, %205, %cst_223 {dimension_numbers = #tpu.dot_dimension_numbers<[1], [0], [0], [1], [0, 0, 1, 1], [], []>} : vector<28x15xf32>, vector<15x120xf32>, vector<28x120xf32> -> vector<28x120xf32>
    %c0_224 = arith.constant 0 : index
    %c0_225 = arith.constant 0 : index
    %c0_226 = arith.constant 0 : index
    %212 = vector.load %arg15[%c0_224, %c0_225, %c0_226] : memref<2x120x28xf32, #tpu.memory_space<vmem>>, vector<1x120x28xf32>
    %213 = vector.shape_cast %212 : vector<1x120x28xf32> to vector<120x28xf32>
    %cst_227 = arith.constant dense<0.000000e+00> : vector<28x28xf32>
    %214 = tpu.matmul %208, %213, %cst_227 {dimension_numbers = #tpu.dot_dimension_numbers<[1], [0], [0], [1], [0, 0, 1, 1], [], []>} : vector<28x120xf32>, vector<120x28xf32>, vector<28x28xf32> -> vector<28x28xf32>
    %c1_228 = arith.constant 1 : index
    %c0_229 = arith.constant 0 : index
    %c0_230 = arith.constant 0 : index
    %215 = vector.load %arg15[%c1_228, %c0_229, %c0_230] : memref<2x120x28xf32, #tpu.memory_space<vmem>>, vector<1x120x28xf32>
    %216 = vector.shape_cast %215 : vector<1x120x28xf32> to vector<120x28xf32>
    %cst_231 = arith.constant dense<0.000000e+00> : vector<28x28xf32>
    %217 = tpu.matmul %211, %216, %cst_231 {dimension_numbers = #tpu.dot_dimension_numbers<[1], [0], [0], [1], [0, 0, 1, 1], [], []>} : vector<28x120xf32>, vector<120x28xf32>, vector<28x28xf32> -> vector<28x28xf32>
    %218 = arith.addf %214, %217 : vector<28x28xf32>
    %c0_232 = arith.constant 0 : index
    %c0_233 = arith.constant 0 : index
    %219 = vector.load %arg16[%c0_232, %c0_233] : memref<1x28xf32, #tpu.memory_space<vmem>>, vector<1x28xf32>
    %220 = vector.broadcast %219 : vector<1x28xf32> to vector<28x28xf32>
    %221 = arith.addf %218, %220 : vector<28x28xf32>
    %222 = math.tanh %221 : vector<28x28xf32>
    %c0_234 = arith.constant 0 : index
    %c0_235 = arith.constant 0 : index
    %c0_236 = arith.constant 0 : index
    %223 = vector.load %arg17[%c0_234, %c0_235, %c0_236] : memref<1x28x28xf32, #tpu.memory_space<vmem>>, vector<1x28x28xf32>
    %224 = vector.shape_cast %223 : vector<1x28x28xf32> to vector<28x28xf32>
    %225 = vector.shape_cast %222 : vector<28x28xf32> to vector<1x28x28xf32>
    tpu.vector_store %arg17[%c0_234, %c0_235, %c0_236], %225 {strides = array<i32>} : memref<1x28x28xf32, #tpu.memory_space<vmem>>, vector<1x28x28xf32>,
    return
  }
  func.func @transform_0(%arg0: i32) -> (i32, i32, i32) {
    %c0_i32 = arith.constant 0 : i32
    %c0_i32_0 = arith.constant 0 : i32
    %c0_i32_1 = arith.constant 0 : i32
    return %arg0, %c0_i32, %c0_i32_0 : i32, i32, i32
  }
  func.func @transform_1(%arg0: i32) -> (i32, i32, i32) {
    %c0_i32 = arith.constant 0 : i32
    %c0_i32_0 = arith.constant 0 : i32
    %c0_i32_1 = arith.constant 0 : i32
    %c0_i32_2 = arith.constant 0 : i32
    return %c0_i32, %c0_i32_0, %c0_i32_1 : i32, i32, i32
  }
  func.func @transform_2(%arg0: i32) -> (i32, i32, i32) {
    %c0_i32 = arith.constant 0 : i32
    %c0_i32_0 = arith.constant 0 : i32
    %c0_i32_1 = arith.constant 0 : i32
    %c0_i32_2 = arith.constant 0 : i32
    return %c0_i32, %c0_i32_0, %c0_i32_1 : i32, i32, i32
  }
  func.func @transform_3(%arg0: i32) -> (i32, i32) {
    %c0_i32 = arith.constant 0 : i32
    %c0_i32_0 = arith.constant 0 : i32
    %c0_i32_1 = arith.constant 0 : i32
    return %c0_i32, %c0_i32_0 : i32, i32
  }
  func.func @transform_4(%arg0: i32) -> (i32, i32, i32) {
    %c0_i32 = arith.constant 0 : i32
    %c0_i32_0 = arith.constant 0 : i32
    %c0_i32_1 = arith.constant 0 : i32
    %c0_i32_2 = arith.constant 0 : i32
    return %c0_i32, %c0_i32_0, %c0_i32_1 : i32, i32, i32
  }
  func.func @transform_5(%arg0: i32) -> (i32, i32, i32) {
    %c0_i32 = arith.constant 0 : i32
    %c0_i32_0 = arith.constant 0 : i32
    %c0_i32_1 = arith.constant 0 : i32
    %c0_i32_2 = arith.constant 0 : i32
    return %c0_i32, %c0_i32_0, %c0_i32_1 : i32, i32, i32
  }
  func.func @transform_6(%arg0: i32) -> (i32, i32) {
    %c0_i32 = arith.constant 0 : i32
    %c0_i32_0 = arith.constant 0 : i32
    %c0_i32_1 = arith.constant 0 : i32
    return %c0_i32, %c0_i32_0 : i32, i32
  }
  func.func @transform_7(%arg0: i32) -> (i32, i32, i32) {
    %c0_i32 = arith.constant 0 : i32
    %c0_i32_0 = arith.constant 0 : i32
    %c0_i32_1 = arith.constant 0 : i32
    %c0_i32_2 = arith.constant 0 : i32
    return %c0_i32, %c0_i32_0, %c0_i32_1 : i32, i32, i32
  }
  func.func @transform_8(%arg0: i32) -> (i32, i32, i32) {
    %c0_i32 = arith.constant 0 : i32
    %c0_i32_0 = arith.constant 0 : i32
    %c0_i32_1 = arith.constant 0 : i32
    %c0_i32_2 = arith.constant 0 : i32
    return %c0_i32, %c0_i32_0, %c0_i32_1 : i32, i32, i32
  }
  func.func @transform_9(%arg0: i32) -> (i32, i32) {
    %c0_i32 = arith.constant 0 : i32
    %c0_i32_0 = arith.constant 0 : i32
    %c0_i32_1 = arith.constant 0 : i32
    return %c0_i32, %c0_i32_0 : i32, i32
  }
  func.func @transform_10(%arg0: i32) -> (i32, i32, i32) {
    %c0_i32 = arith.constant 0 : i32
    %c0_i32_0 = arith.constant 0 : i32
    %c0_i32_1 = arith.constant 0 : i32
    %c0_i32_2 = arith.constant 0 : i32
    return %c0_i32, %c0_i32_0, %c0_i32_1 : i32, i32, i32
  }
  func.func @transform_11(%arg0: i32) -> (i32, i32, i32) {
    %c0_i32 = arith.constant 0 : i32
    %c0_i32_0 = arith.constant 0 : i32
    %c0_i32_1 = arith.constant 0 : i32
    %c0_i32_2 = arith.constant 0 : i32
    return %c0_i32, %c0_i32_0, %c0_i32_1 : i32, i32, i32
  }
  func.func @transform_12(%arg0: i32) -> (i32, i32) {
    %c0_i32 = arith.constant 0 : i32
    %c0_i32_0 = arith.constant 0 : i32
    %c0_i32_1 = arith.constant 0 : i32
    return %c0_i32, %c0_i32_0 : i32, i32
  }
  func.func @transform_13(%arg0: i32) -> (i32, i32, i32) {
    %c0_i32 = arith.constant 0 : i32
    %c0_i32_0 = arith.constant 0 : i32
    %c0_i32_1 = arith.constant 0 : i32
    %c0_i32_2 = arith.constant 0 : i32
    return %c0_i32, %c0_i32_0, %c0_i32_1 : i32, i32, i32
  }
  func.func @transform_14(%arg0: i32) -> (i32, i32, i32) {
    %c0_i32 = arith.constant 0 : i32
    %c0_i32_0 = arith.constant 0 : i32
    %c0_i32_1 = arith.constant 0 : i32
    %c0_i32_2 = arith.constant 0 : i32
    return %c0_i32, %c0_i32_0, %c0_i32_1 : i32, i32, i32
  }
  func.func @transform_15(%arg0: i32) -> (i32, i32) {
    %c0_i32 = arith.constant 0 : i32
    %c0_i32_0 = arith.constant 0 : i32
    %c0_i32_1 = arith.constant 0 : i32
    return %c0_i32, %c0_i32_0 : i32, i32
  }
  func.func @transform_16(%arg0: i32) -> (i32, i32, i32) {
    %c0_i32 = arith.constant 0 : i32
    %c0_i32_0 = arith.constant 0 : i32
    %c0_i32_1 = arith.constant 0 : i32
    return %arg0, %c0_i32, %c0_i32_0 : i32, i32, i32
  }
}

</mosaic_0001>

<llo_original>
// kernel: autoencoder2d_forward.1
$region0: #{autoencoder2d_forward.1}
  #allocation0 [shape = 'u32[]', space=smem, size = 0x4, offset = 0x4, fixed_abs, tag = 'smem constant byte address 0x4 - core index']
  #allocation1 [shape = 'u32[144,128]{1,0:T(1,128)}', space=vmem, size = 0x12000, scoped, tag = 'internal scratch']
  %s0 = inlined_call_operand.vmem [shape: f32[2,28,28], index: 0, kind: input, shape index: {}]
  %s1 = inlined_call_operand.vmem [shape: f32[6,5,28], index: 1, kind: input, shape index: {}]
  %s2 = inlined_call_operand.vmem [shape: f32[6,28,80], index: 2, kind: input, shape index: {}]
  %s3 = inlined_call_operand.vmem [shape: f32[1,80], index: 3, kind: input, shape index: {}]
  %s4 = inlined_call_operand.vmem [shape: f32[6,2,5], index: 4, kind: input, shape index: {}]
  %s5 = inlined_call_operand.vmem [shape: f32[6,80,16], index: 5, kind: input, shape index: {}]
  %s6 = inlined_call_operand.vmem [shape: f32[1,16], index: 6, kind: input, shape index: {}]
  %s7 = inlined_call_operand.vmem [shape: f32[3,5,2], index: 7, kind: input, shape index: {}]
  %s8 = inlined_call_operand.vmem [shape: f32[3,16,80], index: 8, kind: input, shape index: {}]
  %s9 = inlined_call_operand.vmem [shape: f32[1,80], index: 9, kind: input, shape index: {}]
  %s10 = inlined_call_operand.vmem [shape: f32[5,15,5], index: 10, kind: input, shape index: {}]
  %s11 = inlined_call_operand.vmem [shape: f32[5,80,120], index: 11, kind: input, shape index: {}]
  %s12 = inlined_call_operand.vmem [shape: f32[1,120], index: 12, kind: input, shape index: {}]
  %s13 = inlined_call_operand.vmem [shape: f32[2,28,15], index: 13, kind: input, shape index: {}]
  %s14 = inlined_call_operand.vmem [shape: f32[2,120,28], index: 14, kind: input, shape index: {}]
  %s15 = inlined_call_operand.vmem [shape: f32[1,28], index: 15, kind: input, shape index: {}]
  %s16 = inlined_call_operand.vmem [shape: f32[2,28,28], index: 16, kind: output, shape index: {}]
  %s17 = sld [smem:[#allocation0]]
  $region97: #{autoencoder2d_forward.1} parent=0
    _
  %s19 = ssub.s32 1, %s17
  %s20 = scalar_select 0, %s19, %s17
  loop: start=0, step=1, limit=4
  $region2: #{autoencoder2d_forward.1} parent=0 // loop_pre_header
    _
  $region3: #{autoencoder2d_forward.1} parent=0 // loop_header
    %s22 = sphi 0, %s26
    %p23 = scmp.ge.s32.totalorder %s22, 4
    %s32 = sphi 0, %s34
    %s35 = sphi 0, %s32
    %s36 = sphi 0, %s35
    %s52 = sphi 0, %s36
    %s56 = sphi 0, %s56
    %s58 = sphi 0, %s56
    %s59 = sphi 0, %s58
    %s73 = sphi 0, %s59
    %s77 = sphi 0, %s77
    %s79 = sphi 0, %s77
    %s80 = sphi 0, %s79
    %s94 = sphi 0, %s80
    %s98 = sphi 0, %s98
    %s100 = sphi 0, %s98
    %s101 = sphi 0, %s100
    %s115 = sphi 0, %s101
    %s119 = sphi 0, %s119
    %s121 = sphi 0, %s119
    %s122 = sphi 0, %s121
    %s136 = sphi 0, %s122
    %s140 = sphi 0, %s140
    %s142 = sphi 0, %s140
    %s143 = sphi 0, %s142
    %s157 = sphi 0, %s143
    %s161 = sphi 0, %s161
    %s163 = sphi 0, %s161
    %s164 = sphi 0, %s163
    %s178 = sphi 0, %s164
    %s182 = sphi 0, %s182
    %s184 = sphi 0, %s182
    %s185 = sphi 0, %s184
    %s199 = sphi 0, %s185
    %s203 = sphi 0, %s203
    %s205 = sphi 0, %s203
    %s206 = sphi 0, %s205
    %s220 = sphi 0, %s206
    %s224 = sphi 0, %s224
    %s226 = sphi 0, %s224
    %s227 = sphi 0, %s226
    %s241 = sphi 0, %s227
    %s245 = sphi 0, %s245
    %s247 = sphi 0, %s245
    %s248 = sphi 0, %s247
    %s262 = sphi 0, %s248
    %s266 = sphi 0, %s266
    %s268 = sphi 0, %s266
    %s269 = sphi 0, %s268
    %s283 = sphi 0, %s269
    %s287 = sphi 0, %s287
    %s289 = sphi 0, %s287
    %s290 = sphi 0, %s289
    %s304 = sphi 0, %s290
    %s308 = sphi 0, %s308
    %s310 = sphi 0, %s308
    %s311 = sphi 0, %s310
    %s325 = sphi 0, %s311
    %s329 = sphi 0, %s329
    %s331 = sphi 0, %s329
    %s332 = sphi 0, %s331
    %s346 = sphi 0, %s332
    %s350 = sphi 0, %s350
    %s352 = sphi 0, %s350
    %s353 = sphi 0, %s352
    %s367 = sphi 0, %s353
    %s373 = sphi 0, %s375
    %s376 = sphi 0, %s373
    %s377 = sphi 0, %s376
    %s393 = sphi 0, %s377
  $region4: #{autoencoder2d_forward.1} parent=0 // loop_header_branch
    %25 = sbr.rel (%p23) target = $region8
  $region5: #{autoencoder2d_forward.1} parent=0 // loop_body
    %s27 = ssub.s32 %s22, 1
    %s28 = ssub.s32 %s22, 2
    %s29 = sadd.s32 %s22, 1
    %s30 = ssub.s32 %s22, %s29
    %p31 = scmp.eq.s32.totalorder %s30, 0
    %s33 = sadd.s32 %s32, 1
    %s34 = scalar_select %p31, %s32, %s33
    %p37 = pneg %p31
    %p38 = scmp.eq.s32.totalorder %s22, 1
    %p39 = por %p37, %p38
    %p40 = scmp.ne.s32.totalorder %s32, %s35
    %p41 = scmp.eq.s32.totalorder %s22, 0
    %p42 = por %p40, %p41
    %p43 = scmp.ne.s32.totalorder %s32, %s35
    %p44 = scmp.eq.s32.totalorder %s27, 1
    %p45 = por %p43, %p44
    %p46 = scmp.ne.s32.totalorder %s35, %s36
    %p47 = scmp.eq.s32.totalorder %s27, 0
    %p48 = por %p46, %p47
    %p49 = scmp.ne.s32.totalorder %s35, %s36
    %p50 = scmp.eq.s32.totalorder %s28, 1
    %p51 = por %p49, %p50
    %p53 = scmp.ne.s32.totalorder %s36, %s52
    %p54 = scmp.eq.s32.totalorder %s28, 0
    %p55 = por %p53, %p54
    %s57 = sadd.s32 %s56, 1
    %p60 = scmp.eq.s32.totalorder %s22, 1
    %p61 = scmp.ne.s32.totalorder %s56, %s58
    %p62 = scmp.eq.s32.totalorder %s22, 0
    %p63 = por %p61, %p62
    %p64 = scmp.ne.s32.totalorder %s56, %s58
    %p65 = scmp.eq.s32.totalorder %s27, 1
    %p66 = por %p64, %p65
    %p67 = scmp.ne.s32.totalorder %s58, %s59
    %p68 = scmp.eq.s32.totalorder %s27, 0
    %p69 = por %p67, %p68
    %p70 = scmp.ne.s32.totalorder %s58, %s59
    %p71 = scmp.eq.s32.totalorder %s28, 1
    %p72 = por %p70, %p71
    %p74 = scmp.ne.s32.totalorder %s59, %s73
    %p75 = scmp.eq.s32.totalorder %s28, 0
    %p76 = por %p74, %p75
    %s78 = sadd.s32 %s77, 1
    %p81 = scmp.eq.s32.totalorder %s22, 1
    %p82 = scmp.ne.s32.totalorder %s77, %s79
    %p83 = scmp.eq.s32.totalorder %s22, 0
    %p84 = por %p82, %p83
    %p85 = scmp.ne.s32.totalorder %s77, %s79
    %p86 = scmp.eq.s32.totalorder %s27, 1
    %p87 = por %p85, %p86
    %p88 = scmp.ne.s32.totalorder %s79, %s80
    %p89 = scmp.eq.s32.totalorder %s27, 0
    %p90 = por %p88, %p89
    %p91 = scmp.ne.s32.totalorder %s79, %s80
    %p92 = scmp.eq.s32.totalorder %s28, 1
    %p93 = por %p91, %p92
    %p95 = scmp.ne.s32.totalorder %s80, %s94
    %p96 = scmp.eq.s32.totalorder %s28, 0
    %p97 = por %p95, %p96
    %s99 = sadd.s32 %s98, 1
    %p102 = scmp.eq.s32.totalorder %s22, 1
    %p103 = scmp.ne.s32.totalorder %s98, %s100
    %p104 = scmp.eq.s32.totalorder %s22, 0
    %p105 = por %p103, %p104
    %p106 = scmp.ne.s32.totalorder %s98, %s100
    %p107 = scmp.eq.s32.totalorder %s27, 1
    %p108 = por %p106, %p107
    %p109 = scmp.ne.s32.totalorder %s100, %s101
    %p110 = scmp.eq.s32.totalorder %s27, 0
    %p111 = por %p109, %p110
    %p112 = scmp.ne.s32.totalorder %s100, %s101
    %p113 = scmp.eq.s32.totalorder %s28, 1
    %p114 = por %p112, %p113
    %p116 = scmp.ne.s32.totalorder %s101, %s115
    %p117 = scmp.eq.s32.totalorder %s28, 0
    %p118 = por %p116, %p117
    %s120 = sadd.s32 %s119, 1
    %p123 = scmp.eq.s32.totalorder %s22, 1
    %p124 = scmp.ne.s32.totalorder %s119, %s121
    %p125 = scmp.eq.s32.totalorder %s22, 0
    %p126 = por %p124, %p125
    %p127 = scmp.ne.s32.totalorder %s119, %s121
    %p128 = scmp.eq.s32.totalorder %s27, 1
    %p129 = por %p127, %p128
    %p130 = scmp.ne.s32.totalorder %s121, %s122
    %p131 = scmp.eq.s32.totalorder %s27, 0
    %p132 = por %p130, %p131
    %p133 = scmp.ne.s32.totalorder %s121, %s122
    %p134 = scmp.eq.s32.totalorder %s28, 1
    %p135 = por %p133, %p134
    %p137 = scmp.ne.s32.totalorder %s122, %s136
    %p138 = scmp.eq.s32.totalorder %s28, 0
    %p139 = por %p137, %p138
    %s141 = sadd.s32 %s140, 1
    %p144 = scmp.eq.s32.totalorder %s22, 1
    %p145 = scmp.ne.s32.totalorder %s140, %s142
    %p146 = scmp.eq.s32.totalorder %s22, 0
    %p147 = por %p145, %p146
    %p148 = scmp.ne.s32.totalorder %s140, %s142
    %p149 = scmp.eq.s32.totalorder %s27, 1
    %p150 = por %p148, %p149
    %p151 = scmp.ne.s32.totalorder %s142, %s143
    %p152 = scmp.eq.s32.totalorder %s27, 0
    %p153 = por %p151, %p152
    %p154 = scmp.ne.s32.totalorder %s142, %s143
    %p155 = scmp.eq.s32.totalorder %s28, 1
    %p156 = por %p154, %p155
    %p158 = scmp.ne.s32.totalorder %s143, %s157
    %p159 = scmp.eq.s32.totalorder %s28, 0
    %p160 = por %p158, %p159
    %s162 = sadd.s32 %s161, 1
    %p165 = scmp.eq.s32.totalorder %s22, 1
    %p166 = scmp.ne.s32.totalorder %s161, %s163
    %p167 = scmp.eq.s32.totalorder %s22, 0
    %p168 = por %p166, %p167
    %p169 = scmp.ne.s32.totalorder %s161, %s163
    %p170 = scmp.eq.s32.totalorder %s27, 1
    %p171 = por %p169, %p170
    %p172 = scmp.ne.s32.totalorder %s163, %s164
    %p173 = scmp.eq.s32.totalorder %s27, 0
    %p174 = por %p172, %p173
    %p175 = scmp.ne.s32.totalorder %s163, %s164
    %p176 = scmp.eq.s32.totalorder %s28, 1
    %p177 = por %p175, %p176
    %p179 = scmp.ne.s32.totalorder %s164, %s178
    %p180 = scmp.eq.s32.totalorder %s28, 0
    %p181 = por %p179, %p180
    %s183 = sadd.s32 %s182, 1
    %p186 = scmp.eq.s32.totalorder %s22, 1
    %p187 = scmp.ne.s32.totalorder %s182, %s184
    %p188 = scmp.eq.s32.totalorder %s22, 0
    %p189 = por %p187, %p188
    %p190 = scmp.ne.s32.totalorder %s182, %s184
    %p191 = scmp.eq.s32.totalorder %s27, 1
    %p192 = por %p190, %p191
    %p193 = scmp.ne.s32.totalorder %s184, %s185
    %p194 = scmp.eq.s32.totalorder %s27, 0
    %p195 = por %p193, %p194
    %p196 = scmp.ne.s32.totalorder %s184, %s185
    %p197 = scmp.eq.s32.totalorder %s28, 1
    %p198 = por %p196, %p197
    %p200 = scmp.ne.s32.totalorder %s185, %s199
    %p201 = scmp.eq.s32.totalorder %s28, 0
    %p202 = por %p200, %p201
    %s204 = sadd.s32 %s203, 1
    %p207 = scmp.eq.s32.totalorder %s22, 1
    %p208 = scmp.ne.s32.totalorder %s203, %s205
    %p209 = scmp.eq.s32.totalorder %s22, 0
    %p210 = por %p208, %p209
    %p211 = scmp.ne.s32.totalorder %s203, %s205
    %p212 = scmp.eq.s32.totalorder %s27, 1
    %p213 = por %p211, %p212
    %p214 = scmp.ne.s32.totalorder %s205, %s206
    %p215 = scmp.eq.s32.totalorder %s27, 0
    %p216 = por %p214, %p215
    %p217 = scmp.ne.s32.totalorder %s205, %s206
    %p218 = scmp.eq.s32.totalorder %s28, 1
    %p219 = por %p217, %p218
    %p221 = scmp.ne.s32.totalorder %s206, %s220
    %p222 = scmp.eq.s32.totalorder %s28, 0
    %p223 = por %p221, %p222
    %s225 = sadd.s32 %s224, 1
    %p228 = scmp.eq.s32.totalorder %s22, 1
    %p229 = scmp.ne.s32.totalorder %s224, %s226
    %p230 = scmp.eq.s32.totalorder %s22, 0
    %p231 = por %p229, %p230
    %p232 = scmp.ne.s32.totalorder %s224, %s226
    %p233 = scmp.eq.s32.totalorder %s27, 1
    %p234 = por %p232, %p233
    %p235 = scmp.ne.s32.totalorder %s226, %s227
    %p236 = scmp.eq.s32.totalorder %s27, 0
    %p237 = por %p235, %p236
    %p238 = scmp.ne.s32.totalorder %s226, %s227
    %p239 = scmp.eq.s32.totalorder %s28, 1
    %p240 = por %p238, %p239
    %p242 = scmp.ne.s32.totalorder %s227, %s241
    %p243 = scmp.eq.s32.totalorder %s28, 0
    %p244 = por %p242, %p243
    %s246 = sadd.s32 %s245, 1
    %p249 = scmp.eq.s32.totalorder %s22, 1
    %p250 = scmp.ne.s32.totalorder %s245, %s247
    %p251 = scmp.eq.s32.totalorder %s22, 0
    %p252 = por %p250, %p251
    %p253 = scmp.ne.s32.totalorder %s245, %s247
    %p254 = scmp.eq.s32.totalorder %s27, 1
    %p255 = por %p253, %p254
    %p256 = scmp.ne.s32.totalorder %s247, %s248
    %p257 = scmp.eq.s32.totalorder %s27, 0
    %p258 = por %p256, %p257
    %p259 = scmp.ne.s32.totalorder %s247, %s248
    %p260 = scmp.eq.s32.totalorder %s28, 1
    %p261 = por %p259, %p260
    %p263 = scmp.ne.s32.totalorder %s248, %s262
    %p264 = scmp.eq.s32.totalorder %s28, 0
    %p265 = por %p263, %p264
    %s267 = sadd.s32 %s266, 1
    %p270 = scmp.eq.s32.totalorder %s22, 1
    %p271 = scmp.ne.s32.totalorder %s266, %s268
    %p272 = scmp.eq.s32.totalorder %s22, 0
    %p273 = por %p271, %p272
    %p274 = scmp.ne.s32.totalorder %s266, %s268
    %p275 = scmp.eq.s32.totalorder %s27, 1
    %p276 = por %p274, %p275
    %p277 = scmp.ne.s32.totalorder %s268, %s269
    %p278 = scmp.eq.s32.totalorder %s27, 0
    %p279 = por %p277, %p278
    %p280 = scmp.ne.s32.totalorder %s268, %s269
    %p281 = scmp.eq.s32.totalorder %s28, 1
    %p282 = por %p280, %p281
    %p284 = scmp.ne.s32.totalorder %s269, %s283
    %p285 = scmp.eq.s32.totalorder %s28, 0
    %p286 = por %p284, %p285
    %s288 = sadd.s32 %s287, 1
    %p291 = scmp.eq.s32.totalorder %s22, 1
    %p292 = scmp.ne.s32.totalorder %s287, %s289
    %p293 = scmp.eq.s32.totalorder %s22, 0
    %p294 = por %p292, %p293
    %p295 = scmp.ne.s32.totalorder %s287, %s289
    %p296 = scmp.eq.s32.totalorder %s27, 1
    %p297 = por %p295, %p296
    %p298 = scmp.ne.s32.totalorder %s289, %s290
    %p299 = scmp.eq.s32.totalorder %s27, 0
    %p300 = por %p298, %p299
    %p301 = scmp.ne.s32.totalorder %s289, %s290
    %p302 = scmp.eq.s32.totalorder %s28, 1
    %p303 = por %p301, %p302
    %p305 = scmp.ne.s32.totalorder %s290, %s304
    %p306 = scmp.eq.s32.totalorder %s28, 0
    %p307 = por %p305, %p306
    %s309 = sadd.s32 %s308, 1
    %p312 = scmp.eq.s32.totalorder %s22, 1
    %p313 = scmp.ne.s32.totalorder %s308, %s310
    %p314 = scmp.eq.s32.totalorder %s22, 0
    %p315 = por %p313, %p314
    %p316 = scmp.ne.s32.totalorder %s308, %s310
    %p317 = scmp.eq.s32.totalorder %s27, 1
    %p318 = por %p316, %p317
    %p319 = scmp.ne.s32.totalorder %s310, %s311
    %p320 = scmp.eq.s32.totalorder %s27, 0
    %p321 = por %p319, %p320
    %p322 = scmp.ne.s32.totalorder %s310, %s311
    %p323 = scmp.eq.s32.totalorder %s28, 1
    %p324 = por %p322, %p323
    %p326 = scmp.ne.s32.totalorder %s311, %s325
    %p327 = scmp.eq.s32.totalorder %s28, 0
    %p328 = por %p326, %p327
    %s330 = sadd.s32 %s329, 1
    %p333 = scmp.eq.s32.totalorder %s22, 1
    %p334 = scmp.ne.s32.totalorder %s329, %s331
    %p335 = scmp.eq.s32.totalorder %s22, 0
    %p336 = por %p334, %p335
    %p337 = scmp.ne.s32.totalorder %s329, %s331
    %p338 = scmp.eq.s32.totalorder %s27, 1
    %p339 = por %p337, %p338
    %p340 = scmp.ne.s32.totalorder %s331, %s332
    %p341 = scmp.eq.s32.totalorder %s27, 0
    %p342 = por %p340, %p341
    %p343 = scmp.ne.s32.totalorder %s331, %s332
    %p344 = scmp.eq.s32.totalorder %s28, 1
    %p345 = por %p343, %p344
    %p347 = scmp.ne.s32.totalorder %s332, %s346
    %p348 = scmp.eq.s32.totalorder %s28, 0
    %p349 = por %p347, %p348
    %s351 = sadd.s32 %s350, 1
    %p354 = scmp.eq.s32.totalorder %s22, 1
    %p355 = scmp.ne.s32.totalorder %s350, %s352
    %p356 = scmp.eq.s32.totalorder %s22, 0
    %p357 = por %p355, %p356
    %p358 = scmp.ne.s32.totalorder %s350, %s352
    %p359 = scmp.eq.s32.totalorder %s27, 1
    %p360 = por %p358, %p359
    %p361 = scmp.ne.s32.totalorder %s352, %s353
    %p362 = scmp.eq.s32.totalorder %s27, 0
    %p363 = por %p361, %p362
    %p364 = scmp.ne.s32.totalorder %s352, %s353
    %p365 = scmp.eq.s32.totalorder %s28, 1
    %p366 = por %p364, %p365
    %p368 = scmp.ne.s32.totalorder %s353, %s367
    %p369 = scmp.eq.s32.totalorder %s28, 0
    %p370 = por %p368, %p369
    %s371 = ssub.s32 %s22, %s29
    %p372 = scmp.eq.s32.totalorder %s371, 0
    %s374 = sadd.s32 %s373, 1
    %s375 = scalar_select %p372, %s373, %s374
    %p378 = pneg %p372
    %p379 = scmp.eq.s32.totalorder %s22, 1
    %p380 = por %p378, %p379
    %p381 = scmp.ne.s32.totalorder %s373, %s376
    %p382 = scmp.eq.s32.totalorder %s22, 0
    %p383 = por %p381, %p382
    %p384 = scmp.ne.s32.totalorder %s373, %s376
    %p385 = scmp.eq.s32.totalorder %s27, 1
    %p386 = por %p384, %p385
    %p387 = scmp.ne.s32.totalorder %s376, %s377
    %p388 = scmp.eq.s32.totalorder %s27, 0
    %p389 = por %p387, %p388
    %p390 = scmp.ne.s32.totalorder %s376, %s377
    %p391 = scmp.eq.s32.totalorder %s28, 1
    %p392 = por %p390, %p391
    %p394 = scmp.ne.s32.totalorder %s377, %s393
    %p395 = scmp.eq.s32.totalorder %s28, 0
    %p396 = por %p394, %p395
    %p397 = scmp.le.s32.totalorder 1, %s22
    %p398 = scmp.lt.s32.totalorder %s22, 3
    %p399 = pnand %p397, %p398
    %p400 = pneg %p399
    // Predicated region
    $region9: #{autoencoder2d_forward.1} parent=5 // pred_check
      _
    $region10: #{autoencoder2d_forward.1} parent=5 // pred_check_branch
      %402 = sbr.rel (%p399) target = $region12
    $region11: #{autoencoder2d_forward.1} parent=5 // pred_region
      %s403 = ssub.s32 %s22, 1
      // Predicated region
      $region13: #{autoencoder2d_forward.1} parent=11 // pred_check
        %p404 = pneg %p69
      $region14: #{autoencoder2d_forward.1} parent=11 // pred_check_branch
        %406 = sbr.rel (%p404) target = $region16
      $region15: #{autoencoder2d_forward.1} parent=11 // pred_region
        _
      $region16: #{autoencoder2d_forward.1} parent=11 // pred_fallthru
        _
      // Predicated region
      $region17: #{autoencoder2d_forward.1} parent=11 // pred_check
        %p407 = pneg %p90
      $region18: #{autoencoder2d_forward.1} parent=11 // pred_check_branch
        %409 = sbr.rel (%p407) target = $region20
      $region19: #{autoencoder2d_forward.1} parent=11 // pred_region
        _
      $region20: #{autoencoder2d_forward.1} parent=11 // pred_fallthru
        _
      // Predicated region
      $region21: #{autoencoder2d_forward.1} parent=11 // pred_check
        %p410 = pneg %p111
      $region22: #{autoencoder2d_forward.1} parent=11 // pred_check_branch
        %412 = sbr.rel (%p410) target = $region24
      $region23: #{autoencoder2d_forward.1} parent=11 // pred_region
        _
      $region24: #{autoencoder2d_forward.1} parent=11 // pred_fallthru
        _
      // Predicated region
      $region25: #{autoencoder2d_forward.1} parent=11 // pred_check
        %p413 = pneg %p132
      $region26: #{autoencoder2d_forward.1} parent=11 // pred_check_branch
        %415 = sbr.rel (%p413) target = $region28
      $region27: #{autoencoder2d_forward.1} parent=11 // pred_region
        _
      $region28: #{autoencoder2d_forward.1} parent=11 // pred_fallthru
        _
      // Predicated region
      $region29: #{autoencoder2d_forward.1} parent=11 // pred_check
        %p416 = pneg %p153
      $region30: #{autoencoder2d_forward.1} parent=11 // pred_check_branch
        %418 = sbr.rel (%p416) target = $region32
      $region31: #{autoencoder2d_forward.1} parent=11 // pred_region
        _
      $region32: #{autoencoder2d_forward.1} parent=11 // pred_fallthru
        _
      // Predicated region
      $region33: #{autoencoder2d_forward.1} parent=11 // pred_check
        %p419 = pneg %p174
      $region34: #{autoencoder2d_forward.1} parent=11 // pred_check_branch
        %421 = sbr.rel (%p419) target = $region36
      $region35: #{autoencoder2d_forward.1} parent=11 // pred_region
        _
      $region36: #{autoencoder2d_forward.1} parent=11 // pred_fallthru
        _
      // Predicated region
      $region37: #{autoencoder2d_forward.1} parent=11 // pred_check
        %p422 = pneg %p195
      $region38: #{autoencoder2d_forward.1} parent=11 // pred_check_branch
        %424 = sbr.rel (%p422) target = $region40
      $region39: #{autoencoder2d_forward.1} parent=11 // pred_region
        _
      $region40: #{autoencoder2d_forward.1} parent=11 // pred_fallthru
        _
      // Predicated region
      $region41: #{autoencoder2d_forward.1} parent=11 // pred_check
        %p425 = pneg %p216
      $region42: #{autoencoder2d_forward.1} parent=11 // pred_check_branch
        %427 = sbr.rel (%p425) target = $region44
      $region43: #{autoencoder2d_forward.1} parent=11 // pred_region
        _
      $region44: #{autoencoder2d_forward.1} parent=11 // pred_fallthru
        _
      // Predicated region
      $region45: #{autoencoder2d_forward.1} parent=11 // pred_check
        %p428 = pneg %p237
      $region46: #{autoencoder2d_forward.1} parent=11 // pred_check_branch
        %430 = sbr.rel (%p428) target = $region48
      $region47: #{autoencoder2d_forward.1} parent=11 // pred_region
        _
      $region48: #{autoencoder2d_forward.1} parent=11 // pred_fallthru
        _
      // Predicated region
      $region49: #{autoencoder2d_forward.1} parent=11 // pred_check
        %p431 = pneg %p258
      $region50: #{autoencoder2d_forward.1} parent=11 // pred_check_branch
        %433 = sbr.rel (%p431) target = $region52
      $region51: #{autoencoder2d_forward.1} parent=11 // pred_region
        _
      $region52: #{autoencoder2d_forward.1} parent=11 // pred_fallthru
        _
      // Predicated region
      $region53: #{autoencoder2d_forward.1} parent=11 // pred_check
        %p434 = pneg %p279
      $region54: #{autoencoder2d_forward.1} parent=11 // pred_check_branch
        %436 = sbr.rel (%p434) target = $region56
      $region55: #{autoencoder2d_forward.1} parent=11 // pred_region
        _
      $region56: #{autoencoder2d_forward.1} parent=11 // pred_fallthru
        _
      // Predicated region
      $region57: #{autoencoder2d_forward.1} parent=11 // pred_check
        %p437 = pneg %p300
      $region58: #{autoencoder2d_forward.1} parent=11 // pred_check_branch
        %439 = sbr.rel (%p437) target = $region60
      $region59: #{autoencoder2d_forward.1} parent=11 // pred_region
        _
      $region60: #{autoencoder2d_forward.1} parent=11 // pred_fallthru
        _
      // Predicated region
      $region61: #{autoencoder2d_forward.1} parent=11 // pred_check
        %p440 = pneg %p321
      $region62: #{autoencoder2d_forward.1} parent=11 // pred_check_branch
        %442 = sbr.rel (%p440) target = $region64
      $region63: #{autoencoder2d_forward.1} parent=11 // pred_region
        _
      $region64: #{autoencoder2d_forward.1} parent=11 // pred_fallthru
        _
      // Predicated region
      $region65: #{autoencoder2d_forward.1} parent=11 // pred_check
        %p443 = pneg %p342
      $region66: #{autoencoder2d_forward.1} parent=11 // pred_check_branch
        %445 = sbr.rel (%p443) target = $region68
      $region67: #{autoencoder2d_forward.1} parent=11 // pred_region
        _
      $region68: #{autoencoder2d_forward.1} parent=11 // pred_fallthru
        _
      // Predicated region
      $region69: #{autoencoder2d_forward.1} parent=11 // pred_check
        %p446 = pneg %p363
      $region70: #{autoencoder2d_forward.1} parent=11 // pred_check_branch
        %448 = sbr.rel (%p446) target = $region72
      $region71: #{autoencoder2d_forward.1} parent=11 // pred_region
        _
      $region72: #{autoencoder2d_forward.1} parent=11 // pred_fallthru
        _
    $region12: #{autoencoder2d_forward.1} parent=5 // pred_fallthru
      _
    %p449 = scmp.lt.s32.totalorder %s22, 2
    // Predicated region
    $region73: #{autoencoder2d_forward.1} parent=5 // pred_check
      %p450 = pneg %p449
    $region74: #{autoencoder2d_forward.1} parent=5 // pred_check_branch
      %452 = sbr.rel (%p450) target = $region76
    $region75: #{autoencoder2d_forward.1} parent=5 // pred_region
      // Predicated region
      $region77: #{autoencoder2d_forward.1} parent=75 // pred_check
        %p453 = pneg %p42
      $region78: #{autoencoder2d_forward.1} parent=75 // pred_check_branch
        %455 = sbr.rel (%p453) target = $region80
      $region79: #{autoencoder2d_forward.1} parent=75 // pred_region
        %p456 = scmp.lt.s32.totalorder %s22, 1
        %s457 = scalar_select %p456, %s22, 1
        %s458 = smul.addr %s457, 4
        %s459 = smul.addr %s458, 8
        %s460 = scalar_lea.vmem %s0, %s459
      $region80: #{autoencoder2d_forward.1} parent=75 // pred_fallthru
        _
    $region76: #{autoencoder2d_forward.1} parent=5 // pred_fallthru
      _
    %p461 = scmp.le.s32.totalorder 1, %s22
    %p462 = scmp.lt.s32.totalorder %s22, 3
    %p463 = pnand %p461, %p462
    %p464 = pneg %p463
    // Predicated region
    $region81: #{autoencoder2d_forward.1} parent=5 // pred_check
      _
    $region82: #{autoencoder2d_forward.1} parent=5 // pred_check_branch
      %466 = sbr.rel (%p463) target = $region84
    $region83: #{autoencoder2d_forward.1} parent=5 // pred_region
      %s467 = ssub.s32 %s22, 1
      %p468 = scmp.lt.s32.totalorder %s27, 1
      %s469 = scalar_select %p468, %s27, 1
      %s470 = smul.addr %s469, 4
      %s471 = smul.addr %s470, 8
      %s472 = scalar_lea.vmem %s0, %s471
      %p473 = pneg %p48
      %p474 = pneg %p45
      %p475 = pneg %p69
      %p476 = pneg %p66
      %p477 = pneg %p90
      %p478 = pneg %p87
      %p479 = pneg %p111
      %p480 = pneg %p108
      %p481 = pneg %p132
      %p482 = pneg %p129
      %p483 = pneg %p153
      %p484 = pneg %p150
      %p485 = pneg %p174
      %p486 = pneg %p171
      %p487 = pneg %p195
      %p488 = pneg %p192
      %p489 = pneg %p216
      %p490 = pneg %p213
      %p491 = pneg %p237
      %p492 = pneg %p234
      %p493 = pneg %p258
      %p494 = pneg %p255
      %p495 = pneg %p279
      %p496 = pneg %p276
      %p497 = pneg %p300
      %p498 = pneg %p297
      %p499 = pneg %p321
      %p500 = pneg %p318
      %p501 = pneg %p342
      %p502 = pneg %p339
      %p503 = pneg %p363
      %p504 = pneg %p360
      %p505 = pneg %p389
      %p506 = pneg %p386
      %p507 = scmp.lt.s32.totalorder %s27, 1
      %s508 = scalar_select %p507, %s27, 1
      %s509 = smul.addr %s508, 4
      %s510 = smul.addr %s509, 8
      %s511 = scalar_lea.vmem %s16, %s510
      %p512 = scmp.lt.s32.totalorder %s27, 1
      %s513 = scalar_select %p512, %s27, 1
      %s514 = smul.addr %s513, 4
      %s515 = smul.addr %s514, 8
      %s516 = scalar_lea.vmem %s0, %s515
      %p517 = scmp.lt.s32.totalorder %s27, 1
      %s518 = scalar_select %p517, %s27, 1
      %s519 = smul.addr %s518, 4
      %s520 = smul.addr %s519, 8
      %s521 = scalar_lea.vmem %s16, %s520
      %v522 = vld [vmem:[%s516] sm:$0xff]
      %v523 = vld [vmem:[%s516 + $0x8] sm:$0xff]
      %v524 = vld [vmem:[%s516 + $0x10] sm:$0xff]
      %v525 = vld [vmem:[%s516 + $0x18] sm:$0xf]
      %v526 = vld [vmem:[%s1] sm:$0x1f]
      %vm527 = vcmask 228352
      %v529 = vsel %vm527, %v526, 0
      %vm531 = vcmask 1043456
      %v533 = vsel %vm531, %v525, 0
      %535 = vmatprep.subr.mxu0 0.0
      %536 = vmatpush1.msra.mxu0 0.0
      %537 = vmatprep.subr.mxu0 0.0
      %538 = vmatpush1.msra.mxu0 0.0
      %539 = vmatprep.subr.mxu0 0.0
      %540 = vmatpush1.msra.mxu0 0.0
      %541 = vmatprep.subr.mxu0 0.0
      %542 = vmatpush1.msra.mxu0 0.0
      %543 = vmatprep.subr.mxu0 0.0
      %544 = vmatpush1.msra.mxu0 0.0
      %545 = vmatprep.subr.mxu0 0.0
      %546 = vmatpush1.msra.mxu0 0.0
      %547 = vmatprep.subr.mxu0 0.0
      %548 = vmatpush1.msra.mxu0 0.0
      %549 = vmatprep.subr.mxu0 0.0
      %550 = vmatpush1.msra.mxu0 0.0
      %551 = vmatprep.subr.mxu0 0.0
      %552 = vmatpush1.msra.mxu0 0.0
      %553 = vmatprep.subr.mxu0 0.0
      %554 = vmatpush1.msra.mxu0 0.0
      %555 = vmatprep.subr.mxu0 0.0
      %556 = vmatpush1.msra.mxu0 0.0
      %557 = vmatprep.subr.mxu0 0.0
      %558 = vmatpush1.msra.mxu0 0.0
      %559 = vmatprep.subr.mxu0 0.0
      %560 = vmatpush1.msra.mxu0 %v533
      %561 = vmatprep.subr.mxu0 0.0
      %562 = vmatpush1.msra.mxu0 %v524
      %563 = vmatprep.subr.mxu0 0.0
      %564 = vmatpush1.msra.mxu0 %v523
      %565 = vmatprep.subr.mxu0 0.0
      %566 = vmatpush1.msra.mxu0 %v522
      %567 = vmatprep.subr.mxu0 0.0
      %568 = vmatpush2.msra.mxu0 0.0
      %569 = vmatprep.subr.mxu0 0.0
      %570 = vmatpush2.msra.mxu0 0.0
      %571 = vmatprep.subr.mxu0 0.0
      %572 = vmatpush2.msra.mxu0 0.0
      %573 = vmatprep.subr.mxu0 0.0
      %574 = vmatpush2.msra.mxu0 0.0
      %575 = vmatprep.subr.mxu0 0.0
      %576 = vmatpush2.msra.mxu0 0.0
      %577 = vmatprep.subr.mxu0 0.0
      %578 = vmatpush2.msra.mxu0 0.0
      %579 = vmatprep.subr.mxu0 0.0
      %580 = vmatpush2.msra.mxu0 0.0
      %581 = vmatprep.subr.mxu0 0.0
      %582 = vmatpush2.msra.mxu0 0.0
      %583 = vmatprep.subr.mxu0 0.0
      %584 = vmatpush2.msra.mxu0 0.0
      %585 = vmatprep.subr.mxu0 0.0
      %586 = vmatpush2.msra.mxu0 0.0
      %587 = vmatprep.subr.mxu0 0.0
      %588 = vmatpush2.msra.mxu0 0.0
      %589 = vmatprep.subr.mxu0 0.0
      %590 = vmatpush2.msra.mxu0 0.0
      %591 = vmatprep.subr.mxu0 0.0
      %592 = vmatpush2.msra.mxu0 0.0
      %593 = vmatprep.subr.mxu0 0.0
      %594 = vmatpush2.msra.mxu0 0.0
      %595 = vmatprep.subr.mxu0 0.0
      %596 = vmatpush2.msra.mxu0 0.0
      %597 = vmatprep.subr.mxu0 0.0
      %598 = vmatpush2.msra.mxu0 0.0
      %599 = vmatprep.mubr.f32.mxu0 0.0
      %600 = vmatmul.mubr.f32.gmra.mxu0 %v529
      %v601 = vpop.f32.mrf.mxu0
      %v602 = vadd.f32 0.0, %v601
      %v603 = vpop.f32.mrf.mxu0
      %604 = vdwg.mxu0
      %s605 = scalar_lea.vmem %s1, 8
      %v606 = vld [vmem:[%s605] sm:$0x1f]
      %v608 = vsel %vm527, %v606, 0
      %610 = vmatprep.subr.mxu0 0.0
      %611 = vmatpush1.msra.mxu0 0.0
      %612 = vmatprep.subr.mxu0 0.0
      %613 = vmatpush1.msra.mxu0 0.0
      %614 = vmatprep.subr.mxu0 0.0
      %615 = vmatpush1.msra.mxu0 0.0
      %616 = vmatprep.subr.mxu0 0.0
      %617 = vmatpush1.msra.mxu0 0.0
      %618 = vmatprep.subr.mxu0 0.0
      %619 = vmatpush1.msra.mxu0 0.0
      %620 = vmatprep.subr.mxu0 0.0
      %621 = vmatpush1.msra.mxu0 0.0
      %622 = vmatprep.subr.mxu0 0.0
      %623 = vmatpush1.msra.mxu0 0.0
      %624 = vmatprep.subr.mxu0 0.0
      %625 = vmatpush1.msra.mxu0 0.0
      %626 = vmatprep.subr.mxu0 0.0
      %627 = vmatpush1.msra.mxu0 0.0
      %628 = vmatprep.subr.mxu0 0.0
      %629 = vmatpush1.msra.mxu0 0.0
      %630 = vmatprep.subr.mxu0 0.0
      %631 = vmatpush1.msra.mxu0 0.0
      %632 = vmatprep.subr.mxu0 0.0
      %633 = vmatpush1.msra.mxu0 0.0
      %634 = vmatprep.subr.mxu0 0.0
      %635 = vmatpush1.msra.mxu0 %v533
      %636 = vmatprep.subr.mxu0 0.0
      %637 = vmatpush1.msra.mxu0 %v524
      %638 = vmatprep.subr.mxu0 0.0
      %639 = vmatpush1.msra.mxu0 %v523
      %640 = vmatprep.subr.mxu0 0.0
      %641 = vmatpush1.msra.mxu0 %v522
      %642 = vmatprep.subr.mxu0 0.0
      %643 = vmatpush2.msra.mxu0 0.0
      %644 = vmatprep.subr.mxu0 0.0
      %645 = vmatpush2.msra.mxu0 0.0
      %646 = vmatprep.subr.mxu0 0.0
      %647 = vmatpush2.msra.mxu0 0.0
      %648 = vmatprep.subr.mxu0 0.0
      %649 = vmatpush2.msra.mxu0 0.0
      %650 = vmatprep.subr.mxu0 0.0
      %651 = vmatpush2.msra.mxu0 0.0
      %652 = vmatprep.subr.mxu0 0.0
      %653 = vmatpush2.msra.mxu0 0.0
      %654 = vmatprep.subr.mxu0 0.0
      %655 = vmatpush2.msra.mxu0 0.0
      %656 = vmatprep.subr.mxu0 0.0
      %657 = vmatpush2.msra.mxu0 0.0
      %658 = vmatprep.subr.mxu0 0.0
      %659 = vmatpush2.msra.mxu0 0.0
      %660 = vmatprep.subr.mxu0 0.0
      %661 = vmatpush2.msra.mxu0 0.0
      %662 = vmatprep.subr.mxu0 0.0
      %663 = vmatpush2.msra.mxu0 0.0
      %664 = vmatprep.subr.mxu0 0.0
      %665 = vmatpush2.msra.mxu0 0.0
      %666 = vmatprep.subr.mxu0 0.0
      %667 = vmatpush2.msra.mxu0 0.0
      %668 = vmatprep.subr.mxu0 0.0
      %669 = vmatpush2.msra.mxu0 0.0
      %670 = vmatprep.subr.mxu0 0.0
      %671 = vmatpush2.msra.mxu0 0.0
      %672 = vmatprep.subr.mxu0 0.0
      %673 = vmatpush2.msra.mxu0 0.0
      %674 = vmatprep.mubr.f32.mxu0 0.0
      %675 = vmatmul.mubr.f32.gmra.mxu0 %v608
      %v676 = vpop.f32.mrf.mxu0
      %v677 = vadd.f32 0.0, %v676
      %v678 = vpop.f32.mrf.mxu0
      %679 = vdwg.mxu0
      %s680 = scalar_lea.vmem %s1, 16
      %v681 = vld [vmem:[%s680] sm:$0x1f]
      %v683 = vsel %vm527, %v681, 0
      %685 = vmatprep.subr.mxu0 0.0
      %686 = vmatpush1.msra.mxu0 0.0
      %687 = vmatprep.subr.mxu0 0.0
      %688 = vmatpush1.msra.mxu0 0.0
      %689 = vmatprep.subr.mxu0 0.0
      %690 = vmatpush1.msra.mxu0 0.0
      %691 = vmatprep.subr.mxu0 0.0
      %692 = vmatpush1.msra.mxu0 0.0
      %693 = vmatprep.subr.mxu0 0.0
      %694 = vmatpush1.msra.mxu0 0.0
      %695 = vmatprep.subr.mxu0 0.0
      %696 = vmatpush1.msra.mxu0 0.0
      %697 = vmatprep.subr.mxu0 0.0
      %698 = vmatpush1.msra.mxu0 0.0
      %699 = vmatprep.subr.mxu0 0.0
      %700 = vmatpush1.msra.mxu0 0.0
      %701 = vmatprep.subr.mxu0 0.0
      %702 = vmatpush1.msra.mxu0 0.0
      %703 = vmatprep.subr.mxu0 0.0
      %704 = vmatpush1.msra.mxu0 0.0
      %705 = vmatprep.subr.mxu0 0.0
      %706 = vmatpush1.msra.mxu0 0.0
      %707 = vmatprep.subr.mxu0 0.0
      %708 = vmatpush1.msra.mxu0 0.0
      %709 = vmatprep.subr.mxu0 0.0
      %710 = vmatpush1.msra.mxu0 %v533
      %711 = vmatprep.subr.mxu0 0.0
      %712 = vmatpush1.msra.mxu0 %v524
      %713 = vmatprep.subr.mxu0 0.0
      %714 = vmatpush1.msra.mxu0 %v523
      %715 = vmatprep.subr.mxu0 0.0
      %716 = vmatpush1.msra.mxu0 %v522
      %717 = vmatprep.subr.mxu0 0.0
      %718 = vmatpush2.msra.mxu0 0.0
      %719 = vmatprep.subr.mxu0 0.0
      %720 = vmatpush2.msra.mxu0 0.0
      %721 = vmatprep.subr.mxu0 0.0
      %722 = vmatpush2.msra.mxu0 0.0
      %723 = vmatprep.subr.mxu0 0.0
      %724 = vmatpush2.msra.mxu0 0.0
      %725 = vmatprep.subr.mxu0 0.0
      %726 = vmatpush2.msra.mxu0 0.0
      %727 = vmatprep.subr.mxu0 0.0
      %728 = vmatpush2.msra.mxu0 0.0
      %729 = vmatprep.subr.mxu0 0.0
      %730 = vmatpush2.msra.mxu0 0.0
      %731 = vmatprep.subr.mxu0 0.0
      %732 = vmatpush2.msra.mxu0 0.0
      %733 = vmatprep.subr.mxu0 0.0
      %734 = vmatpush2.msra.mxu0 0.0
      %735 = vmatprep.subr.mxu0 0.0
      %736 = vmatpush2.msra.mxu0 0.0
      %737 = vmatprep.subr.mxu0 0.0
      %738 = vmatpush2.msra.mxu0 0.0
      %739 = vmatprep.subr.mxu0 0.0
      %740 = vmatpush2.msra.mxu0 0.0
      %741 = vmatprep.subr.mxu0 0.0
      %742 = vmatpush2.msra.mxu0 0.0
      %743 = vmatprep.subr.mxu0 0.0
      %744 = vmatpush2.msra.mxu0 0.0
      %745 = vmatprep.subr.mxu0 0.0
      %746 = vmatpush2.msra.mxu0 0.0
      %747 = vmatprep.subr.mxu0 0.0
      %748 = vmatpush2.msra.mxu0 0.0
      %749 = vmatprep.mubr.f32.mxu0 0.0
      %750 = vmatmul.mubr.f32.gmra.mxu0 %v683
      %v751 = vpop.f32.mrf.mxu0
      %v752 = vadd.f32 0.0, %v751
      %v753 = vpop.f32.mrf.mxu0
      %754 = vdwg.mxu0
      %s755 = scalar_lea.vmem %s1, 24
      %v756 = vld [vmem:[%s755] sm:$0x1f]
      %v758 = vsel %vm527, %v756, 0
      %760 = vmatprep.subr.mxu0 0.0
      %761 = vmatpush1.msra.mxu0 0.0
      %762 = vmatprep.subr.mxu0 0.0
      %763 = vmatpush1.msra.mxu0 0.0
      %764 = vmatprep.subr.mxu0 0.0
      %765 = vmatpush1.msra.mxu0 0.0
      %766 = vmatprep.subr.mxu0 0.0
      %767 = vmatpush1.msra.mxu0 0.0
      %768 = vmatprep.subr.mxu0 0.0
      %769 = vmatpush1.msra.mxu0 0.0
      %770 = vmatprep.subr.mxu0 0.0
      %771 = vmatpush1.msra.mxu0 0.0
      %772 = vmatprep.subr.mxu0 0.0
      %773 = vmatpush1.msra.mxu0 0.0
      %774 = vmatprep.subr.mxu0 0.0
      %775 = vmatpush1.msra.mxu0 0.0
      %776 = vmatprep.subr.mxu0 0.0
      %777 = vmatpush1.msra.mxu0 0.0
      %778 = vmatprep.subr.mxu0 0.0
      %779 = vmatpush1.msra.mxu0 0.0
      %780 = vmatprep.subr.mxu0 0.0
      %781 = vmatpush1.msra.mxu0 0.0
      %782 = vmatprep.subr.mxu0 0.0
      %783 = vmatpush1.msra.mxu0 0.0
      %784 = vmatprep.subr.mxu0 0.0
      %785 = vmatpush1.msra.mxu0 %v533
      %786 = vmatprep.subr.mxu0 0.0
      %787 = vmatpush1.msra.mxu0 %v524
      %788 = vmatprep.subr.mxu0 0.0
      %789 = vmatpush1.msra.mxu0 %v523
      %790 = vmatprep.subr.mxu0 0.0
      %791 = vmatpush1.msra.mxu0 %v522
      %792 = vmatprep.subr.mxu0 0.0
      %793 = vmatpush2.msra.mxu0 0.0
      %794 = vmatprep.subr.mxu0 0.0
      %795 = vmatpush2.msra.mxu0 0.0
      %796 = vmatprep.subr.mxu0 0.0
      %797 = vmatpush2.msra.mxu0 0.0
      %798 = vmatprep.subr.mxu0 0.0
      %799 = vmatpush2.msra.mxu0 0.0
      %800 = vmatprep.subr.mxu0 0.0
      %801 = vmatpush2.msra.mxu0 0.0
      %802 = vmatprep.subr.mxu0 0.0
      %803 = vmatpush2.msra.mxu0 0.0
      %804 = vmatprep.subr.mxu0 0.0
      %805 = vmatpush2.msra.mxu0 0.0
      %806 = vmatprep.subr.mxu0 0.0
      %807 = vmatpush2.msra.mxu0 0.0
      %808 = vmatprep.subr.mxu0 0.0
      %809 = vmatpush2.msra.mxu0 0.0
      %810 = vmatprep.subr.mxu0 0.0
      %811 = vmatpush2.msra.mxu0 0.0
      %812 = vmatprep.subr.mxu0 0.0
      %813 = vmatpush2.msra.mxu0 0.0
      %814 = vmatprep.subr.mxu0 0.0
      %815 = vmatpush2.msra.mxu0 0.0
      %816 = vmatprep.subr.mxu0 0.0
      %817 = vmatpush2.msra.mxu0 0.0
      %818 = vmatprep.subr.mxu0 0.0
      %819 = vmatpush2.msra.mxu0 0.0
      %820 = vmatprep.subr.mxu0 0.0
      %821 = vmatpush2.msra.mxu0 0.0
      %822 = vmatprep.subr.mxu0 0.0
      %823 = vmatpush2.msra.mxu0 0.0
      %824 = vmatprep.mubr.f32.mxu0 0.0
      %825 = vmatmul.mubr.f32.gmra.mxu0 %v758
      %v826 = vpop.f32.mrf.mxu0
      %v827 = vadd.f32 0.0, %v826
      %v828 = vpop.f32.mrf.mxu0
      %829 = vdwg.mxu0
      %s830 = scalar_lea.vmem %s1, 32
      %v831 = vld [vmem:[%s830] sm:$0x1f]
      %v833 = vsel %vm527, %v831, 0
      %835 = vmatprep.subr.mxu0 0.0
      %836 = vmatpush1.msra.mxu0 0.0
      %837 = vmatprep.subr.mxu0 0.0
      %838 = vmatpush1.msra.mxu0 0.0
      %839 = vmatprep.subr.mxu0 0.0
      %840 = vmatpush1.msra.mxu0 0.0
      %841 = vmatprep.subr.mxu0 0.0
      %842 = vmatpush1.msra.mxu0 0.0
      %843 = vmatprep.subr.mxu0 0.0
      %844 = vmatpush1.msra.mxu0 0.0
      %845 = vmatprep.subr.mxu0 0.0
      %846 = vmatpush1.msra.mxu0 0.0
      %847 = vmatprep.subr.mxu0 0.0
      %848 = vmatpush1.msra.mxu0 0.0
      %849 = vmatprep.subr.mxu0 0.0
      %850 = vmatpush1.msra.mxu0 0.0
      %851 = vmatprep.subr.mxu0 0.0
      %852 = vmatpush1.msra.mxu0 0.0
      %853 = vmatprep.subr.mxu0 0.0
      %854 = vmatpush1.msra.mxu0 0.0
      %855 = vmatprep.subr.mxu0 0.0
      %856 = vmatpush1.msra.mxu0 0.0
      %857 = vmatprep.subr.mxu0 0.0
      %858 = vmatpush1.msra.mxu0 0.0
      %859 = vmatprep.subr.mxu0 0.0
      %860 = vmatpush1.msra.mxu0 %v533
      %861 = vmatprep.subr.mxu0 0.0
      %862 = vmatpush1.msra.mxu0 %v524
      %863 = vmatprep.subr.mxu0 0.0
      %864 = vmatpush1.msra.mxu0 %v523
      %865 = vmatprep.subr.mxu0 0.0
      %866 = vmatpush1.msra.mxu0 %v522
      %867 = vmatprep.subr.mxu0 0.0
      %868 = vmatpush2.msra.mxu0 0.0
      %869 = vmatprep.subr.mxu0 0.0
      %870 = vmatpush2.msra.mxu0 0.0
      %871 = vmatprep.subr.mxu0 0.0
      %872 = vmatpush2.msra.mxu0 0.0
      %873 = vmatprep.subr.mxu0 0.0
      %874 = vmatpush2.msra.mxu0 0.0
      %875 = vmatprep.subr.mxu0 0.0
      %876 = vmatpush2.msra.mxu0 0.0
      %877 = vmatprep.subr.mxu0 0.0
      %878 = vmatpush2.msra.mxu0 0.0
      %879 = vmatprep.subr.mxu0 0.0
      %880 = vmatpush2.msra.mxu0 0.0
      %881 = vmatprep.subr.mxu0 0.0
      %882 = vmatpush2.msra.mxu0 0.0
      %883 = vmatprep.subr.mxu0 0.0
      %884 = vmatpush2.msra.mxu0 0.0
      %885 = vmatprep.subr.mxu0 0.0
      %886 = vmatpush2.msra.mxu0 0.0
      %887 = vmatprep.subr.mxu0 0.0
      %888 = vmatpush2.msra.mxu0 0.0
      %889 = vmatprep.subr.mxu0 0.0
      %890 = vmatpush2.msra.mxu0 0.0
      %891 = vmatprep.subr.mxu0 0.0
      %892 = vmatpush2.msra.mxu0 0.0
      %893 = vmatprep.subr.mxu0 0.0
      %894 = vmatpush2.msra.mxu0 0.0
      %895 = vmatprep.subr.mxu0 0.0
      %896 = vmatpush2.msra.mxu0 0.0
      %897 = vmatprep.subr.mxu0 0.0
      %898 = vmatpush2.msra.mxu0 0.0
      %899 = vmatprep.mubr.f32.mxu0 0.0
      %900 = vmatmul.mubr.f32.gmra.mxu0 %v833
      %v901 = vpop.f32.mrf.mxu0
      %v902 = vadd.f32 0.0, %v901
      %v903 = vpop.f32.mrf.mxu0
      %904 = vdwg.mxu0
      %s905 = scalar_lea.vmem %s1, 40
      %v906 = vld [vmem:[%s905] sm:$0x1f]
      %v908 = vsel %vm527, %v906, 0
      %910 = vmatprep.subr.mxu0 0.0
      %911 = vmatpush1.msra.mxu0 0.0
      %912 = vmatprep.subr.mxu0 0.0
      %913 = vmatpush1.msra.mxu0 0.0
      %914 = vmatprep.subr.mxu0 0.0
      %915 = vmatpush1.msra.mxu0 0.0
      %916 = vmatprep.subr.mxu0 0.0
      %917 = vmatpush1.msra.mxu0 0.0
      %918 = vmatprep.subr.mxu0 0.0
      %919 = vmatpush1.msra.mxu0 0.0
      %920 = vmatprep.subr.mxu0 0.0
      %921 = vmatpush1.msra.mxu0 0.0
      %922 = vmatprep.subr.mxu0 0.0
      %923 = vmatpush1.msra.mxu0 0.0
      %924 = vmatprep.subr.mxu0 0.0
      %925 = vmatpush1.msra.mxu0 0.0
      %926 = vmatprep.subr.mxu0 0.0
      %927 = vmatpush1.msra.mxu0 0.0
      %928 = vmatprep.subr.mxu0 0.0
      %929 = vmatpush1.msra.mxu0 0.0
      %930 = vmatprep.subr.mxu0 0.0
      %931 = vmatpush1.msra.mxu0 0.0
      %932 = vmatprep.subr.mxu0 0.0
      %933 = vmatpush1.msra.mxu0 0.0
      %934 = vmatprep.subr.mxu0 0.0
      %935 = vmatpush1.msra.mxu0 %v533
      %936 = vmatprep.subr.mxu0 0.0
      %937 = vmatpush1.msra.mxu0 %v524
      %938 = vmatprep.subr.mxu0 0.0
      %939 = vmatpush1.msra.mxu0 %v523
      %940 = vmatprep.subr.mxu0 0.0
      %941 = vmatpush1.msra.mxu0 %v522
      %942 = vmatprep.subr.mxu0 0.0
      %943 = vmatpush2.msra.mxu0 0.0
      %944 = vmatprep.subr.mxu0 0.0
      %945 = vmatpush2.msra.mxu0 0.0
      %946 = vmatprep.subr.mxu0 0.0
      %947 = vmatpush2.msra.mxu0 0.0
      %948 = vmatprep.subr.mxu0 0.0
      %949 = vmatpush2.msra.mxu0 0.0
      %950 = vmatprep.subr.mxu0 0.0
      %951 = vmatpush2.msra.mxu0 0.0
      %952 = vmatprep.subr.mxu0 0.0
      %953 = vmatpush2.msra.mxu0 0.0
      %954 = vmatprep.subr.mxu0 0.0
      %955 = vmatpush2.msra.mxu0 0.0
      %956 = vmatprep.subr.mxu0 0.0
      %957 = vmatpush2.msra.mxu0 0.0
      %958 = vmatprep.subr.mxu0 0.0
      %959 = vmatpush2.msra.mxu0 0.0
      %960 = vmatprep.subr.mxu0 0.0
      %961 = vmatpush2.msra.mxu0 0.0
      %962 = vmatprep.subr.mxu0 0.0
      %963 = vmatpush2.msra.mxu0 0.0
      %964 = vmatprep.subr.mxu0 0.0
      %965 = vmatpush2.msra.mxu0 0.0
      %966 = vmatprep.subr.mxu0 0.0
      %967 = vmatpush2.msra.mxu0 0.0
      %968 = vmatprep.subr.mxu0 0.0
      %969 = vmatpush2.msra.mxu0 0.0
      %970 = vmatprep.subr.mxu0 0.0
      %971 = vmatpush2.msra.mxu0 0.0
      %972 = vmatprep.subr.mxu0 0.0
      %973 = vmatpush2.msra.mxu0 0.0
      %974 = vmatprep.mubr.f32.mxu0 0.0
      %975 = vmatmul.mubr.f32.gmra.mxu0 %v908
      %v976 = vpop.f32.mrf.mxu0
      %v977 = vadd.f32 0.0, %v976
      %v978 = vpop.f32.mrf.mxu0
      %979 = vdwg.mxu0
      %v980 = vld [vmem:[%s2] sm:$0xff]
      %v981 = vld [vmem:[%s2 + $0x8] sm:$0xff]
      %v982 = vld [vmem:[%s2 + $0x10] sm:$0xff]
      %v983 = vld [vmem:[%s2 + $0x18] sm:$0xf]
      %s984 = scalar_lea.vmem %s2, 64
      %v985 = vld [vmem:[%s984] sm:$0xff]
      %v986 = vld [vmem:[%s984 + $0x8] sm:$0xff]
      %v987 = vld [vmem:[%s984 + $0x10] sm:$0xff]
      %v988 = vld [vmem:[%s984 + $0x18] sm:$0xf]
      %v990 = vsel %vm527, %v752, 0
      %v993 = vsel %vm531, %v988, 0
      %995 = vmatprep.subr.mxu0 0.0
      %996 = vmatpush1.msra.mxu0 0.0
      %997 = vmatprep.subr.mxu0 0.0
      %998 = vmatpush1.msra.mxu0 0.0
      %999 = vmatprep.subr.mxu0 0.0
      %1000 = vmatpush1.msra.mxu0 0.0
      %1001 = vmatprep.subr.mxu0 0.0
      %1002 = vmatpush1.msra.mxu0 0.0
      %1003 = vmatprep.subr.mxu0 0.0
      %1004 = vmatpush1.msra.mxu0 0.0
      %1005 = vmatprep.subr.mxu0 0.0
      %1006 = vmatpush1.msra.mxu0 0.0
      %1007 = vmatprep.subr.mxu0 0.0
      %1008 = vmatpush1.msra.mxu0 0.0
      %1009 = vmatprep.subr.mxu0 0.0
      %1010 = vmatpush1.msra.mxu0 0.0
      %1011 = vmatprep.subr.mxu0 0.0
      %1012 = vmatpush1.msra.mxu0 0.0
      %1013 = vmatprep.subr.mxu0 0.0
      %1014 = vmatpush1.msra.mxu0 0.0
      %1015 = vmatprep.subr.mxu0 0.0
      %1016 = vmatpush1.msra.mxu0 0.0
      %1017 = vmatprep.subr.mxu0 0.0
      %1018 = vmatpush1.msra.mxu0 0.0
      %1019 = vmatprep.subr.mxu0 0.0
      %1020 = vmatpush1.msra.mxu0 %v993
      %1021 = vmatprep.subr.mxu0 0.0
      %1022 = vmatpush1.msra.mxu0 %v987
      %1023 = vmatprep.subr.mxu0 0.0
      %1024 = vmatpush1.msra.mxu0 %v986
      %1025 = vmatprep.subr.mxu0 0.0
      %1026 = vmatpush1.msra.mxu0 %v985
      %1027 = vmatprep.subr.mxu0 0.0
      %1028 = vmatpush2.msra.mxu0 0.0
      %1029 = vmatprep.subr.mxu0 0.0
      %1030 = vmatpush2.msra.mxu0 0.0
      %1031 = vmatprep.subr.mxu0 0.0
      %1032 = vmatpush2.msra.mxu0 0.0
      %1033 = vmatprep.subr.mxu0 0.0
      %1034 = vmatpush2.msra.mxu0 0.0
      %1035 = vmatprep.subr.mxu0 0.0
      %1036 = vmatpush2.msra.mxu0 0.0
      %1037 = vmatprep.subr.mxu0 0.0
      %1038 = vmatpush2.msra.mxu0 0.0
      %1039 = vmatprep.subr.mxu0 0.0
      %1040 = vmatpush2.msra.mxu0 0.0
      %1041 = vmatprep.subr.mxu0 0.0
      %1042 = vmatpush2.msra.mxu0 0.0
      %1043 = vmatprep.subr.mxu0 0.0
      %1044 = vmatpush2.msra.mxu0 0.0
      %1045 = vmatprep.subr.mxu0 0.0
      %1046 = vmatpush2.msra.mxu0 0.0
      %1047 = vmatprep.subr.mxu0 0.0
      %1048 = vmatpush2.msra.mxu0 0.0
      %1049 = vmatprep.subr.mxu0 0.0
      %1050 = vmatpush2.msra.mxu0 0.0
      %1051 = vmatprep.subr.mxu0 0.0
      %1052 = vmatpush2.msra.mxu0 0.0
      %1053 = vmatprep.subr.mxu0 0.0
      %1054 = vmatpush2.msra.mxu0 0.0
      %1055 = vmatprep.subr.mxu0 0.0
      %1056 = vmatpush2.msra.mxu0 0.0
      %1057 = vmatprep.subr.mxu0 0.0
      %1058 = vmatpush2.msra.mxu0 0.0
      %1059 = vmatprep.mubr.f32.mxu0 0.0
      %1060 = vmatmul.mubr.f32.gmra.mxu0 %v990
      %v1061 = vpop.f32.mrf.mxu0
      %v1062 = vadd.f32 0.0, %v1061
      %v1063 = vpop.f32.mrf.mxu0
      %1064 = vdwg.mxu0
      %v1066 = vsel %vm527, %v602, 0
      %v1069 = vsel %vm531, %v983, 0
      %1071 = vmatprep.subr.mxu0 0.0
      %1072 = vmatpush1.msra.mxu0 0.0
      %1073 = vmatprep.subr.mxu0 0.0
      %1074 = vmatpush1.msra.mxu0 0.0
      %1075 = vmatprep.subr.mxu0 0.0
      %1076 = vmatpush1.msra.mxu0 0.0
      %1077 = vmatprep.subr.mxu0 0.0
      %1078 = vmatpush1.msra.mxu0 0.0
      %1079 = vmatprep.subr.mxu0 0.0
      %1080 = vmatpush1.msra.mxu0 0.0
      %1081 = vmatprep.subr.mxu0 0.0
      %1082 = vmatpush1.msra.mxu0 0.0
      %1083 = vmatprep.subr.mxu0 0.0
      %1084 = vmatpush1.msra.mxu0 0.0
      %1085 = vmatprep.subr.mxu0 0.0
      %1086 = vmatpush1.msra.mxu0 0.0
      %1087 = vmatprep.subr.mxu0 0.0
      %1088 = vmatpush1.msra.mxu0 0.0
      %1089 = vmatprep.subr.mxu0 0.0
      %1090 = vmatpush1.msra.mxu0 0.0
      %1091 = vmatprep.subr.mxu0 0.0
      %1092 = vmatpush1.msra.mxu0 0.0
      %1093 = vmatprep.subr.mxu0 0.0
      %1094 = vmatpush1.msra.mxu0 0.0
      %1095 = vmatprep.subr.mxu0 0.0
      %1096 = vmatpush1.msra.mxu0 %v1069
      %1097 = vmatprep.subr.mxu0 0.0
      %1098 = vmatpush1.msra.mxu0 %v982
      %1099 = vmatprep.subr.mxu0 0.0
      %1100 = vmatpush1.msra.mxu0 %v981
      %1101 = vmatprep.subr.mxu0 0.0
      %1102 = vmatpush1.msra.mxu0 %v980
      %1103 = vmatprep.subr.mxu0 0.0
      %1104 = vmatpush2.msra.mxu0 0.0
      %1105 = vmatprep.subr.mxu0 0.0
      %1106 = vmatpush2.msra.mxu0 0.0
      %1107 = vmatprep.subr.mxu0 0.0
      %1108 = vmatpush2.msra.mxu0 0.0
      %1109 = vmatprep.subr.mxu0 0.0
      %1110 = vmatpush2.msra.mxu0 0.0
      %1111 = vmatprep.subr.mxu0 0.0
      %1112 = vmatpush2.msra.mxu0 0.0
      %1113 = vmatprep.subr.mxu0 0.0
      %1114 = vmatpush2.msra.mxu0 0.0
      %1115 = vmatprep.subr.mxu0 0.0
      %1116 = vmatpush2.msra.mxu0 0.0
      %1117 = vmatprep.subr.mxu0 0.0
      %1118 = vmatpush2.msra.mxu0 0.0
      %1119 = vmatprep.subr.mxu0 0.0
      %1120 = vmatpush2.msra.mxu0 0.0
      %1121 = vmatprep.subr.mxu0 0.0
      %1122 = vmatpush2.msra.mxu0 0.0
      %1123 = vmatprep.subr.mxu0 0.0
      %1124 = vmatpush2.msra.mxu0 0.0
      %1125 = vmatprep.subr.mxu0 0.0
      %1126 = vmatpush2.msra.mxu0 0.0
      %1127 = vmatprep.subr.mxu0 0.0
      %1128 = vmatpush2.msra.mxu0 0.0
      %1129 = vmatprep.subr.mxu0 0.0
      %1130 = vmatpush2.msra.mxu0 0.0
      %1131 = vmatprep.subr.mxu0 0.0
      %1132 = vmatpush2.msra.mxu0 0.0
      %1133 = vmatprep.subr.mxu0 0.0
      %1134 = vmatpush2.msra.mxu0 0.0
      %1135 = vmatprep.mubr.f32.mxu0 0.0
      %1136 = vmatmul.mubr.f32.gmra.mxu0 %v1066
      %v1137 = vpop.f32.mrf.mxu0
      %v1138 = vadd.f32 %v1062, %v1137
      %v1139 = vpop.f32.mrf.mxu0
      %1140 = vdwg.mxu0
      %s1141 = scalar_lea.vmem %s2, 128
      %v1142 = vld [vmem:[%s1141] sm:$0xff]
      %v1143 = vld [vmem:[%s1141 + $0x8] sm:$0xff]
      %v1144 = vld [vmem:[%s1141 + $0x10] sm:$0xff]
      %v1145 = vld [vmem:[%s1141 + $0x18] sm:$0xf]
      %v1147 = vsel %vm527, %v902, 0
      %v1150 = vsel %vm531, %v1145, 0
      %1152 = vmatprep.subr.mxu0 0.0
      %1153 = vmatpush1.msra.mxu0 0.0
      %1154 = vmatprep.subr.mxu0 0.0
      %1155 = vmatpush1.msra.mxu0 0.0
      %1156 = vmatprep.subr.mxu0 0.0
      %1157 = vmatpush1.msra.mxu0 0.0
      %1158 = vmatprep.subr.mxu0 0.0
      %1159 = vmatpush1.msra.mxu0 0.0
      %1160 = vmatprep.subr.mxu0 0.0
      %1161 = vmatpush1.msra.mxu0 0.0
      %1162 = vmatprep.subr.mxu0 0.0
      %1163 = vmatpush1.msra.mxu0 0.0
      %1164 = vmatprep.subr.mxu0 0.0
      %1165 = vmatpush1.msra.mxu0 0.0
      %1166 = vmatprep.subr.mxu0 0.0
      %1167 = vmatpush1.msra.mxu0 0.0
      %1168 = vmatprep.subr.mxu0 0.0
      %1169 = vmatpush1.msra.mxu0 0.0
      %1170 = vmatprep.subr.mxu0 0.0
      %1171 = vmatpush1.msra.mxu0 0.0
      %1172 = vmatprep.subr.mxu0 0.0
      %1173 = vmatpush1.msra.mxu0 0.0
      %1174 = vmatprep.subr.mxu0 0.0
      %1175 = vmatpush1.msra.mxu0 0.0
      %1176 = vmatprep.subr.mxu0 0.0
      %1177 = vmatpush1.msra.mxu0 %v1150
      %1178 = vmatprep.subr.mxu0 0.0
      %1179 = vmatpush1.msra.mxu0 %v1144
      %1180 = vmatprep.subr.mxu0 0.0
      %1181 = vmatpush1.msra.mxu0 %v1143
      %1182 = vmatprep.subr.mxu0 0.0
      %1183 = vmatpush1.msra.mxu0 %v1142
      %1184 = vmatprep.subr.mxu0 0.0
      %1185 = vmatpush2.msra.mxu0 0.0
      %1186 = vmatprep.subr.mxu0 0.0
      %1187 = vmatpush2.msra.mxu0 0.0
      %1188 = vmatprep.subr.mxu0 0.0
      %1189 = vmatpush2.msra.mxu0 0.0
      %1190 = vmatprep.subr.mxu0 0.0
      %1191 = vmatpush2.msra.mxu0 0.0
      %1192 = vmatprep.subr.mxu0 0.0
      %1193 = vmatpush2.msra.mxu0 0.0
      %1194 = vmatprep.subr.mxu0 0.0
      %1195 = vmatpush2.msra.mxu0 0.0
      %1196 = vmatprep.subr.mxu0 0.0
      %1197 = vmatpush2.msra.mxu0 0.0
      %1198 = vmatprep.subr.mxu0 0.0
      %1199 = vmatpush2.msra.mxu0 0.0
      %1200 = vmatprep.subr.mxu0 0.0
      %1201 = vmatpush2.msra.mxu0 0.0
      %1202 = vmatprep.subr.mxu0 0.0
      %1203 = vmatpush2.msra.mxu0 0.0
      %1204 = vmatprep.subr.mxu0 0.0
      %1205 = vmatpush2.msra.mxu0 0.0
      %1206 = vmatprep.subr.mxu0 0.0
      %1207 = vmatpush2.msra.mxu0 0.0
      %1208 = vmatprep.subr.mxu0 0.0
      %1209 = vmatpush2.msra.mxu0 0.0
      %1210 = vmatprep.subr.mxu0 0.0
      %1211 = vmatpush2.msra.mxu0 0.0
      %1212 = vmatprep.subr.mxu0 0.0
      %1213 = vmatpush2.msra.mxu0 0.0
      %1214 = vmatprep.subr.mxu0 0.0
      %1215 = vmatpush2.msra.mxu0 0.0
      %1216 = vmatprep.mubr.f32.mxu0 0.0
      %1217 = vmatmul.mubr.f32.gmra.mxu0 %v1147
      %v1218 = vpop.f32.mrf.mxu0
      %v1219 = vadd.f32 0.0, %v1218
      %v1220 = vpop.f32.mrf.mxu0
      %1221 = vdwg.mxu0
      %v1222 = vadd.f32 %v1138, %v1219
      %s1223 = scalar_lea.vmem %s2, 32
      %v1224 = vld [vmem:[%s1223] sm:$0xff]
      %v1225 = vld [vmem:[%s1223 + $0x8] sm:$0xff]
      %v1226 = vld [vmem:[%s1223 + $0x10] sm:$0xff]
      %v1227 = vld [vmem:[%s1223 + $0x18] sm:$0xf]
      %s1228 = scalar_lea.vmem %s2, 96
      %v1229 = vld [vmem:[%s1228] sm:$0xff]
      %v1230 = vld [vmem:[%s1228 + $0x8] sm:$0xff]
      %v1231 = vld [vmem:[%s1228 + $0x10] sm:$0xff]
      %v1232 = vld [vmem:[%s1228 + $0x18] sm:$0xf]
      %v1234 = vsel %vm531, %v1232, 0
      %1236 = vmatprep.subr.mxu0 0.0
      %1237 = vmatpush1.msra.mxu0 0.0
      %1238 = vmatprep.subr.mxu0 0.0
      %1239 = vmatpush1.msra.mxu0 0.0
      %1240 = vmatprep.subr.mxu0 0.0
      %1241 = vmatpush1.msra.mxu0 0.0
      %1242 = vmatprep.subr.mxu0 0.0
      %1243 = vmatpush1.msra.mxu0 0.0
      %1244 = vmatprep.subr.mxu0 0.0
      %1245 = vmatpush1.msra.mxu0 0.0
      %1246 = vmatprep.subr.mxu0 0.0
      %1247 = vmatpush1.msra.mxu0 0.0
      %1248 = vmatprep.subr.mxu0 0.0
      %1249 = vmatpush1.msra.mxu0 0.0
      %1250 = vmatprep.subr.mxu0 0.0
      %1251 = vmatpush1.msra.mxu0 0.0
      %1252 = vmatprep.subr.mxu0 0.0
      %1253 = vmatpush1.msra.mxu0 0.0
      %1254 = vmatprep.subr.mxu0 0.0
      %1255 = vmatpush1.msra.mxu0 0.0
      %1256 = vmatprep.subr.mxu0 0.0
      %1257 = vmatpush1.msra.mxu0 0.0
      %1258 = vmatprep.subr.mxu0 0.0
      %1259 = vmatpush1.msra.mxu0 0.0
      %1260 = vmatprep.subr.mxu0 0.0
      %1261 = vmatpush1.msra.mxu0 %v1234
      %1262 = vmatprep.subr.mxu0 0.0
      %1263 = vmatpush1.msra.mxu0 %v1231
      %1264 = vmatprep.subr.mxu0 0.0
      %1265 = vmatpush1.msra.mxu0 %v1230
      %1266 = vmatprep.subr.mxu0 0.0
      %1267 = vmatpush1.msra.mxu0 %v1229
      %1268 = vmatprep.subr.mxu0 0.0
      %1269 = vmatpush2.msra.mxu0 0.0
      %1270 = vmatprep.subr.mxu0 0.0
      %1271 = vmatpush2.msra.mxu0 0.0
      %1272 = vmatprep.subr.mxu0 0.0
      %1273 = vmatpush2.msra.mxu0 0.0
      %1274 = vmatprep.subr.mxu0 0.0
      %1275 = vmatpush2.msra.mxu0 0.0
      %1276 = vmatprep.subr.mxu0 0.0
      %1277 = vmatpush2.msra.mxu0 0.0
      %1278 = vmatprep.subr.mxu0 0.0
      %1279 = vmatpush2.msra.mxu0 0.0
      %1280 = vmatprep.subr.mxu0 0.0
      %1281 = vmatpush2.msra.mxu0 0.0
      %1282 = vmatprep.subr.mxu0 0.0
      %1283 = vmatpush2.msra.mxu0 0.0
      %1284 = vmatprep.subr.mxu0 0.0
      %1285 = vmatpush2.msra.mxu0 0.0
      %1286 = vmatprep.subr.mxu0 0.0
      %1287 = vmatpush2.msra.mxu0 0.0
      %1288 = vmatprep.subr.mxu0 0.0
      %1289 = vmatpush2.msra.mxu0 0.0
      %1290 = vmatprep.subr.mxu0 0.0
      %1291 = vmatpush2.msra.mxu0 0.0
      %1292 = vmatprep.subr.mxu0 0.0
      %1293 = vmatpush2.msra.mxu0 0.0
      %1294 = vmatprep.subr.mxu0 0.0
      %1295 = vmatpush2.msra.mxu0 0.0
      %1296 = vmatprep.subr.mxu0 0.0
      %1297 = vmatpush2.msra.mxu0 0.0
      %1298 = vmatprep.subr.mxu0 0.0
      %1299 = vmatpush2.msra.mxu0 0.0
      %1300 = vmatprep.mubr.f32.mxu0 0.0
      %1301 = vmatmul.mubr.f32.gmra.mxu0 %v990
      %v1302 = vpop.f32.mrf.mxu0
      %v1303 = vadd.f32 0.0, %v1302
      %v1304 = vpop.f32.mrf.mxu0
      %1305 = vdwg.mxu0
      %v1307 = vsel %vm531, %v1227, 0
      %1309 = vmatprep.subr.mxu0 0.0
      %1310 = vmatpush1.msra.mxu0 0.0
      %1311 = vmatprep.subr.mxu0 0.0
      %1312 = vmatpush1.msra.mxu0 0.0
      %1313 = vmatprep.subr.mxu0 0.0
      %1314 = vmatpush1.msra.mxu0 0.0
      %1315 = vmatprep.subr.mxu0 0.0
      %1316 = vmatpush1.msra.mxu0 0.0
      %1317 = vmatprep.subr.mxu0 0.0
      %1318 = vmatpush1.msra.mxu0 0.0
      %1319 = vmatprep.subr.mxu0 0.0
      %1320 = vmatpush1.msra.mxu0 0.0
      %1321 = vmatprep.subr.mxu0 0.0
      %1322 = vmatpush1.msra.mxu0 0.0
      %1323 = vmatprep.subr.mxu0 0.0
      %1324 = vmatpush1.msra.mxu0 0.0
      %1325 = vmatprep.subr.mxu0 0.0
      %1326 = vmatpush1.msra.mxu0 0.0
      %1327 = vmatprep.subr.mxu0 0.0
      %1328 = vmatpush1.msra.mxu0 0.0
      %1329 = vmatprep.subr.mxu0 0.0
      %1330 = vmatpush1.msra.mxu0 0.0
      %1331 = vmatprep.subr.mxu0 0.0
      %1332 = vmatpush1.msra.mxu0 0.0
      %1333 = vmatprep.subr.mxu0 0.0
      %1334 = vmatpush1.msra.mxu0 %v1307
      %1335 = vmatprep.subr.mxu0 0.0
      %1336 = vmatpush1.msra.mxu0 %v1226
      %1337 = vmatprep.subr.mxu0 0.0
      %1338 = vmatpush1.msra.mxu0 %v1225
      %1339 = vmatprep.subr.mxu0 0.0
      %1340 = vmatpush1.msra.mxu0 %v1224
      %1341 = vmatprep.subr.mxu0 0.0
      %1342 = vmatpush2.msra.mxu0 0.0
      %1343 = vmatprep.subr.mxu0 0.0
      %1344 = vmatpush2.msra.mxu0 0.0
      %1345 = vmatprep.subr.mxu0 0.0
      %1346 = vmatpush2.msra.mxu0 0.0
      %1347 = vmatprep.subr.mxu0 0.0
      %1348 = vmatpush2.msra.mxu0 0.0
      %1349 = vmatprep.subr.mxu0 0.0
      %1350 = vmatpush2.msra.mxu0 0.0
      %1351 = vmatprep.subr.mxu0 0.0
      %1352 = vmatpush2.msra.mxu0 0.0
      %1353 = vmatprep.subr.mxu0 0.0
      %1354 = vmatpush2.msra.mxu0 0.0
      %1355 = vmatprep.subr.mxu0 0.0
      %1356 = vmatpush2.msra.mxu0 0.0
      %1357 = vmatprep.subr.mxu0 0.0
      %1358 = vmatpush2.msra.mxu0 0.0
      %1359 = vmatprep.subr.mxu0 0.0
      %1360 = vmatpush2.msra.mxu0 0.0
      %1361 = vmatprep.subr.mxu0 0.0
      %1362 = vmatpush2.msra.mxu0 0.0
      %1363 = vmatprep.subr.mxu0 0.0
      %1364 = vmatpush2.msra.mxu0 0.0
      %1365 = vmatprep.subr.mxu0 0.0
      %1366 = vmatpush2.msra.mxu0 0.0
      %1367 = vmatprep.subr.mxu0 0.0
      %1368 = vmatpush2.msra.mxu0 0.0
      %1369 = vmatprep.subr.mxu0 0.0
      %1370 = vmatpush2.msra.mxu0 0.0
      %1371 = vmatprep.subr.mxu0 0.0
      %1372 = vmatpush2.msra.mxu0 0.0
      %1373 = vmatprep.mubr.f32.mxu0 0.0
      %1374 = vmatmul.mubr.f32.gmra.mxu0 %v1066
      %v1375 = vpop.f32.mrf.mxu0
      %v1376 = vadd.f32 %v1303, %v1375
      %v1377 = vpop.f32.mrf.mxu0
      %1378 = vdwg.mxu0
      %s1379 = scalar_lea.vmem %s2, 160
      %v1380 = vld [vmem:[%s1379] sm:$0xff]
      %v1381 = vld [vmem:[%s1379 + $0x8] sm:$0xff]
      %v1382 = vld [vmem:[%s1379 + $0x10] sm:$0xff]
      %v1383 = vld [vmem:[%s1379 + $0x18] sm:$0xf]
      %v1385 = vsel %vm531, %v1383, 0
      %1387 = vmatprep.subr.mxu0 0.0
      %1388 = vmatpush1.msra.mxu0 0.0
      %1389 = vmatprep.subr.mxu0 0.0
      %1390 = vmatpush1.msra.mxu0 0.0
      %1391 = vmatprep.subr.mxu0 0.0
      %1392 = vmatpush1.msra.mxu0 0.0
      %1393 = vmatprep.subr.mxu0 0.0
      %1394 = vmatpush1.msra.mxu0 0.0
      %1395 = vmatprep.subr.mxu0 0.0
      %1396 = vmatpush1.msra.mxu0 0.0
      %1397 = vmatprep.subr.mxu0 0.0
      %1398 = vmatpush1.msra.mxu0 0.0
      %1399 = vmatprep.subr.mxu0 0.0
      %1400 = vmatpush1.msra.mxu0 0.0
      %1401 = vmatprep.subr.mxu0 0.0
      %1402 = vmatpush1.msra.mxu0 0.0
      %1403 = vmatprep.subr.mxu0 0.0
      %1404 = vmatpush1.msra.mxu0 0.0
      %1405 = vmatprep.subr.mxu0 0.0
      %1406 = vmatpush1.msra.mxu0 0.0
      %1407 = vmatprep.subr.mxu0 0.0
      %1408 = vmatpush1.msra.mxu0 0.0
      %1409 = vmatprep.subr.mxu0 0.0
      %1410 = vmatpush1.msra.mxu0 0.0
      %1411 = vmatprep.subr.mxu0 0.0
      %1412 = vmatpush1.msra.mxu0 %v1385
      %1413 = vmatprep.subr.mxu0 0.0
      %1414 = vmatpush1.msra.mxu0 %v1382
      %1415 = vmatprep.subr.mxu0 0.0
      %1416 = vmatpush1.msra.mxu0 %v1381
      %1417 = vmatprep.subr.mxu0 0.0
      %1418 = vmatpush1.msra.mxu0 %v1380
      %1419 = vmatprep.subr.mxu0 0.0
      %1420 = vmatpush2.msra.mxu0 0.0
      %1421 = vmatprep.subr.mxu0 0.0
      %1422 = vmatpush2.msra.mxu0 0.0
      %1423 = vmatprep.subr.mxu0 0.0
      %1424 = vmatpush2.msra.mxu0 0.0
      %1425 = vmatprep.subr.mxu0 0.0
      %1426 = vmatpush2.msra.mxu0 0.0
      %1427 = vmatprep.subr.mxu0 0.0
      %1428 = vmatpush2.msra.mxu0 0.0
      %1429 = vmatprep.subr.mxu0 0.0
      %1430 = vmatpush2.msra.mxu0 0.0
      %1431 = vmatprep.subr.mxu0 0.0
      %1432 = vmatpush2.msra.mxu0 0.0
      %1433 = vmatprep.subr.mxu0 0.0
      %1434 = vmatpush2.msra.mxu0 0.0
      %1435 = vmatprep.subr.mxu0 0.0
      %1436 = vmatpush2.msra.mxu0 0.0
      %1437 = vmatprep.subr.mxu0 0.0
      %1438 = vmatpush2.msra.mxu0 0.0
      %1439 = vmatprep.subr.mxu0 0.0
      %1440 = vmatpush2.msra.mxu0 0.0
      %1441 = vmatprep.subr.mxu0 0.0
      %1442 = vmatpush2.msra.mxu0 0.0
      %1443 = vmatprep.subr.mxu0 0.0
      %1444 = vmatpush2.msra.mxu0 0.0
      %1445 = vmatprep.subr.mxu0 0.0
      %1446 = vmatpush2.msra.mxu0 0.0
      %1447 = vmatprep.subr.mxu0 0.0
      %1448 = vmatpush2.msra.mxu0 0.0
      %1449 = vmatprep.subr.mxu0 0.0
      %1450 = vmatpush2.msra.mxu0 0.0
      %1451 = vmatprep.mubr.f32.mxu0 0.0
      %1452 = vmatmul.mubr.f32.gmra.mxu0 %v1147
      %v1453 = vpop.f32.mrf.mxu0
      %v1454 = vadd.f32 0.0, %v1453
      %v1455 = vpop.f32.mrf.mxu0
      %1456 = vdwg.mxu0
      %v1457 = vadd.f32 %v1376, %v1454
      %v1458 = vmax.f32 %v1222, %v1457
      %v1460 = vsel %vm527, %v827, 0
      %1462 = vmatprep.subr.mxu0 0.0
      %1463 = vmatpush1.msra.mxu0 0.0
      %1464 = vmatprep.subr.mxu0 0.0
      %1465 = vmatpush1.msra.mxu0 0.0
      %1466 = vmatprep.subr.mxu0 0.0
      %1467 = vmatpush1.msra.mxu0 0.0
      %1468 = vmatprep.subr.mxu0 0.0
      %1469 = vmatpush1.msra.mxu0 0.0
      %1470 = vmatprep.subr.mxu0 0.0
      %1471 = vmatpush1.msra.mxu0 0.0
      %1472 = vmatprep.subr.mxu0 0.0
      %1473 = vmatpush1.msra.mxu0 0.0
      %1474 = vmatprep.subr.mxu0 0.0
      %1475 = vmatpush1.msra.mxu0 0.0
      %1476 = vmatprep.subr.mxu0 0.0
      %1477 = vmatpush1.msra.mxu0 0.0
      %1478 = vmatprep.subr.mxu0 0.0
      %1479 = vmatpush1.msra.mxu0 0.0
      %1480 = vmatprep.subr.mxu0 0.0
      %1481 = vmatpush1.msra.mxu0 0.0
      %1482 = vmatprep.subr.mxu0 0.0
      %1483 = vmatpush1.msra.mxu0 0.0
      %1484 = vmatprep.subr.mxu0 0.0
      %1485 = vmatpush1.msra.mxu0 0.0
      %1486 = vmatprep.subr.mxu0 0.0
      %1487 = vmatpush1.msra.mxu0 %v993
      %1488 = vmatprep.subr.mxu0 0.0
      %1489 = vmatpush1.msra.mxu0 %v987
      %1490 = vmatprep.subr.mxu0 0.0
      %1491 = vmatpush1.msra.mxu0 %v986
      %1492 = vmatprep.subr.mxu0 0.0
      %1493 = vmatpush1.msra.mxu0 %v985
      %1494 = vmatprep.subr.mxu0 0.0
      %1495 = vmatpush2.msra.mxu0 0.0
      %1496 = vmatprep.subr.mxu0 0.0
      %1497 = vmatpush2.msra.mxu0 0.0
      %1498 = vmatprep.subr.mxu0 0.0
      %1499 = vmatpush2.msra.mxu0 0.0
      %1500 = vmatprep.subr.mxu0 0.0
      %1501 = vmatpush2.msra.mxu0 0.0
      %1502 = vmatprep.subr.mxu0 0.0
      %1503 = vmatpush2.msra.mxu0 0.0
      %1504 = vmatprep.subr.mxu0 0.0
      %1505 = vmatpush2.msra.mxu0 0.0
      %1506 = vmatprep.subr.mxu0 0.0
      %1507 = vmatpush2.msra.mxu0 0.0
      %1508 = vmatprep.subr.mxu0 0.0
      %1509 = vmatpush2.msra.mxu0 0.0
      %1510 = vmatprep.subr.mxu0 0.0
      %1511 = vmatpush2.msra.mxu0 0.0
      %1512 = vmatprep.subr.mxu0 0.0
      %1513 = vmatpush2.msra.mxu0 0.0
      %1514 = vmatprep.subr.mxu0 0.0
      %1515 = vmatpush2.msra.mxu0 0.0
      %1516 = vmatprep.subr.mxu0 0.0
      %1517 = vmatpush2.msra.mxu0 0.0
      %1518 = vmatprep.subr.mxu0 0.0
      %1519 = vmatpush2.msra.mxu0 0.0
      %1520 = vmatprep.subr.mxu0 0.0
      %1521 = vmatpush2.msra.mxu0 0.0
      %1522 = vmatprep.subr.mxu0 0.0
      %1523 = vmatpush2.msra.mxu0 0.0
      %1524 = vmatprep.subr.mxu0 0.0
      %1525 = vmatpush2.msra.mxu0 0.0
      %1526 = vmatprep.mubr.f32.mxu0 0.0
      %1527 = vmatmul.mubr.f32.gmra.mxu0 %v1460
      %v1528 = vpop.f32.mrf.mxu0
      %v1529 = vadd.f32 0.0, %v1528
      %v1530 = vpop.f32.mrf.mxu0
      %1531 = vdwg.mxu0
      %v1533 = vsel %vm527, %v677, 0
      %1535 = vmatprep.subr.mxu0 0.0
      %1536 = vmatpush1.msra.mxu0 0.0
      %1537 = vmatprep.subr.mxu0 0.0
      %1538 = vmatpush1.msra.mxu0 0.0
      %1539 = vmatprep.subr.mxu0 0.0
      %1540 = vmatpush1.msra.mxu0 0.0
      %1541 = vmatprep.subr.mxu0 0.0
      %1542 = vmatpush1.msra.mxu0 0.0
      %1543 = vmatprep.subr.mxu0 0.0
      %1544 = vmatpush1.msra.mxu0 0.0
      %1545 = vmatprep.subr.mxu0 0.0
      %1546 = vmatpush1.msra.mxu0 0.0
      %1547 = vmatprep.subr.mxu0 0.0
      %1548 = vmatpush1.msra.mxu0 0.0
      %1549 = vmatprep.subr.mxu0 0.0
      %1550 = vmatpush1.msra.mxu0 0.0
      %1551 = vmatprep.subr.mxu0 0.0
      %1552 = vmatpush1.msra.mxu0 0.0
      %1553 = vmatprep.subr.mxu0 0.0
      %1554 = vmatpush1.msra.mxu0 0.0
      %1555 = vmatprep.subr.mxu0 0.0
      %1556 = vmatpush1.msra.mxu0 0.0
      %1557 = vmatprep.subr.mxu0 0.0
      %1558 = vmatpush1.msra.mxu0 0.0
      %1559 = vmatprep.subr.mxu0 0.0
      %1560 = vmatpush1.msra.mxu0 %v1069
      %1561 = vmatprep.subr.mxu0 0.0
      %1562 = vmatpush1.msra.mxu0 %v982
      %1563 = vmatprep.subr.mxu0 0.0
      %1564 = vmatpush1.msra.mxu0 %v981
      %1565 = vmatprep.subr.mxu0 0.0
      %1566 = vmatpush1.msra.mxu0 %v980
      %1567 = vmatprep.subr.mxu0 0.0
      %1568 = vmatpush2.msra.mxu0 0.0
      %1569 = vmatprep.subr.mxu0 0.0
      %1570 = vmatpush2.msra.mxu0 0.0
      %1571 = vmatprep.subr.mxu0 0.0
      %1572 = vmatpush2.msra.mxu0 0.0
      %1573 = vmatprep.subr.mxu0 0.0
      %1574 = vmatpush2.msra.mxu0 0.0
      %1575 = vmatprep.subr.mxu0 0.0
      %1576 = vmatpush2.msra.mxu0 0.0
      %1577 = vmatprep.subr.mxu0 0.0
      %1578 = vmatpush2.msra.mxu0 0.0
      %1579 = vmatprep.subr.mxu0 0.0
      %1580 = vmatpush2.msra.mxu0 0.0
      %1581 = vmatprep.subr.mxu0 0.0
      %1582 = vmatpush2.msra.mxu0 0.0
      %1583 = vmatprep.subr.mxu0 0.0
      %1584 = vmatpush2.msra.mxu0 0.0
      %1585 = vmatprep.subr.mxu0 0.0
      %1586 = vmatpush2.msra.mxu0 0.0
      %1587 = vmatprep.subr.mxu0 0.0
      %1588 = vmatpush2.msra.mxu0 0.0
      %1589 = vmatprep.subr.mxu0 0.0
      %1590 = vmatpush2.msra.mxu0 0.0
      %1591 = vmatprep.subr.mxu0 0.0
      %1592 = vmatpush2.msra.mxu0 0.0
      %1593 = vmatprep.subr.mxu0 0.0
      %1594 = vmatpush2.msra.mxu0 0.0
      %1595 = vmatprep.subr.mxu0 0.0
      %1596 = vmatpush2.msra.mxu0 0.0
      %1597 = vmatprep.subr.mxu0 0.0
      %1598 = vmatpush2.msra.mxu0 0.0
      %1599 = vmatprep.mubr.f32.mxu0 0.0
      %1600 = vmatmul.mubr.f32.gmra.mxu0 %v1533
      %v1601 = vpop.f32.mrf.mxu0
      %v1602 = vadd.f32 %v1529, %v1601
      %v1603 = vpop.f32.mrf.mxu0
      %1604 = vdwg.mxu0
      %v1606 = vsel %vm527, %v977, 0
      %1608 = vmatprep.subr.mxu0 0.0
      %1609 = vmatpush1.msra.mxu0 0.0
      %1610 = vmatprep.subr.mxu0 0.0
      %1611 = vmatpush1.msra.mxu0 0.0
      %1612 = vmatprep.subr.mxu0 0.0
      %1613 = vmatpush1.msra.mxu0 0.0
      %1614 = vmatprep.subr.mxu0 0.0
      %1615 = vmatpush1.msra.mxu0 0.0
      %1616 = vmatprep.subr.mxu0 0.0
      %1617 = vmatpush1.msra.mxu0 0.0
      %1618 = vmatprep.subr.mxu0 0.0
      %1619 = vmatpush1.msra.mxu0 0.0
      %1620 = vmatprep.subr.mxu0 0.0
      %1621 = vmatpush1.msra.mxu0 0.0
      %1622 = vmatprep.subr.mxu0 0.0
      %1623 = vmatpush1.msra.mxu0 0.0
      %1624 = vmatprep.subr.mxu0 0.0
      %1625 = vmatpush1.msra.mxu0 0.0
      %1626 = vmatprep.subr.mxu0 0.0
      %1627 = vmatpush1.msra.mxu0 0.0
      %1628 = vmatprep.subr.mxu0 0.0
      %1629 = vmatpush1.msra.mxu0 0.0
      %1630 = vmatprep.subr.mxu0 0.0
      %1631 = vmatpush1.msra.mxu0 0.0
      %1632 = vmatprep.subr.mxu0 0.0
      %1633 = vmatpush1.msra.mxu0 %v1150
      %1634 = vmatprep.subr.mxu0 0.0
      %1635 = vmatpush1.msra.mxu0 %v1144
      %1636 = vmatprep.subr.mxu0 0.0
      %1637 = vmatpush1.msra.mxu0 %v1143
      %1638 = vmatprep.subr.mxu0 0.0
      %1639 = vmatpush1.msra.mxu0 %v1142
      %1640 = vmatprep.subr.mxu0 0.0
      %1641 = vmatpush2.msra.mxu0 0.0
      %1642 = vmatprep.subr.mxu0 0.0
      %1643 = vmatpush2.msra.mxu0 0.0
      %1644 = vmatprep.subr.mxu0 0.0
      %1645 = vmatpush2.msra.mxu0 0.0
      %1646 = vmatprep.subr.mxu0 0.0
      %1647 = vmatpush2.msra.mxu0 0.0
      %1648 = vmatprep.subr.mxu0 0.0
      %1649 = vmatpush2.msra.mxu0 0.0
      %1650 = vmatprep.subr.mxu0 0.0
      %1651 = vmatpush2.msra.mxu0 0.0
      %1652 = vmatprep.subr.mxu0 0.0
      %1653 = vmatpush2.msra.mxu0 0.0
      %1654 = vmatprep.subr.mxu0 0.0
      %1655 = vmatpush2.msra.mxu0 0.0
      %1656 = vmatprep.subr.mxu0 0.0
      %1657 = vmatpush2.msra.mxu0 0.0
      %1658 = vmatprep.subr.mxu0 0.0
      %1659 = vmatpush2.msra.mxu0 0.0
      %1660 = vmatprep.subr.mxu0 0.0
      %1661 = vmatpush2.msra.mxu0 0.0
      %1662 = vmatprep.subr.mxu0 0.0
      %1663 = vmatpush2.msra.mxu0 0.0
      %1664 = vmatprep.subr.mxu0 0.0
      %1665 = vmatpush2.msra.mxu0 0.0
      %1666 = vmatprep.subr.mxu0 0.0
      %1667 = vmatpush2.msra.mxu0 0.0
      %1668 = vmatprep.subr.mxu0 0.0
      %1669 = vmatpush2.msra.mxu0 0.0
      %1670 = vmatprep.subr.mxu0 0.0
      %1671 = vmatpush2.msra.mxu0 0.0
      %1672 = vmatprep.mubr.f32.mxu0 0.0
      %1673 = vmatmul.mubr.f32.gmra.mxu0 %v1606
      %v1674 = vpop.f32.mrf.mxu0
      %v1675 = vadd.f32 0.0, %v1674
      %v1676 = vpop.f32.mrf.mxu0
      %1677 = vdwg.mxu0
      %v1678 = vadd.f32 %v1602, %v1675
      %v1679 = vmax.f32 %v1458, %v1678
      %1680 = vmatprep.subr.mxu0 0.0
      %1681 = vmatpush1.msra.mxu0 0.0
      %1682 = vmatprep.subr.mxu0 0.0
      %1683 = vmatpush1.msra.mxu0 0.0
      %1684 = vmatprep.subr.mxu0 0.0
      %1685 = vmatpush1.msra.mxu0 0.0
      %1686 = vmatprep.subr.mxu0 0.0
      %1687 = vmatpush1.msra.mxu0 0.0
      %1688 = vmatprep.subr.mxu0 0.0
      %1689 = vmatpush1.msra.mxu0 0.0
      %1690 = vmatprep.subr.mxu0 0.0
      %1691 = vmatpush1.msra.mxu0 0.0
      %1692 = vmatprep.subr.mxu0 0.0
      %1693 = vmatpush1.msra.mxu0 0.0
      %1694 = vmatprep.subr.mxu0 0.0
      %1695 = vmatpush1.msra.mxu0 0.0
      %1696 = vmatprep.subr.mxu0 0.0
      %1697 = vmatpush1.msra.mxu0 0.0
      %1698 = vmatprep.subr.mxu0 0.0
      %1699 = vmatpush1.msra.mxu0 0.0
      %1700 = vmatprep.subr.mxu0 0.0
      %1701 = vmatpush1.msra.mxu0 0.0
      %1702 = vmatprep.subr.mxu0 0.0
      %1703 = vmatpush1.msra.mxu0 0.0
      %1704 = vmatprep.subr.mxu0 0.0
      %1705 = vmatpush1.msra.mxu0 %v1234
      %1706 = vmatprep.subr.mxu0 0.0
      %1707 = vmatpush1.msra.mxu0 %v1231
      %1708 = vmatprep.subr.mxu0 0.0
      %1709 = vmatpush1.msra.mxu0 %v1230
      %1710 = vmatprep.subr.mxu0 0.0
      %1711 = vmatpush1.msra.mxu0 %v1229
      %1712 = vmatprep.subr.mxu0 0.0
      %1713 = vmatpush2.msra.mxu0 0.0
      %1714 = vmatprep.subr.mxu0 0.0
      %1715 = vmatpush2.msra.mxu0 0.0
      %1716 = vmatprep.subr.mxu0 0.0
      %1717 = vmatpush2.msra.mxu0 0.0
      %1718 = vmatprep.subr.mxu0 0.0
      %1719 = vmatpush2.msra.mxu0 0.0
      %1720 = vmatprep.subr.mxu0 0.0
      %1721 = vmatpush2.msra.mxu0 0.0
      %1722 = vmatprep.subr.mxu0 0.0
      %1723 = vmatpush2.msra.mxu0 0.0
      %1724 = vmatprep.subr.mxu0 0.0
      %1725 = vmatpush2.msra.mxu0 0.0
      %1726 = vmatprep.subr.mxu0 0.0
      %1727 = vmatpush2.msra.mxu0 0.0
      %1728 = vmatprep.subr.mxu0 0.0
      %1729 = vmatpush2.msra.mxu0 0.0
      %1730 = vmatprep.subr.mxu0 0.0
      %1731 = vmatpush2.msra.mxu0 0.0
      %1732 = vmatprep.subr.mxu0 0.0
      %1733 = vmatpush2.msra.mxu0 0.0
      %1734 = vmatprep.subr.mxu0 0.0
      %1735 = vmatpush2.msra.mxu0 0.0
      %1736 = vmatprep.subr.mxu0 0.0
      %1737 = vmatpush2.msra.mxu0 0.0
      %1738 = vmatprep.subr.mxu0 0.0
      %1739 = vmatpush2.msra.mxu0 0.0
      %1740 = vmatprep.subr.mxu0 0.0
      %1741 = vmatpush2.msra.mxu0 0.0
      %1742 = vmatprep.subr.mxu0 0.0
      %1743 = vmatpush2.msra.mxu0 0.0
      %1744 = vmatprep.mubr.f32.mxu0 0.0
      %1745 = vmatmul.mubr.f32.gmra.mxu0 %v1460
      %v1746 = vpop.f32.mrf.mxu0
      %v1747 = vadd.f32 0.0, %v1746
      %v1748 = vpop.f32.mrf.mxu0
      %1749 = vdwg.mxu0
      %1750 = vmatprep.subr.mxu0 0.0
      %1751 = vmatpush1.msra.mxu0 0.0
      %1752 = vmatprep.subr.mxu0 0.0
      %1753 = vmatpush1.msra.mxu0 0.0
      %1754 = vmatprep.subr.mxu0 0.0
      %1755 = vmatpush1.msra.mxu0 0.0
      %1756 = vmatprep.subr.mxu0 0.0
      %1757 = vmatpush1.msra.mxu0 0.0
      %1758 = vmatprep.subr.mxu0 0.0
      %1759 = vmatpush1.msra.mxu0 0.0
      %1760 = vmatprep.subr.mxu0 0.0
      %1761 = vmatpush1.msra.mxu0 0.0
      %1762 = vmatprep.subr.mxu0 0.0
      %1763 = vmatpush1.msra.mxu0 0.0
      %1764 = vmatprep.subr.mxu0 0.0
      %1765 = vmatpush1.msra.mxu0 0.0
      %1766 = vmatprep.subr.mxu0 0.0
      %1767 = vmatpush1.msra.mxu0 0.0
      %1768 = vmatprep.subr.mxu0 0.0
      %1769 = vmatpush1.msra.mxu0 0.0
      %1770 = vmatprep.subr.mxu0 0.0
      %1771 = vmatpush1.msra.mxu0 0.0
      %1772 = vmatprep.subr.mxu0 0.0
      %1773 = vmatpush1.msra.mxu0 0.0
      %1774 = vmatprep.subr.mxu0 0.0
      %1775 = vmatpush1.msra.mxu0 %v1307
      %1776 = vmatprep.subr.mxu0 0.0
      %1777 = vmatpush1.msra.mxu0 %v1226
      %1778 = vmatprep.subr.mxu0 0.0
      %1779 = vmatpush1.msra.mxu0 %v1225
      %1780 = vmatprep.subr.mxu0 0.0
      %1781 = vmatpush1.msra.mxu0 %v1224
      %1782 = vmatprep.subr.mxu0 0.0
      %1783 = vmatpush2.msra.mxu0 0.0
      %1784 = vmatprep.subr.mxu0 0.0
      %1785 = vmatpush2.msra.mxu0 0.0
      %1786 = vmatprep.subr.mxu0 0.0
      %1787 = vmatpush2.msra.mxu0 0.0
      %1788 = vmatprep.subr.mxu0 0.0
      %1789 = vmatpush2.msra.mxu0 0.0
      %1790 = vmatprep.subr.mxu0 0.0
      %1791 = vmatpush2.msra.mxu0 0.0
      %1792 = vmatprep.subr.mxu0 0.0
      %1793 = vmatpush2.msra.mxu0 0.0
      %1794 = vmatprep.subr.mxu0 0.0
      %1795 = vmatpush2.msra.mxu0 0.0
      %1796 = vmatprep.subr.mxu0 0.0
      %1797 = vmatpush2.msra.mxu0 0.0
      %1798 = vmatprep.subr.mxu0 0.0
      %1799 = vmatpush2.msra.mxu0 0.0
      %1800 = vmatprep.subr.mxu0 0.0
      %1801 = vmatpush2.msra.mxu0 0.0
      %1802 = vmatprep.subr.mxu0 0.0
      %1803 = vmatpush2.msra.mxu0 0.0
      %1804 = vmatprep.subr.mxu0 0.0
      %1805 = vmatpush2.msra.mxu0 0.0
      %1806 = vmatprep.subr.mxu0 0.0
      %1807 = vmatpush2.msra.mxu0 0.0
      %1808 = vmatprep.subr.mxu0 0.0
      %1809 = vmatpush2.msra.mxu0 0.0
      %1810 = vmatprep.subr.mxu0 0.0
      %1811 = vmatpush2.msra.mxu0 0.0
      %1812 = vmatprep.subr.mxu0 0.0
      %1813 = vmatpush2.msra.mxu0 0.0
      %1814 = vmatprep.mubr.f32.mxu0 0.0
      %1815 = vmatmul.mubr.f32.gmra.mxu0 %v1533
      %v1816 = vpop.f32.mrf.mxu0
      %v1817 = vadd.f32 %v1747, %v1816
      %v1818 = vpop.f32.mrf.mxu0
      %1819 = vdwg.mxu0
      %1820 = vmatprep.subr.mxu0 0.0
      %1821 = vmatpush1.msra.mxu0 0.0
      %1822 = vmatprep.subr.mxu0 0.0
      %1823 = vmatpush1.msra.mxu0 0.0
      %1824 = vmatprep.subr.mxu0 0.0
      %1825 = vmatpush1.msra.mxu0 0.0
      %1826 = vmatprep.subr.mxu0 0.0
      %1827 = vmatpush1.msra.mxu0 0.0
      %1828 = vmatprep.subr.mxu0 0.0
      %1829 = vmatpush1.msra.mxu0 0.0
      %1830 = vmatprep.subr.mxu0 0.0
      %1831 = vmatpush1.msra.mxu0 0.0
      %1832 = vmatprep.subr.mxu0 0.0
      %1833 = vmatpush1.msra.mxu0 0.0
      %1834 = vmatprep.subr.mxu0 0.0
      %1835 = vmatpush1.msra.mxu0 0.0
      %1836 = vmatprep.subr.mxu0 0.0
      %1837 = vmatpush1.msra.mxu0 0.0
      %1838 = vmatprep.subr.mxu0 0.0
      %1839 = vmatpush1.msra.mxu0 0.0
      %1840 = vmatprep.subr.mxu0 0.0
      %1841 = vmatpush1.msra.mxu0 0.0
      %1842 = vmatprep.subr.mxu0 0.0
      %1843 = vmatpush1.msra.mxu0 0.0
      %1844 = vmatprep.subr.mxu0 0.0
      %1845 = vmatpush1.msra.mxu0 %v1385
      %1846 = vmatprep.subr.mxu0 0.0
      %1847 = vmatpush1.msra.mxu0 %v1382
      %1848 = vmatprep.subr.mxu0 0.0
      %1849 = vmatpush1.msra.mxu0 %v1381
      %1850 = vmatprep.subr.mxu0 0.0
      %1851 = vmatpush1.msra.mxu0 %v1380
      %1852 = vmatprep.subr.mxu0 0.0
      %1853 = vmatpush2.msra.mxu0 0.0
      %1854 = vmatprep.subr.mxu0 0.0
      %1855 = vmatpush2.msra.mxu0 0.0
      %1856 = vmatprep.subr.mxu0 0.0
      %1857 = vmatpush2.msra.mxu0 0.0
      %1858 = vmatprep.subr.mxu0 0.0
      %1859 = vmatpush2.msra.mxu0 0.0
      %1860 = vmatprep.subr.mxu0 0.0
      %1861 = vmatpush2.msra.mxu0 0.0
      %1862 = vmatprep.subr.mxu0 0.0
      %1863 = vmatpush2.msra.mxu0 0.0
      %1864 = vmatprep.subr.mxu0 0.0
      %1865 = vmatpush2.msra.mxu0 0.0
      %1866 = vmatprep.subr.mxu0 0.0
      %1867 = vmatpush2.msra.mxu0 0.0
      %1868 = vmatprep.subr.mxu0 0.0
      %1869 = vmatpush2.msra.mxu0 0.0
      %1870 = vmatprep.subr.mxu0 0.0
      %1871 = vmatpush2.msra.mxu0 0.0
      %1872 = vmatprep.subr.mxu0 0.0
      %1873 = vmatpush2.msra.mxu0 0.0
      %1874 = vmatprep.subr.mxu0 0.0
      %1875 = vmatpush2.msra.mxu0 0.0
      %1876 = vmatprep.subr.mxu0 0.0
      %1877 = vmatpush2.msra.mxu0 0.0
      %1878 = vmatprep.subr.mxu0 0.0
      %1879 = vmatpush2.msra.mxu0 0.0
      %1880 = vmatprep.subr.mxu0 0.0
      %1881 = vmatpush2.msra.mxu0 0.0
      %1882 = vmatprep.subr.mxu0 0.0
      %1883 = vmatpush2.msra.mxu0 0.0
      %1884 = vmatprep.mubr.f32.mxu0 0.0
      %1885 = vmatmul.mubr.f32.gmra.mxu0 %v1606
      %v1886 = vpop.f32.mrf.mxu0
      %v1887 = vadd.f32 0.0, %v1886
      %v1888 = vpop.f32.mrf.mxu0
      %1889 = vdwg.mxu0
      %v1890 = vadd.f32 %v1817, %v1887
      %v1891 = vmax.f32 %v1679, %v1890
      %v1892 = vld [vmem:[%s3] sm:$0x1]
      %v1894 = vlaneseq
      %v1895 = vshrl.u32 %v1894, 7
      %v1896 = vsub.s32 0, %v1895
      %v1897 = vrot.slane %v1892, %v1896
      %v1899 = vadd.f32 %v1891, %v1897
      %v1900 = vmax.f32 %v1899, 0.0
      %v1901 = vld [vmem:[%s4] sm:$0x3]
      %vm1902 = vcmask 39936
      %v1904 = vsel %vm1902, %v1901, 0
      %vm1906 = vcmask 1044480
      %v1908 = vsel %vm1906, %v1900, 0
      %1910 = vmatprep.subr.mxu0 0.0
      %1911 = vmatpush1.msra.mxu0 0.0
      %1912 = vmatprep.subr.mxu0 0.0
      %1913 = vmatpush1.msra.mxu0 0.0
      %1914 = vmatprep.subr.mxu0 0.0
      %1915 = vmatpush1.msra.mxu0 0.0
      %1916 = vmatprep.subr.mxu0 0.0
      %1917 = vmatpush1.msra.mxu0 0.0
      %1918 = vmatprep.subr.mxu0 0.0
      %1919 = vmatpush1.msra.mxu0 0.0
      %1920 = vmatprep.subr.mxu0 0.0
      %1921 = vmatpush1.msra.mxu0 0.0
      %1922 = vmatprep.subr.mxu0 0.0
      %1923 = vmatpush1.msra.mxu0 0.0
      %1924 = vmatprep.subr.mxu0 0.0
      %1925 = vmatpush1.msra.mxu0 0.0
      %1926 = vmatprep.subr.mxu0 0.0
      %1927 = vmatpush1.msra.mxu0 0.0
      %1928 = vmatprep.subr.mxu0 0.0
      %1929 = vmatpush1.msra.mxu0 0.0
      %1930 = vmatprep.subr.mxu0 0.0
      %1931 = vmatpush1.msra.mxu0 0.0
      %1932 = vmatprep.subr.mxu0 0.0
      %1933 = vmatpush1.msra.mxu0 0.0
      %1934 = vmatprep.subr.mxu0 0.0
      %1935 = vmatpush1.msra.mxu0 0.0
      %1936 = vmatprep.subr.mxu0 0.0
      %1937 = vmatpush1.msra.mxu0 0.0
      %1938 = vmatprep.subr.mxu0 0.0
      %1939 = vmatpush1.msra.mxu0 0.0
      %1940 = vmatprep.subr.mxu0 0.0
      %1941 = vmatpush1.msra.mxu0 %v1908
      %1942 = vmatprep.subr.mxu0 0.0
      %1943 = vmatpush2.msra.mxu0 0.0
      %1944 = vmatprep.subr.mxu0 0.0
      %1945 = vmatpush2.msra.mxu0 0.0
      %1946 = vmatprep.subr.mxu0 0.0
      %1947 = vmatpush2.msra.mxu0 0.0
      %1948 = vmatprep.subr.mxu0 0.0
      %1949 = vmatpush2.msra.mxu0 0.0
      %1950 = vmatprep.subr.mxu0 0.0
      %1951 = vmatpush2.msra.mxu0 0.0
      %1952 = vmatprep.subr.mxu0 0.0
      %1953 = vmatpush2.msra.mxu0 0.0
      %1954 = vmatprep.subr.mxu0 0.0
      %1955 = vmatpush2.msra.mxu0 0.0
      %1956 = vmatprep.subr.mxu0 0.0
      %1957 = vmatpush2.msra.mxu0 0.0
      %1958 = vmatprep.subr.mxu0 0.0
      %1959 = vmatpush2.msra.mxu0 0.0
      %1960 = vmatprep.subr.mxu0 0.0
      %1961 = vmatpush2.msra.mxu0 0.0
      %1962 = vmatprep.subr.mxu0 0.0
      %1963 = vmatpush2.msra.mxu0 0.0
      %1964 = vmatprep.subr.mxu0 0.0
      %1965 = vmatpush2.msra.mxu0 0.0
      %1966 = vmatprep.subr.mxu0 0.0
      %1967 = vmatpush2.msra.mxu0 0.0
      %1968 = vmatprep.subr.mxu0 0.0
      %1969 = vmatpush2.msra.mxu0 0.0
      %1970 = vmatprep.subr.mxu0 0.0
      %1971 = vmatpush2.msra.mxu0 0.0
      %1972 = vmatprep.subr.mxu0 0.0
      %1973 = vmatpush2.msra.mxu0 0.0
      %1974 = vmatprep.mubr.f32.mxu0 0.0
      %1975 = vmatmul.mubr.f32.gmra.mxu0 %v1904
      %v1976 = vpop.f32.mrf.mxu0
      %v1977 = vadd.f32 0.0, %v1976
      %v1978 = vpop.f32.mrf.mxu0
      %1979 = vdwg.mxu0
      %s1980 = scalar_lea.vmem %s4, 2
      %v1981 = vld [vmem:[%s1980] sm:$0x3]
      %v1983 = vsel %vm1902, %v1981, 0
      %1985 = vmatprep.subr.mxu0 0.0
      %1986 = vmatpush1.msra.mxu0 0.0
      %1987 = vmatprep.subr.mxu0 0.0
      %1988 = vmatpush1.msra.mxu0 0.0
      %1989 = vmatprep.subr.mxu0 0.0
      %1990 = vmatpush1.msra.mxu0 0.0
      %1991 = vmatprep.subr.mxu0 0.0
      %1992 = vmatpush1.msra.mxu0 0.0
      %1993 = vmatprep.subr.mxu0 0.0
      %1994 = vmatpush1.msra.mxu0 0.0
      %1995 = vmatprep.subr.mxu0 0.0
      %1996 = vmatpush1.msra.mxu0 0.0
      %1997 = vmatprep.subr.mxu0 0.0
      %1998 = vmatpush1.msra.mxu0 0.0
      %1999 = vmatprep.subr.mxu0 0.0
      %2000 = vmatpush1.msra.mxu0 0.0
      %2001 = vmatprep.subr.mxu0 0.0
      %2002 = vmatpush1.msra.mxu0 0.0
      %2003 = vmatprep.subr.mxu0 0.0
      %2004 = vmatpush1.msra.mxu0 0.0
      %2005 = vmatprep.subr.mxu0 0.0
      %2006 = vmatpush1.msra.mxu0 0.0
      %2007 = vmatprep.subr.mxu0 0.0
      %2008 = vmatpush1.msra.mxu0 0.0
      %2009 = vmatprep.subr.mxu0 0.0
      %2010 = vmatpush1.msra.mxu0 0.0
      %2011 = vmatprep.subr.mxu0 0.0
      %2012 = vmatpush1.msra.mxu0 0.0
      %2013 = vmatprep.subr.mxu0 0.0
      %2014 = vmatpush1.msra.mxu0 0.0
      %2015 = vmatprep.subr.mxu0 0.0
      %2016 = vmatpush1.msra.mxu0 %v1908
      %2017 = vmatprep.subr.mxu0 0.0
      %2018 = vmatpush2.msra.mxu0 0.0
      %2019 = vmatprep.subr.mxu0 0.0
      %2020 = vmatpush2.msra.mxu0 0.0
      %2021 = vmatprep.subr.mxu0 0.0
      %2022 = vmatpush2.msra.mxu0 0.0
      %2023 = vmatprep.subr.mxu0 0.0
      %2024 = vmatpush2.msra.mxu0 0.0
      %2025 = vmatprep.subr.mxu0 0.0
      %2026 = vmatpush2.msra.mxu0 0.0
      %2027 = vmatprep.subr.mxu0 0.0
      %2028 = vmatpush2.msra.mxu0 0.0
      %2029 = vmatprep.subr.mxu0 0.0
      %2030 = vmatpush2.msra.mxu0 0.0
      %2031 = vmatprep.subr.mxu0 0.0
      %2032 = vmatpush2.msra.mxu0 0.0
      %2033 = vmatprep.subr.mxu0 0.0
      %2034 = vmatpush2.msra.mxu0 0.0
      %2035 = vmatprep.subr.mxu0 0.0
      %2036 = vmatpush2.msra.mxu0 0.0
      %2037 = vmatprep.subr.mxu0 0.0
      %2038 = vmatpush2.msra.mxu0 0.0
      %2039 = vmatprep.subr.mxu0 0.0
      %2040 = vmatpush2.msra.mxu0 0.0
      %2041 = vmatprep.subr.mxu0 0.0
      %2042 = vmatpush2.msra.mxu0 0.0
      %2043 = vmatprep.subr.mxu0 0.0
      %2044 = vmatpush2.msra.mxu0 0.0
      %2045 = vmatprep.subr.mxu0 0.0
      %2046 = vmatpush2.msra.mxu0 0.0
      %2047 = vmatprep.subr.mxu0 0.0
      %2048 = vmatpush2.msra.mxu0 0.0
      %2049 = vmatprep.mubr.f32.mxu0 0.0
      %2050 = vmatmul.mubr.f32.gmra.mxu0 %v1983
      %v2051 = vpop.f32.mrf.mxu0
      %v2052 = vadd.f32 0.0, %v2051
      %v2053 = vpop.f32.mrf.mxu0
      %2054 = vdwg.mxu0
      %s2055 = scalar_lea.vmem %s4, 4
      %v2056 = vld [vmem:[%s2055] sm:$0x3]
      %v2058 = vsel %vm1902, %v2056, 0
      %2060 = vmatprep.subr.mxu0 0.0
      %2061 = vmatpush1.msra.mxu0 0.0
      %2062 = vmatprep.subr.mxu0 0.0
      %2063 = vmatpush1.msra.mxu0 0.0
      %2064 = vmatprep.subr.mxu0 0.0
      %2065 = vmatpush1.msra.mxu0 0.0
      %2066 = vmatprep.subr.mxu0 0.0
      %2067 = vmatpush1.msra.mxu0 0.0
      %2068 = vmatprep.subr.mxu0 0.0
      %2069 = vmatpush1.msra.mxu0 0.0
      %2070 = vmatprep.subr.mxu0 0.0
      %2071 = vmatpush1.msra.mxu0 0.0
      %2072 = vmatprep.subr.mxu0 0.0
      %2073 = vmatpush1.msra.mxu0 0.0
      %2074 = vmatprep.subr.mxu0 0.0
      %2075 = vmatpush1.msra.mxu0 0.0
      %2076 = vmatprep.subr.mxu0 0.0
      %2077 = vmatpush1.msra.mxu0 0.0
      %2078 = vmatprep.subr.mxu0 0.0
      %2079 = vmatpush1.msra.mxu0 0.0
      %2080 = vmatprep.subr.mxu0 0.0
      %2081 = vmatpush1.msra.mxu0 0.0
      %2082 = vmatprep.subr.mxu0 0.0
      %2083 = vmatpush1.msra.mxu0 0.0
      %2084 = vmatprep.subr.mxu0 0.0
      %2085 = vmatpush1.msra.mxu0 0.0
      %2086 = vmatprep.subr.mxu0 0.0
      %2087 = vmatpush1.msra.mxu0 0.0
      %2088 = vmatprep.subr.mxu0 0.0
      %2089 = vmatpush1.msra.mxu0 0.0
      %2090 = vmatprep.subr.mxu0 0.0
      %2091 = vmatpush1.msra.mxu0 %v1908
      %2092 = vmatprep.subr.mxu0 0.0
      %2093 = vmatpush2.msra.mxu0 0.0
      %2094 = vmatprep.subr.mxu0 0.0
      %2095 = vmatpush2.msra.mxu0 0.0
      %2096 = vmatprep.subr.mxu0 0.0
      %2097 = vmatpush2.msra.mxu0 0.0
      %2098 = vmatprep.subr.mxu0 0.0
      %2099 = vmatpush2.msra.mxu0 0.0
      %2100 = vmatprep.subr.mxu0 0.0
      %2101 = vmatpush2.msra.mxu0 0.0
      %2102 = vmatprep.subr.mxu0 0.0
      %2103 = vmatpush2.msra.mxu0 0.0
      %2104 = vmatprep.subr.mxu0 0.0
      %2105 = vmatpush2.msra.mxu0 0.0
      %2106 = vmatprep.subr.mxu0 0.0
      %2107 = vmatpush2.msra.mxu0 0.0
      %2108 = vmatprep.subr.mxu0 0.0
      %2109 = vmatpush2.msra.mxu0 0.0
      %2110 = vmatprep.subr.mxu0 0.0
      %2111 = vmatpush2.msra.mxu0 0.0
      %2112 = vmatprep.subr.mxu0 0.0
      %2113 = vmatpush2.msra.mxu0 0.0
      %2114 = vmatprep.subr.mxu0 0.0
      %2115 = vmatpush2.msra.mxu0 0.0
      %2116 = vmatprep.subr.mxu0 0.0
      %2117 = vmatpush2.msra.mxu0 0.0
      %2118 = vmatprep.subr.mxu0 0.0
      %2119 = vmatpush2.msra.mxu0 0.0
      %2120 = vmatprep.subr.mxu0 0.0
      %2121 = vmatpush2.msra.mxu0 0.0
      %2122 = vmatprep.subr.mxu0 0.0
      %2123 = vmatpush2.msra.mxu0 0.0
      %2124 = vmatprep.mubr.f32.mxu0 0.0
      %2125 = vmatmul.mubr.f32.gmra.mxu0 %v2058
      %v2126 = vpop.f32.mrf.mxu0
      %v2127 = vadd.f32 0.0, %v2126
      %v2128 = vpop.f32.mrf.mxu0
      %2129 = vdwg.mxu0
      %s2130 = scalar_lea.vmem %s4, 6
      %v2131 = vld [vmem:[%s2130] sm:$0x3]
      %v2133 = vsel %vm1902, %v2131, 0
      %2135 = vmatprep.subr.mxu0 0.0
      %2136 = vmatpush1.msra.mxu0 0.0
      %2137 = vmatprep.subr.mxu0 0.0
      %2138 = vmatpush1.msra.mxu0 0.0
      %2139 = vmatprep.subr.mxu0 0.0
      %2140 = vmatpush1.msra.mxu0 0.0
      %2141 = vmatprep.subr.mxu0 0.0
      %2142 = vmatpush1.msra.mxu0 0.0
      %2143 = vmatprep.subr.mxu0 0.0
      %2144 = vmatpush1.msra.mxu0 0.0
      %2145 = vmatprep.subr.mxu0 0.0
      %2146 = vmatpush1.msra.mxu0 0.0
      %2147 = vmatprep.subr.mxu0 0.0
      %2148 = vmatpush1.msra.mxu0 0.0
      %2149 = vmatprep.subr.mxu0 0.0
      %2150 = vmatpush1.msra.mxu0 0.0
      %2151 = vmatprep.subr.mxu0 0.0
      %2152 = vmatpush1.msra.mxu0 0.0
      %2153 = vmatprep.subr.mxu0 0.0
      %2154 = vmatpush1.msra.mxu0 0.0
      %2155 = vmatprep.subr.mxu0 0.0
      %2156 = vmatpush1.msra.mxu0 0.0
      %2157 = vmatprep.subr.mxu0 0.0
      %2158 = vmatpush1.msra.mxu0 0.0
      %2159 = vmatprep.subr.mxu0 0.0
      %2160 = vmatpush1.msra.mxu0 0.0
      %2161 = vmatprep.subr.mxu0 0.0
      %2162 = vmatpush1.msra.mxu0 0.0
      %2163 = vmatprep.subr.mxu0 0.0
      %2164 = vmatpush1.msra.mxu0 0.0
      %2165 = vmatprep.subr.mxu0 0.0
      %2166 = vmatpush1.msra.mxu0 %v1908
      %2167 = vmatprep.subr.mxu0 0.0
      %2168 = vmatpush2.msra.mxu0 0.0
      %2169 = vmatprep.subr.mxu0 0.0
      %2170 = vmatpush2.msra.mxu0 0.0
      %2171 = vmatprep.subr.mxu0 0.0
      %2172 = vmatpush2.msra.mxu0 0.0
      %2173 = vmatprep.subr.mxu0 0.0
      %2174 = vmatpush2.msra.mxu0 0.0
      %2175 = vmatprep.subr.mxu0 0.0
      %2176 = vmatpush2.msra.mxu0 0.0
      %2177 = vmatprep.subr.mxu0 0.0
      %2178 = vmatpush2.msra.mxu0 0.0
      %2179 = vmatprep.subr.mxu0 0.0
      %2180 = vmatpush2.msra.mxu0 0.0
      %2181 = vmatprep.subr.mxu0 0.0
      %2182 = vmatpush2.msra.mxu0 0.0
      %2183 = vmatprep.subr.mxu0 0.0
      %2184 = vmatpush2.msra.mxu0 0.0
      %2185 = vmatprep.subr.mxu0 0.0
      %2186 = vmatpush2.msra.mxu0 0.0
      %2187 = vmatprep.subr.mxu0 0.0
      %2188 = vmatpush2.msra.mxu0 0.0
      %2189 = vmatprep.subr.mxu0 0.0
      %2190 = vmatpush2.msra.mxu0 0.0
      %2191 = vmatprep.subr.mxu0 0.0
      %2192 = vmatpush2.msra.mxu0 0.0
      %2193 = vmatprep.subr.mxu0 0.0
      %2194 = vmatpush2.msra.mxu0 0.0
      %2195 = vmatprep.subr.mxu0 0.0
      %2196 = vmatpush2.msra.mxu0 0.0
      %2197 = vmatprep.subr.mxu0 0.0
      %2198 = vmatpush2.msra.mxu0 0.0
      %2199 = vmatprep.mubr.f32.mxu0 0.0
      %2200 = vmatmul.mubr.f32.gmra.mxu0 %v2133
      %v2201 = vpop.f32.mrf.mxu0
      %v2202 = vadd.f32 0.0, %v2201
      %v2203 = vpop.f32.mrf.mxu0
      %2204 = vdwg.mxu0
      %s2205 = scalar_lea.vmem %s4, 8
      %v2206 = vld [vmem:[%s2205] sm:$0x3]
      %v2208 = vsel %vm1902, %v2206, 0
      %2210 = vmatprep.subr.mxu0 0.0
      %2211 = vmatpush1.msra.mxu0 0.0
      %2212 = vmatprep.subr.mxu0 0.0
      %2213 = vmatpush1.msra.mxu0 0.0
      %2214 = vmatprep.subr.mxu0 0.0
      %2215 = vmatpush1.msra.mxu0 0.0
      %2216 = vmatprep.subr.mxu0 0.0
      %2217 = vmatpush1.msra.mxu0 0.0
      %2218 = vmatprep.subr.mxu0 0.0
      %2219 = vmatpush1.msra.mxu0 0.0
      %2220 = vmatprep.subr.mxu0 0.0
      %2221 = vmatpush1.msra.mxu0 0.0
      %2222 = vmatprep.subr.mxu0 0.0
      %2223 = vmatpush1.msra.mxu0 0.0
      %2224 = vmatprep.subr.mxu0 0.0
      %2225 = vmatpush1.msra.mxu0 0.0
      %2226 = vmatprep.subr.mxu0 0.0
      %2227 = vmatpush1.msra.mxu0 0.0
      %2228 = vmatprep.subr.mxu0 0.0
      %2229 = vmatpush1.msra.mxu0 0.0
      %2230 = vmatprep.subr.mxu0 0.0
      %2231 = vmatpush1.msra.mxu0 0.0
      %2232 = vmatprep.subr.mxu0 0.0
      %2233 = vmatpush1.msra.mxu0 0.0
      %2234 = vmatprep.subr.mxu0 0.0
      %2235 = vmatpush1.msra.mxu0 0.0
      %2236 = vmatprep.subr.mxu0 0.0
      %2237 = vmatpush1.msra.mxu0 0.0
      %2238 = vmatprep.subr.mxu0 0.0
      %2239 = vmatpush1.msra.mxu0 0.0
      %2240 = vmatprep.subr.mxu0 0.0
      %2241 = vmatpush1.msra.mxu0 %v1908
      %2242 = vmatprep.subr.mxu0 0.0
      %2243 = vmatpush2.msra.mxu0 0.0
      %2244 = vmatprep.subr.mxu0 0.0
      %2245 = vmatpush2.msra.mxu0 0.0
      %2246 = vmatprep.subr.mxu0 0.0
      %2247 = vmatpush2.msra.mxu0 0.0
      %2248 = vmatprep.subr.mxu0 0.0
      %2249 = vmatpush2.msra.mxu0 0.0
      %2250 = vmatprep.subr.mxu0 0.0
      %2251 = vmatpush2.msra.mxu0 0.0
      %2252 = vmatprep.subr.mxu0 0.0
      %2253 = vmatpush2.msra.mxu0 0.0
      %2254 = vmatprep.subr.mxu0 0.0
      %2255 = vmatpush2.msra.mxu0 0.0
      %2256 = vmatprep.subr.mxu0 0.0
      %2257 = vmatpush2.msra.mxu0 0.0
      %2258 = vmatprep.subr.mxu0 0.0
      %2259 = vmatpush2.msra.mxu0 0.0
      %2260 = vmatprep.subr.mxu0 0.0
      %2261 = vmatpush2.msra.mxu0 0.0
      %2262 = vmatprep.subr.mxu0 0.0
      %2263 = vmatpush2.msra.mxu0 0.0
      %2264 = vmatprep.subr.mxu0 0.0
      %2265 = vmatpush2.msra.mxu0 0.0
      %2266 = vmatprep.subr.mxu0 0.0
      %2267 = vmatpush2.msra.mxu0 0.0
      %2268 = vmatprep.subr.mxu0 0.0
      %2269 = vmatpush2.msra.mxu0 0.0
      %2270 = vmatprep.subr.mxu0 0.0
      %2271 = vmatpush2.msra.mxu0 0.0
      %2272 = vmatprep.subr.mxu0 0.0
      %2273 = vmatpush2.msra.mxu0 0.0
      %2274 = vmatprep.mubr.f32.mxu0 0.0
      %2275 = vmatmul.mubr.f32.gmra.mxu0 %v2208
      %v2276 = vpop.f32.mrf.mxu0
      %v2277 = vadd.f32 0.0, %v2276
      %v2278 = vpop.f32.mrf.mxu0
      %2279 = vdwg.mxu0
      %s2280 = scalar_lea.vmem %s4, 10
      %v2281 = vld [vmem:[%s2280] sm:$0x3]
      %v2283 = vsel %vm1902, %v2281, 0
      %2285 = vmatprep.subr.mxu0 0.0
      %2286 = vmatpush1.msra.mxu0 0.0
      %2287 = vmatprep.subr.mxu0 0.0
      %2288 = vmatpush1.msra.mxu0 0.0
      %2289 = vmatprep.subr.mxu0 0.0
      %2290 = vmatpush1.msra.mxu0 0.0
      %2291 = vmatprep.subr.mxu0 0.0
      %2292 = vmatpush1.msra.mxu0 0.0
      %2293 = vmatprep.subr.mxu0 0.0
      %2294 = vmatpush1.msra.mxu0 0.0
      %2295 = vmatprep.subr.mxu0 0.0
      %2296 = vmatpush1.msra.mxu0 0.0
      %2297 = vmatprep.subr.mxu0 0.0
      %2298 = vmatpush1.msra.mxu0 0.0
      %2299 = vmatprep.subr.mxu0 0.0
      %2300 = vmatpush1.msra.mxu0 0.0
      %2301 = vmatprep.subr.mxu0 0.0
      %2302 = vmatpush1.msra.mxu0 0.0
      %2303 = vmatprep.subr.mxu0 0.0
      %2304 = vmatpush1.msra.mxu0 0.0
      %2305 = vmatprep.subr.mxu0 0.0
      %2306 = vmatpush1.msra.mxu0 0.0
      %2307 = vmatprep.subr.mxu0 0.0
      %2308 = vmatpush1.msra.mxu0 0.0
      %2309 = vmatprep.subr.mxu0 0.0
      %2310 = vmatpush1.msra.mxu0 0.0
      %2311 = vmatprep.subr.mxu0 0.0
      %2312 = vmatpush1.msra.mxu0 0.0
      %2313 = vmatprep.subr.mxu0 0.0
      %2314 = vmatpush1.msra.mxu0 0.0
      %2315 = vmatprep.subr.mxu0 0.0
      %2316 = vmatpush1.msra.mxu0 %v1908
      %2317 = vmatprep.subr.mxu0 0.0
      %2318 = vmatpush2.msra.mxu0 0.0
      %2319 = vmatprep.subr.mxu0 0.0
      %2320 = vmatpush2.msra.mxu0 0.0
      %2321 = vmatprep.subr.mxu0 0.0
      %2322 = vmatpush2.msra.mxu0 0.0
      %2323 = vmatprep.subr.mxu0 0.0
      %2324 = vmatpush2.msra.mxu0 0.0
      %2325 = vmatprep.subr.mxu0 0.0
      %2326 = vmatpush2.msra.mxu0 0.0
      %2327 = vmatprep.subr.mxu0 0.0
      %2328 = vmatpush2.msra.mxu0 0.0
      %2329 = vmatprep.subr.mxu0 0.0
      %2330 = vmatpush2.msra.mxu0 0.0
      %2331 = vmatprep.subr.mxu0 0.0
      %2332 = vmatpush2.msra.mxu0 0.0
      %2333 = vmatprep.subr.mxu0 0.0
      %2334 = vmatpush2.msra.mxu0 0.0
      %2335 = vmatprep.subr.mxu0 0.0
      %2336 = vmatpush2.msra.mxu0 0.0
      %2337 = vmatprep.subr.mxu0 0.0
      %2338 = vmatpush2.msra.mxu0 0.0
      %2339 = vmatprep.subr.mxu0 0.0
      %2340 = vmatpush2.msra.mxu0 0.0
      %2341 = vmatprep.subr.mxu0 0.0
      %2342 = vmatpush2.msra.mxu0 0.0
      %2343 = vmatprep.subr.mxu0 0.0
      %2344 = vmatpush2.msra.mxu0 0.0
      %2345 = vmatprep.subr.mxu0 0.0
      %2346 = vmatpush2.msra.mxu0 0.0
      %2347 = vmatprep.subr.mxu0 0.0
      %2348 = vmatpush2.msra.mxu0 0.0
      %2349 = vmatprep.mubr.f32.mxu0 0.0
      %2350 = vmatmul.mubr.f32.gmra.mxu0 %v2283
      %v2351 = vpop.f32.mrf.mxu0
      %v2352 = vadd.f32 0.0, %v2351
      %v2353 = vpop.f32.mrf.mxu0
      %2354 = vdwg.mxu0
      %v2355 = vld [vmem:[%s5] sm:$0xff]
      %v2356 = vld [vmem:[%s5 + $0x8] sm:$0xff]
      %v2357 = vld [vmem:[%s5 + $0x10] sm:$0xff]
      %v2358 = vld [vmem:[%s5 + $0x18] sm:$0xff]
      %v2359 = vld [vmem:[%s5 + $0x20] sm:$0xff]
      %v2360 = vld [vmem:[%s5 + $0x28] sm:$0xff]
      %v2361 = vld [vmem:[%s5 + $0x30] sm:$0xff]
      %v2362 = vld [vmem:[%s5 + $0x38] sm:$0xff]
      %v2363 = vld [vmem:[%s5 + $0x40] sm:$0xff]
      %v2364 = vld [vmem:[%s5 + $0x48] sm:$0xff]
      %s2365 = scalar_lea.vmem %s5, 160
      %v2366 = vld [vmem:[%s2365] sm:$0xff]
      %v2367 = vld [vmem:[%s2365 + $0x8] sm:$0xff]
      %v2368 = vld [vmem:[%s2365 + $0x10] sm:$0xff]
      %v2369 = vld [vmem:[%s2365 + $0x18] sm:$0xff]
      %v2370 = vld [vmem:[%s2365 + $0x20] sm:$0xff]
      %v2371 = vld [vmem:[%s2365 + $0x28] sm:$0xff]
      %v2372 = vld [vmem:[%s2365 + $0x30] sm:$0xff]
      %v2373 = vld [vmem:[%s2365 + $0x38] sm:$0xff]
      %v2374 = vld [vmem:[%s2365 + $0x40] sm:$0xff]
      %v2375 = vld [vmem:[%s2365 + $0x48] sm:$0xff]
      %vm2376 = vcmask 654336
      %v2378 = vsel %vm2376, %v2127, 0
      %2380 = vmatprep.subr.mxu0 0.0
      %2381 = vmatpush1.msra.mxu0 0.0
      %2382 = vmatprep.subr.mxu0 0.0
      %2383 = vmatpush1.msra.mxu0 0.0
      %2384 = vmatprep.subr.mxu0 0.0
      %2385 = vmatpush1.msra.mxu0 0.0
      %2386 = vmatprep.subr.mxu0 0.0
      %2387 = vmatpush1.msra.mxu0 0.0
      %2388 = vmatprep.subr.mxu0 0.0
      %2389 = vmatpush1.msra.mxu0 0.0
      %2390 = vmatprep.subr.mxu0 0.0
      %2391 = vmatpush1.msra.mxu0 0.0
      %2392 = vmatprep.subr.mxu0 0.0
      %2393 = vmatpush1.msra.mxu0 %v2375
      %2394 = vmatprep.subr.mxu0 0.0
      %2395 = vmatpush1.msra.mxu0 %v2374
      %2396 = vmatprep.subr.mxu0 0.0
      %2397 = vmatpush1.msra.mxu0 %v2373
      %2398 = vmatprep.subr.mxu0 0.0
      %2399 = vmatpush1.msra.mxu0 %v2372
      %2400 = vmatprep.subr.mxu0 0.0
      %2401 = vmatpush1.msra.mxu0 %v2371
      %2402 = vmatprep.subr.mxu0 0.0
      %2403 = vmatpush1.msra.mxu0 %v2370
      %2404 = vmatprep.subr.mxu0 0.0
      %2405 = vmatpush1.msra.mxu0 %v2369
      %2406 = vmatprep.subr.mxu0 0.0
      %2407 = vmatpush1.msra.mxu0 %v2368
      %2408 = vmatprep.subr.mxu0 0.0
      %2409 = vmatpush1.msra.mxu0 %v2367
      %2410 = vmatprep.subr.mxu0 0.0
      %2411 = vmatpush1.msra.mxu0 %v2366
      %2412 = vmatprep.subr.mxu0 0.0
      %2413 = vmatpush2.msra.mxu0 0.0
      %2414 = vmatprep.subr.mxu0 0.0
      %2415 = vmatpush2.msra.mxu0 0.0
      %2416 = vmatprep.subr.mxu0 0.0
      %2417 = vmatpush2.msra.mxu0 0.0
      %2418 = vmatprep.subr.mxu0 0.0
      %2419 = vmatpush2.msra.mxu0 0.0
      %2420 = vmatprep.subr.mxu0 0.0
      %2421 = vmatpush2.msra.mxu0 0.0
      %2422 = vmatprep.subr.mxu0 0.0
      %2423 = vmatpush2.msra.mxu0 0.0
      %2424 = vmatprep.subr.mxu0 0.0
      %2425 = vmatpush2.msra.mxu0 0.0
      %2426 = vmatprep.subr.mxu0 0.0
      %2427 = vmatpush2.msra.mxu0 0.0
      %2428 = vmatprep.subr.mxu0 0.0
      %2429 = vmatpush2.msra.mxu0 0.0
      %2430 = vmatprep.subr.mxu0 0.0
      %2431 = vmatpush2.msra.mxu0 0.0
      %2432 = vmatprep.subr.mxu0 0.0
      %2433 = vmatpush2.msra.mxu0 0.0
      %2434 = vmatprep.subr.mxu0 0.0
      %2435 = vmatpush2.msra.mxu0 0.0
      %2436 = vmatprep.subr.mxu0 0.0
      %2437 = vmatpush2.msra.mxu0 0.0
      %2438 = vmatprep.subr.mxu0 0.0
      %2439 = vmatpush2.msra.mxu0 0.0
      %2440 = vmatprep.subr.mxu0 0.0
      %2441 = vmatpush2.msra.mxu0 0.0
      %2442 = vmatprep.subr.mxu0 0.0
      %2443 = vmatpush2.msra.mxu0 0.0
      %2444 = vmatprep.mubr.f32.mxu0 0.0
      %2445 = vmatmul.mubr.f32.gmra.mxu0 %v2378
      %v2446 = vpop.f32.mrf.mxu0
      %v2447 = vadd.f32 0.0, %v2446
      %v2448 = vpop.f32.mrf.mxu0
      %2449 = vdwg.mxu0
      %v2451 = vsel %vm2376, %v1977, 0
      %2453 = vmatprep.subr.mxu0 0.0
      %2454 = vmatpush1.msra.mxu0 0.0
      %2455 = vmatprep.subr.mxu0 0.0
      %2456 = vmatpush1.msra.mxu0 0.0
      %2457 = vmatprep.subr.mxu0 0.0
      %2458 = vmatpush1.msra.mxu0 0.0
      %2459 = vmatprep.subr.mxu0 0.0
      %2460 = vmatpush1.msra.mxu0 0.0
      %2461 = vmatprep.subr.mxu0 0.0
      %2462 = vmatpush1.msra.mxu0 0.0
      %2463 = vmatprep.subr.mxu0 0.0
      %2464 = vmatpush1.msra.mxu0 0.0
      %2465 = vmatprep.subr.mxu0 0.0
      %2466 = vmatpush1.msra.mxu0 %v2364
      %2467 = vmatprep.subr.mxu0 0.0
      %2468 = vmatpush1.msra.mxu0 %v2363
      %2469 = vmatprep.subr.mxu0 0.0
      %2470 = vmatpush1.msra.mxu0 %v2362
      %2471 = vmatprep.subr.mxu0 0.0
      %2472 = vmatpush1.msra.mxu0 %v2361
      %2473 = vmatprep.subr.mxu0 0.0
      %2474 = vmatpush1.msra.mxu0 %v2360
      %2475 = vmatprep.subr.mxu0 0.0
      %2476 = vmatpush1.msra.mxu0 %v2359
      %2477 = vmatprep.subr.mxu0 0.0
      %2478 = vmatpush1.msra.mxu0 %v2358
      %2479 = vmatprep.subr.mxu0 0.0
      %2480 = vmatpush1.msra.mxu0 %v2357
      %2481 = vmatprep.subr.mxu0 0.0
      %2482 = vmatpush1.msra.mxu0 %v2356
      %2483 = vmatprep.subr.mxu0 0.0
      %2484 = vmatpush1.msra.mxu0 %v2355
      %2485 = vmatprep.subr.mxu0 0.0
      %2486 = vmatpush2.msra.mxu0 0.0
      %2487 = vmatprep.subr.mxu0 0.0
      %2488 = vmatpush2.msra.mxu0 0.0
      %2489 = vmatprep.subr.mxu0 0.0
      %2490 = vmatpush2.msra.mxu0 0.0
      %2491 = vmatprep.subr.mxu0 0.0
      %2492 = vmatpush2.msra.mxu0 0.0
      %2493 = vmatprep.subr.mxu0 0.0
      %2494 = vmatpush2.msra.mxu0 0.0
      %2495 = vmatprep.subr.mxu0 0.0
      %2496 = vmatpush2.msra.mxu0 0.0
      %2497 = vmatprep.subr.mxu0 0.0
      %2498 = vmatpush2.msra.mxu0 0.0
      %2499 = vmatprep.subr.mxu0 0.0
      %2500 = vmatpush2.msra.mxu0 0.0
      %2501 = vmatprep.subr.mxu0 0.0
      %2502 = vmatpush2.msra.mxu0 0.0
      %2503 = vmatprep.subr.mxu0 0.0
      %2504 = vmatpush2.msra.mxu0 0.0
      %2505 = vmatprep.subr.mxu0 0.0
      %2506 = vmatpush2.msra.mxu0 0.0
      %2507 = vmatprep.subr.mxu0 0.0
      %2508 = vmatpush2.msra.mxu0 0.0
      %2509 = vmatprep.subr.mxu0 0.0
      %2510 = vmatpush2.msra.mxu0 0.0
      %2511 = vmatprep.subr.mxu0 0.0
      %2512 = vmatpush2.msra.mxu0 0.0
      %2513 = vmatprep.subr.mxu0 0.0
      %2514 = vmatpush2.msra.mxu0 0.0
      %2515 = vmatprep.subr.mxu0 0.0
      %2516 = vmatpush2.msra.mxu0 0.0
      %2517 = vmatprep.mubr.f32.mxu0 0.0
      %2518 = vmatmul.mubr.f32.gmra.mxu0 %v2451
      %v2519 = vpop.f32.mrf.mxu0
      %v2520 = vadd.f32 %v2447, %v2519
      %v2521 = vpop.f32.mrf.mxu0
      %2522 = vdwg.mxu0
      %s2523 = scalar_lea.vmem %s5, 320
      %v2524 = vld [vmem:[%s2523] sm:$0xff]
      %v2525 = vld [vmem:[%s2523 + $0x8] sm:$0xff]
      %v2526 = vld [vmem:[%s2523 + $0x10] sm:$0xff]
      %v2527 = vld [vmem:[%s2523 + $0x18] sm:$0xff]
      %v2528 = vld [vmem:[%s2523 + $0x20] sm:$0xff]
      %v2529 = vld [vmem:[%s2523 + $0x28] sm:$0xff]
      %v2530 = vld [vmem:[%s2523 + $0x30] sm:$0xff]
      %v2531 = vld [vmem:[%s2523 + $0x38] sm:$0xff]
      %v2532 = vld [vmem:[%s2523 + $0x40] sm:$0xff]
      %v2533 = vld [vmem:[%s2523 + $0x48] sm:$0xff]
      %v2535 = vsel %vm2376, %v2277, 0
      %2537 = vmatprep.subr.mxu0 0.0
      %2538 = vmatpush1.msra.mxu0 0.0
      %2539 = vmatprep.subr.mxu0 0.0
      %2540 = vmatpush1.msra.mxu0 0.0
      %2541 = vmatprep.subr.mxu0 0.0
      %2542 = vmatpush1.msra.mxu0 0.0
      %2543 = vmatprep.subr.mxu0 0.0
      %2544 = vmatpush1.msra.mxu0 0.0
      %2545 = vmatprep.subr.mxu0 0.0
      %2546 = vmatpush1.msra.mxu0 0.0
      %2547 = vmatprep.subr.mxu0 0.0
      %2548 = vmatpush1.msra.mxu0 0.0
      %2549 = vmatprep.subr.mxu0 0.0
      %2550 = vmatpush1.msra.mxu0 %v2533
      %2551 = vmatprep.subr.mxu0 0.0
      %2552 = vmatpush1.msra.mxu0 %v2532
      %2553 = vmatprep.subr.mxu0 0.0
      %2554 = vmatpush1.msra.mxu0 %v2531
      %2555 = vmatprep.subr.mxu0 0.0
      %2556 = vmatpush1.msra.mxu0 %v2530
      %2557 = vmatprep.subr.mxu0 0.0
      %2558 = vmatpush1.msra.mxu0 %v2529
      %2559 = vmatprep.subr.mxu0 0.0
      %2560 = vmatpush1.msra.mxu0 %v2528
      %2561 = vmatprep.subr.mxu0 0.0
      %2562 = vmatpush1.msra.mxu0 %v2527
      %2563 = vmatprep.subr.mxu0 0.0
      %2564 = vmatpush1.msra.mxu0 %v2526
      %2565 = vmatprep.subr.mxu0 0.0
      %2566 = vmatpush1.msra.mxu0 %v2525
      %2567 = vmatprep.subr.mxu0 0.0
      %2568 = vmatpush1.msra.mxu0 %v2524
      %2569 = vmatprep.subr.mxu0 0.0
      %2570 = vmatpush2.msra.mxu0 0.0
      %2571 = vmatprep.subr.mxu0 0.0
      %2572 = vmatpush2.msra.mxu0 0.0
      %2573 = vmatprep.subr.mxu0 0.0
      %2574 = vmatpush2.msra.mxu0 0.0
      %2575 = vmatprep.subr.mxu0 0.0
      %2576 = vmatpush2.msra.mxu0 0.0
      %2577 = vmatprep.subr.mxu0 0.0
      %2578 = vmatpush2.msra.mxu0 0.0
      %2579 = vmatprep.subr.mxu0 0.0
      %2580 = vmatpush2.msra.mxu0 0.0
      %2581 = vmatprep.subr.mxu0 0.0
      %2582 = vmatpush2.msra.mxu0 0.0
      %2583 = vmatprep.subr.mxu0 0.0
      %2584 = vmatpush2.msra.mxu0 0.0
      %2585 = vmatprep.subr.mxu0 0.0
      %2586 = vmatpush2.msra.mxu0 0.0
      %2587 = vmatprep.subr.mxu0 0.0
      %2588 = vmatpush2.msra.mxu0 0.0
      %2589 = vmatprep.subr.mxu0 0.0
      %2590 = vmatpush2.msra.mxu0 0.0
      %2591 = vmatprep.subr.mxu0 0.0
      %2592 = vmatpush2.msra.mxu0 0.0
      %2593 = vmatprep.subr.mxu0 0.0
      %2594 = vmatpush2.msra.mxu0 0.0
      %2595 = vmatprep.subr.mxu0 0.0
      %2596 = vmatpush2.msra.mxu0 0.0
      %2597 = vmatprep.subr.mxu0 0.0
      %2598 = vmatpush2.msra.mxu0 0.0
      %2599 = vmatprep.subr.mxu0 0.0
      %2600 = vmatpush2.msra.mxu0 0.0
      %2601 = vmatprep.mubr.f32.mxu0 0.0
      %2602 = vmatmul.mubr.f32.gmra.mxu0 %v2535
      %v2603 = vpop.f32.mrf.mxu0
      %v2604 = vadd.f32 0.0, %v2603
      %v2605 = vpop.f32.mrf.mxu0
      %2606 = vdwg.mxu0
      %v2607 = vadd.f32 %v2520, %v2604
      %s2608 = scalar_lea.vmem %s5, 80
      %v2609 = vld [vmem:[%s2608] sm:$0xff]
      %v2610 = vld [vmem:[%s2608 + $0x8] sm:$0xff]
      %v2611 = vld [vmem:[%s2608 + $0x10] sm:$0xff]
      %v2612 = vld [vmem:[%s2608 + $0x18] sm:$0xff]
      %v2613 = vld [vmem:[%s2608 + $0x20] sm:$0xff]
      %v2614 = vld [vmem:[%s2608 + $0x28] sm:$0xff]
      %v2615 = vld [vmem:[%s2608 + $0x30] sm:$0xff]
      %v2616 = vld [vmem:[%s2608 + $0x38] sm:$0xff]
      %v2617 = vld [vmem:[%s2608 + $0x40] sm:$0xff]
      %v2618 = vld [vmem:[%s2608 + $0x48] sm:$0xff]
      %s2619 = scalar_lea.vmem %s5, 240
      %v2620 = vld [vmem:[%s2619] sm:$0xff]
      %v2621 = vld [vmem:[%s2619 + $0x8] sm:$0xff]
      %v2622 = vld [vmem:[%s2619 + $0x10] sm:$0xff]
      %v2623 = vld [vmem:[%s2619 + $0x18] sm:$0xff]
      %v2624 = vld [vmem:[%s2619 + $0x20] sm:$0xff]
      %v2625 = vld [vmem:[%s2619 + $0x28] sm:$0xff]
      %v2626 = vld [vmem:[%s2619 + $0x30] sm:$0xff]
      %v2627 = vld [vmem:[%s2619 + $0x38] sm:$0xff]
      %v2628 = vld [vmem:[%s2619 + $0x40] sm:$0xff]
      %v2629 = vld [vmem:[%s2619 + $0x48] sm:$0xff]
      %2630 = vmatprep.subr.mxu0 0.0
      %2631 = vmatpush1.msra.mxu0 0.0
      %2632 = vmatprep.subr.mxu0 0.0
      %2633 = vmatpush1.msra.mxu0 0.0
      %2634 = vmatprep.subr.mxu0 0.0
      %2635 = vmatpush1.msra.mxu0 0.0
      %2636 = vmatprep.subr.mxu0 0.0
      %2637 = vmatpush1.msra.mxu0 0.0
      %2638 = vmatprep.subr.mxu0 0.0
      %2639 = vmatpush1.msra.mxu0 0.0
      %2640 = vmatprep.subr.mxu0 0.0
      %2641 = vmatpush1.msra.mxu0 0.0
      %2642 = vmatprep.subr.mxu0 0.0
      %2643 = vmatpush1.msra.mxu0 %v2629
      %2644 = vmatprep.subr.mxu0 0.0
      %2645 = vmatpush1.msra.mxu0 %v2628
      %2646 = vmatprep.subr.mxu0 0.0
      %2647 = vmatpush1.msra.mxu0 %v2627
      %2648 = vmatprep.subr.mxu0 0.0
      %2649 = vmatpush1.msra.mxu0 %v2626
      %2650 = vmatprep.subr.mxu0 0.0
      %2651 = vmatpush1.msra.mxu0 %v2625
      %2652 = vmatprep.subr.mxu0 0.0
      %2653 = vmatpush1.msra.mxu0 %v2624
      %2654 = vmatprep.subr.mxu0 0.0
      %2655 = vmatpush1.msra.mxu0 %v2623
      %2656 = vmatprep.subr.mxu0 0.0
      %2657 = vmatpush1.msra.mxu0 %v2622
      %2658 = vmatprep.subr.mxu0 0.0
      %2659 = vmatpush1.msra.mxu0 %v2621
      %2660 = vmatprep.subr.mxu0 0.0
      %2661 = vmatpush1.msra.mxu0 %v2620
      %2662 = vmatprep.subr.mxu0 0.0
      %2663 = vmatpush2.msra.mxu0 0.0
      %2664 = vmatprep.subr.mxu0 0.0
      %2665 = vmatpush2.msra.mxu0 0.0
      %2666 = vmatprep.subr.mxu0 0.0
      %2667 = vmatpush2.msra.mxu0 0.0
      %2668 = vmatprep.subr.mxu0 0.0
      %2669 = vmatpush2.msra.mxu0 0.0
      %2670 = vmatprep.subr.mxu0 0.0
      %2671 = vmatpush2.msra.mxu0 0.0
      %2672 = vmatprep.subr.mxu0 0.0
      %2673 = vmatpush2.msra.mxu0 0.0
      %2674 = vmatprep.subr.mxu0 0.0
      %2675 = vmatpush2.msra.mxu0 0.0
      %2676 = vmatprep.subr.mxu0 0.0
      %2677 = vmatpush2.msra.mxu0 0.0
      %2678 = vmatprep.subr.mxu0 0.0
      %2679 = vmatpush2.msra.mxu0 0.0
      %2680 = vmatprep.subr.mxu0 0.0
      %2681 = vmatpush2.msra.mxu0 0.0
      %2682 = vmatprep.subr.mxu0 0.0
      %2683 = vmatpush2.msra.mxu0 0.0
      %2684 = vmatprep.subr.mxu0 0.0
      %2685 = vmatpush2.msra.mxu0 0.0
      %2686 = vmatprep.subr.mxu0 0.0
      %2687 = vmatpush2.msra.mxu0 0.0
      %2688 = vmatprep.subr.mxu0 0.0
      %2689 = vmatpush2.msra.mxu0 0.0
      %2690 = vmatprep.subr.mxu0 0.0
      %2691 = vmatpush2.msra.mxu0 0.0
      %2692 = vmatprep.subr.mxu0 0.0
      %2693 = vmatpush2.msra.mxu0 0.0
      %2694 = vmatprep.mubr.f32.mxu0 0.0
      %2695 = vmatmul.mubr.f32.gmra.mxu0 %v2378
      %v2696 = vpop.f32.mrf.mxu0
      %v2697 = vadd.f32 0.0, %v2696
      %v2698 = vpop.f32.mrf.mxu0
      %2699 = vdwg.mxu0
      %2700 = vmatprep.subr.mxu0 0.0
      %2701 = vmatpush1.msra.mxu0 0.0
      %2702 = vmatprep.subr.mxu0 0.0
      %2703 = vmatpush1.msra.mxu0 0.0
      %2704 = vmatprep.subr.mxu0 0.0
      %2705 = vmatpush1.msra.mxu0 0.0
      %2706 = vmatprep.subr.mxu0 0.0
      %2707 = vmatpush1.msra.mxu0 0.0
      %2708 = vmatprep.subr.mxu0 0.0
      %2709 = vmatpush1.msra.mxu0 0.0
      %2710 = vmatprep.subr.mxu0 0.0
      %2711 = vmatpush1.msra.mxu0 0.0
      %2712 = vmatprep.subr.mxu0 0.0
      %2713 = vmatpush1.msra.mxu0 %v2618
      %2714 = vmatprep.subr.mxu0 0.0
      %2715 = vmatpush1.msra.mxu0 %v2617
      %2716 = vmatprep.subr.mxu0 0.0
      %2717 = vmatpush1.msra.mxu0 %v2616
      %2718 = vmatprep.subr.mxu0 0.0
      %2719 = vmatpush1.msra.mxu0 %v2615
      %2720 = vmatprep.subr.mxu0 0.0
      %2721 = vmatpush1.msra.mxu0 %v2614
      %2722 = vmatprep.subr.mxu0 0.0
      %2723 = vmatpush1.msra.mxu0 %v2613
      %2724 = vmatprep.subr.mxu0 0.0
      %2725 = vmatpush1.msra.mxu0 %v2612
      %2726 = vmatprep.subr.mxu0 0.0
      %2727 = vmatpush1.msra.mxu0 %v2611
      %2728 = vmatprep.subr.mxu0 0.0
      %2729 = vmatpush1.msra.mxu0 %v2610
      %2730 = vmatprep.subr.mxu0 0.0
      %2731 = vmatpush1.msra.mxu0 %v2609
      %2732 = vmatprep.subr.mxu0 0.0
      %2733 = vmatpush2.msra.mxu0 0.0
      %2734 = vmatprep.subr.mxu0 0.0
      %2735 = vmatpush2.msra.mxu0 0.0
      %2736 = vmatprep.subr.mxu0 0.0
      %2737 = vmatpush2.msra.mxu0 0.0
      %2738 = vmatprep.subr.mxu0 0.0
      %2739 = vmatpush2.msra.mxu0 0.0
      %2740 = vmatprep.subr.mxu0 0.0
      %2741 = vmatpush2.msra.mxu0 0.0
      %2742 = vmatprep.subr.mxu0 0.0
      %2743 = vmatpush2.msra.mxu0 0.0
      %2744 = vmatprep.subr.mxu0 0.0
      %2745 = vmatpush2.msra.mxu0 0.0
      %2746 = vmatprep.subr.mxu0 0.0
      %2747 = vmatpush2.msra.mxu0 0.0
      %2748 = vmatprep.subr.mxu0 0.0
      %2749 = vmatpush2.msra.mxu0 0.0
      %2750 = vmatprep.subr.mxu0 0.0
      %2751 = vmatpush2.msra.mxu0 0.0
      %2752 = vmatprep.subr.mxu0 0.0
      %2753 = vmatpush2.msra.mxu0 0.0
      %2754 = vmatprep.subr.mxu0 0.0
      %2755 = vmatpush2.msra.mxu0 0.0
      %2756 = vmatprep.subr.mxu0 0.0
      %2757 = vmatpush2.msra.mxu0 0.0
      %2758 = vmatprep.subr.mxu0 0.0
      %2759 = vmatpush2.msra.mxu0 0.0
      %2760 = vmatprep.subr.mxu0 0.0
      %2761 = vmatpush2.msra.mxu0 0.0
      %2762 = vmatprep.subr.mxu0 0.0
      %2763 = vmatpush2.msra.mxu0 0.0
      %2764 = vmatprep.mubr.f32.mxu0 0.0
      %2765 = vmatmul.mubr.f32.gmra.mxu0 %v2451
      %v2766 = vpop.f32.mrf.mxu0
      %v2767 = vadd.f32 %v2697, %v2766
      %v2768 = vpop.f32.mrf.mxu0
      %2769 = vdwg.mxu0
      %s2770 = scalar_lea.vmem %s5, 400
      %v2771 = vld [vmem:[%s2770] sm:$0xff]
      %v2772 = vld [vmem:[%s2770 + $0x8] sm:$0xff]
      %v2773 = vld [vmem:[%s2770 + $0x10] sm:$0xff]
      %v2774 = vld [vmem:[%s2770 + $0x18] sm:$0xff]
      %v2775 = vld [vmem:[%s2770 + $0x20] sm:$0xff]
      %v2776 = vld [vmem:[%s2770 + $0x28] sm:$0xff]
      %v2777 = vld [vmem:[%s2770 + $0x30] sm:$0xff]
      %v2778 = vld [vmem:[%s2770 + $0x38] sm:$0xff]
      %v2779 = vld [vmem:[%s2770 + $0x40] sm:$0xff]
      %v2780 = vld [vmem:[%s2770 + $0x48] sm:$0xff]
      %2781 = vmatprep.subr.mxu0 0.0
      %2782 = vmatpush1.msra.mxu0 0.0
      %2783 = vmatprep.subr.mxu0 0.0
      %2784 = vmatpush1.msra.mxu0 0.0
      %2785 = vmatprep.subr.mxu0 0.0
      %2786 = vmatpush1.msra.mxu0 0.0
      %2787 = vmatprep.subr.mxu0 0.0
      %2788 = vmatpush1.msra.mxu0 0.0
      %2789 = vmatprep.subr.mxu0 0.0
      %2790 = vmatpush1.msra.mxu0 0.0
      %2791 = vmatprep.subr.mxu0 0.0
      %2792 = vmatpush1.msra.mxu0 0.0
      %2793 = vmatprep.subr.mxu0 0.0
      %2794 = vmatpush1.msra.mxu0 %v2780
      %2795 = vmatprep.subr.mxu0 0.0
      %2796 = vmatpush1.msra.mxu0 %v2779
      %2797 = vmatprep.subr.mxu0 0.0
      %2798 = vmatpush1.msra.mxu0 %v2778
      %2799 = vmatprep.subr.mxu0 0.0
      %2800 = vmatpush1.msra.mxu0 %v2777
      %2801 = vmatprep.subr.mxu0 0.0
      %2802 = vmatpush1.msra.mxu0 %v2776
      %2803 = vmatprep.subr.mxu0 0.0
      %2804 = vmatpush1.msra.mxu0 %v2775
      %2805 = vmatprep.subr.mxu0 0.0
      %2806 = vmatpush1.msra.mxu0 %v2774
      %2807 = vmatprep.subr.mxu0 0.0
      %2808 = vmatpush1.msra.mxu0 %v2773
      %2809 = vmatprep.subr.mxu0 0.0
      %2810 = vmatpush1.msra.mxu0 %v2772
      %2811 = vmatprep.subr.mxu0 0.0
      %2812 = vmatpush1.msra.mxu0 %v2771
      %2813 = vmatprep.subr.mxu0 0.0
      %2814 = vmatpush2.msra.mxu0 0.0
      %2815 = vmatprep.subr.mxu0 0.0
      %2816 = vmatpush2.msra.mxu0 0.0
      %2817 = vmatprep.subr.mxu0 0.0
      %2818 = vmatpush2.msra.mxu0 0.0
      %2819 = vmatprep.subr.mxu0 0.0
      %2820 = vmatpush2.msra.mxu0 0.0
      %2821 = vmatprep.subr.mxu0 0.0
      %2822 = vmatpush2.msra.mxu0 0.0
      %2823 = vmatprep.subr.mxu0 0.0
      %2824 = vmatpush2.msra.mxu0 0.0
      %2825 = vmatprep.subr.mxu0 0.0
      %2826 = vmatpush2.msra.mxu0 0.0
      %2827 = vmatprep.subr.mxu0 0.0
      %2828 = vmatpush2.msra.mxu0 0.0
      %2829 = vmatprep.subr.mxu0 0.0
      %2830 = vmatpush2.msra.mxu0 0.0
      %2831 = vmatprep.subr.mxu0 0.0
      %2832 = vmatpush2.msra.mxu0 0.0
      %2833 = vmatprep.subr.mxu0 0.0
      %2834 = vmatpush2.msra.mxu0 0.0
      %2835 = vmatprep.subr.mxu0 0.0
      %2836 = vmatpush2.msra.mxu0 0.0
      %2837 = vmatprep.subr.mxu0 0.0
      %2838 = vmatpush2.msra.mxu0 0.0
      %2839 = vmatprep.subr.mxu0 0.0
      %2840 = vmatpush2.msra.mxu0 0.0
      %2841 = vmatprep.subr.mxu0 0.0
      %2842 = vmatpush2.msra.mxu0 0.0
      %2843 = vmatprep.subr.mxu0 0.0
      %2844 = vmatpush2.msra.mxu0 0.0
      %2845 = vmatprep.mubr.f32.mxu0 0.0
      %2846 = vmatmul.mubr.f32.gmra.mxu0 %v2535
      %v2847 = vpop.f32.mrf.mxu0
      %v2848 = vadd.f32 0.0, %v2847
      %v2849 = vpop.f32.mrf.mxu0
      %2850 = vdwg.mxu0
      %v2851 = vadd.f32 %v2767, %v2848
      %v2852 = vmax.f32 %v2607, %v2851
      %v2854 = vsel %vm2376, %v2202, 0
      %2856 = vmatprep.subr.mxu0 0.0
      %2857 = vmatpush1.msra.mxu0 0.0
      %2858 = vmatprep.subr.mxu0 0.0
      %2859 = vmatpush1.msra.mxu0 0.0
      %2860 = vmatprep.subr.mxu0 0.0
      %2861 = vmatpush1.msra.mxu0 0.0
      %2862 = vmatprep.subr.mxu0 0.0
      %2863 = vmatpush1.msra.mxu0 0.0
      %2864 = vmatprep.subr.mxu0 0.0
      %2865 = vmatpush1.msra.mxu0 0.0
      %2866 = vmatprep.subr.mxu0 0.0
      %2867 = vmatpush1.msra.mxu0 0.0
      %2868 = vmatprep.subr.mxu0 0.0
      %2869 = vmatpush1.msra.mxu0 %v2375
      %2870 = vmatprep.subr.mxu0 0.0
      %2871 = vmatpush1.msra.mxu0 %v2374
      %2872 = vmatprep.subr.mxu0 0.0
      %2873 = vmatpush1.msra.mxu0 %v2373
      %2874 = vmatprep.subr.mxu0 0.0
      %2875 = vmatpush1.msra.mxu0 %v2372
      %2876 = vmatprep.subr.mxu0 0.0
      %2877 = vmatpush1.msra.mxu0 %v2371
      %2878 = vmatprep.subr.mxu0 0.0
      %2879 = vmatpush1.msra.mxu0 %v2370
      %2880 = vmatprep.subr.mxu0 0.0
      %2881 = vmatpush1.msra.mxu0 %v2369
      %2882 = vmatprep.subr.mxu0 0.0
      %2883 = vmatpush1.msra.mxu0 %v2368
      %2884 = vmatprep.subr.mxu0 0.0
      %2885 = vmatpush1.msra.mxu0 %v2367
      %2886 = vmatprep.subr.mxu0 0.0
      %2887 = vmatpush1.msra.mxu0 %v2366
      %2888 = vmatprep.subr.mxu0 0.0
      %2889 = vmatpush2.msra.mxu0 0.0
      %2890 = vmatprep.subr.mxu0 0.0
      %2891 = vmatpush2.msra.mxu0 0.0
      %2892 = vmatprep.subr.mxu0 0.0
      %2893 = vmatpush2.msra.mxu0 0.0
      %2894 = vmatprep.subr.mxu0 0.0
      %2895 = vmatpush2.msra.mxu0 0.0
      %2896 = vmatprep.subr.mxu0 0.0
      %2897 = vmatpush2.msra.mxu0 0.0
      %2898 = vmatprep.subr.mxu0 0.0
      %2899 = vmatpush2.msra.mxu0 0.0
      %2900 = vmatprep.subr.mxu0 0.0
      %2901 = vmatpush2.msra.mxu0 0.0
      %2902 = vmatprep.subr.mxu0 0.0
      %2903 = vmatpush2.msra.mxu0 0.0
      %2904 = vmatprep.subr.mxu0 0.0
      %2905 = vmatpush2.msra.mxu0 0.0
      %2906 = vmatprep.subr.mxu0 0.0
      %2907 = vmatpush2.msra.mxu0 0.0
      %2908 = vmatprep.subr.mxu0 0.0
      %2909 = vmatpush2.msra.mxu0 0.0
      %2910 = vmatprep.subr.mxu0 0.0
      %2911 = vmatpush2.msra.mxu0 0.0
      %2912 = vmatprep.subr.mxu0 0.0
      %2913 = vmatpush2.msra.mxu0 0.0
      %2914 = vmatprep.subr.mxu0 0.0
      %2915 = vmatpush2.msra.mxu0 0.0
      %2916 = vmatprep.subr.mxu0 0.0
      %2917 = vmatpush2.msra.mxu0 0.0
      %2918 = vmatprep.subr.mxu0 0.0
      %2919 = vmatpush2.msra.mxu0 0.0
      %2920 = vmatprep.mubr.f32.mxu0 0.0
      %2921 = vmatmul.mubr.f32.gmra.mxu0 %v2854
      %v2922 = vpop.f32.mrf.mxu0
      %v2923 = vadd.f32 0.0, %v2922
      %v2924 = vpop.f32.mrf.mxu0
      %2925 = vdwg.mxu0
      %v2927 = vsel %vm2376, %v2052, 0
      %2929 = vmatprep.subr.mxu0 0.0
      %2930 = vmatpush1.msra.mxu0 0.0
      %2931 = vmatprep.subr.mxu0 0.0
      %2932 = vmatpush1.msra.mxu0 0.0
      %2933 = vmatprep.subr.mxu0 0.0
      %2934 = vmatpush1.msra.mxu0 0.0
      %2935 = vmatprep.subr.mxu0 0.0
      %2936 = vmatpush1.msra.mxu0 0.0
      %2937 = vmatprep.subr.mxu0 0.0
      %2938 = vmatpush1.msra.mxu0 0.0
      %2939 = vmatprep.subr.mxu0 0.0
      %2940 = vmatpush1.msra.mxu0 0.0
      %2941 = vmatprep.subr.mxu0 0.0
      %2942 = vmatpush1.msra.mxu0 %v2364
      %2943 = vmatprep.subr.mxu0 0.0
      %2944 = vmatpush1.msra.mxu0 %v2363
      %2945 = vmatprep.subr.mxu0 0.0
      %2946 = vmatpush1.msra.mxu0 %v2362
      %2947 = vmatprep.subr.mxu0 0.0
      %2948 = vmatpush1.msra.mxu0 %v2361
      %2949 = vmatprep.subr.mxu0 0.0
      %2950 = vmatpush1.msra.mxu0 %v2360
      %2951 = vmatprep.subr.mxu0 0.0
      %2952 = vmatpush1.msra.mxu0 %v2359
      %2953 = vmatprep.subr.mxu0 0.0
      %2954 = vmatpush1.msra.mxu0 %v2358
      %2955 = vmatprep.subr.mxu0 0.0
      %2956 = vmatpush1.msra.mxu0 %v2357
      %2957 = vmatprep.subr.mxu0 0.0
      %2958 = vmatpush1.msra.mxu0 %v2356
      %2959 = vmatprep.subr.mxu0 0.0
      %2960 = vmatpush1.msra.mxu0 %v2355
      %2961 = vmatprep.subr.mxu0 0.0
      %2962 = vmatpush2.msra.mxu0 0.0
      %2963 = vmatprep.subr.mxu0 0.0
      %2964 = vmatpush2.msra.mxu0 0.0
      %2965 = vmatprep.subr.mxu0 0.0
      %2966 = vmatpush2.msra.mxu0 0.0
      %2967 = vmatprep.subr.mxu0 0.0
      %2968 = vmatpush2.msra.mxu0 0.0
      %2969 = vmatprep.subr.mxu0 0.0
      %2970 = vmatpush2.msra.mxu0 0.0
      %2971 = vmatprep.subr.mxu0 0.0
      %2972 = vmatpush2.msra.mxu0 0.0
      %2973 = vmatprep.subr.mxu0 0.0
      %2974 = vmatpush2.msra.mxu0 0.0
      %2975 = vmatprep.subr.mxu0 0.0
      %2976 = vmatpush2.msra.mxu0 0.0
      %2977 = vmatprep.subr.mxu0 0.0
      %2978 = vmatpush2.msra.mxu0 0.0
      %2979 = vmatprep.subr.mxu0 0.0
      %2980 = vmatpush2.msra.mxu0 0.0
      %2981 = vmatprep.subr.mxu0 0.0
      %2982 = vmatpush2.msra.mxu0 0.0
      %2983 = vmatprep.subr.mxu0 0.0
      %2984 = vmatpush2.msra.mxu0 0.0
      %2985 = vmatprep.subr.mxu0 0.0
      %2986 = vmatpush2.msra.mxu0 0.0
      %2987 = vmatprep.subr.mxu0 0.0
      %2988 = vmatpush2.msra.mxu0 0.0
      %2989 = vmatprep.subr.mxu0 0.0
      %2990 = vmatpush2.msra.mxu0 0.0
      %2991 = vmatprep.subr.mxu0 0.0
      %2992 = vmatpush2.msra.mxu0 0.0
      %2993 = vmatprep.mubr.f32.mxu0 0.0
      %2994 = vmatmul.mubr.f32.gmra.mxu0 %v2927
      %v2995 = vpop.f32.mrf.mxu0
      %v2996 = vadd.f32 %v2923, %v2995
      %v2997 = vpop.f32.mrf.mxu0
      %2998 = vdwg.mxu0
      %v3000 = vsel %vm2376, %v2352, 0
      %3002 = vmatprep.subr.mxu0 0.0
      %3003 = vmatpush1.msra.mxu0 0.0
      %3004 = vmatprep.subr.mxu0 0.0
      %3005 = vmatpush1.msra.mxu0 0.0
      %3006 = vmatprep.subr.mxu0 0.0
      %3007 = vmatpush1.msra.mxu0 0.0
      %3008 = vmatprep.subr.mxu0 0.0
      %3009 = vmatpush1.msra.mxu0 0.0
      %3010 = vmatprep.subr.mxu0 0.0
      %3011 = vmatpush1.msra.mxu0 0.0
      %3012 = vmatprep.subr.mxu0 0.0
      %3013 = vmatpush1.msra.mxu0 0.0
      %3014 = vmatprep.subr.mxu0 0.0
      %3015 = vmatpush1.msra.mxu0 %v2533
      %3016 = vmatprep.subr.mxu0 0.0
      %3017 = vmatpush1.msra.mxu0 %v2532
      %3018 = vmatprep.subr.mxu0 0.0
      %3019 = vmatpush1.msra.mxu0 %v2531
      %3020 = vmatprep.subr.mxu0 0.0
      %3021 = vmatpush1.msra.mxu0 %v2530
      %3022 = vmatprep.subr.mxu0 0.0
      %3023 = vmatpush1.msra.mxu0 %v2529
      %3024 = vmatprep.subr.mxu0 0.0
      %3025 = vmatpush1.msra.mxu0 %v2528
      %3026 = vmatprep.subr.mxu0 0.0
      %3027 = vmatpush1.msra.mxu0 %v2527
      %3028 = vmatprep.subr.mxu0 0.0
      %3029 = vmatpush1.msra.mxu0 %v2526
      %3030 = vmatprep.subr.mxu0 0.0
      %3031 = vmatpush1.msra.mxu0 %v2525
      %3032 = vmatprep.subr.mxu0 0.0
      %3033 = vmatpush1.msra.mxu0 %v2524
      %3034 = vmatprep.subr.mxu0 0.0
      %3035 = vmatpush2.msra.mxu0 0.0
      %3036 = vmatprep.subr.mxu0 0.0
      %3037 = vmatpush2.msra.mxu0 0.0
      %3038 = vmatprep.subr.mxu0 0.0
      %3039 = vmatpush2.msra.mxu0 0.0
      %3040 = vmatprep.subr.mxu0 0.0
      %3041 = vmatpush2.msra.mxu0 0.0
      %3042 = vmatprep.subr.mxu0 0.0
      %3043 = vmatpush2.msra.mxu0 0.0
      %3044 = vmatprep.subr.mxu0 0.0
      %3045 = vmatpush2.msra.mxu0 0.0
      %3046 = vmatprep.subr.mxu0 0.0
      %3047 = vmatpush2.msra.mxu0 0.0
      %3048 = vmatprep.subr.mxu0 0.0
      %3049 = vmatpush2.msra.mxu0 0.0
      %3050 = vmatprep.subr.mxu0 0.0
      %3051 = vmatpush2.msra.mxu0 0.0
      %3052 = vmatprep.subr.mxu0 0.0
      %3053 = vmatpush2.msra.mxu0 0.0
      %3054 = vmatprep.subr.mxu0 0.0
      %3055 = vmatpush2.msra.mxu0 0.0
      %3056 = vmatprep.subr.mxu0 0.0
      %3057 = vmatpush2.msra.mxu0 0.0
      %3058 = vmatprep.subr.mxu0 0.0
      %3059 = vmatpush2.msra.mxu0 0.0
      %3060 = vmatprep.subr.mxu0 0.0
      %3061 = vmatpush2.msra.mxu0 0.0
      %3062 = vmatprep.subr.mxu0 0.0
      %3063 = vmatpush2.msra.mxu0 0.0
      %3064 = vmatprep.subr.mxu0 0.0
      %3065 = vmatpush2.msra.mxu0 0.0
      %3066 = vmatprep.mubr.f32.mxu0 0.0
      %3067 = vmatmul.mubr.f32.gmra.mxu0 %v3000
      %v3068 = vpop.f32.mrf.mxu0
      %v3069 = vadd.f32 0.0, %v3068
      %v3070 = vpop.f32.mrf.mxu0
      %3071 = vdwg.mxu0
      %v3072 = vadd.f32 %v2996, %v3069
      %v3073 = vmax.f32 %v2852, %v3072
      %3074 = vmatprep.subr.mxu0 0.0
      %3075 = vmatpush1.msra.mxu0 0.0
      %3076 = vmatprep.subr.mxu0 0.0
      %3077 = vmatpush1.msra.mxu0 0.0
      %3078 = vmatprep.subr.mxu0 0.0
      %3079 = vmatpush1.msra.mxu0 0.0
      %3080 = vmatprep.subr.mxu0 0.0
      %3081 = vmatpush1.msra.mxu0 0.0
      %3082 = vmatprep.subr.mxu0 0.0
      %3083 = vmatpush1.msra.mxu0 0.0
      %3084 = vmatprep.subr.mxu0 0.0
      %3085 = vmatpush1.msra.mxu0 0.0
      %3086 = vmatprep.subr.mxu0 0.0
      %3087 = vmatpush1.msra.mxu0 %v2629
      %3088 = vmatprep.subr.mxu0 0.0
      %3089 = vmatpush1.msra.mxu0 %v2628
      %3090 = vmatprep.subr.mxu0 0.0
      %3091 = vmatpush1.msra.mxu0 %v2627
      %3092 = vmatprep.subr.mxu0 0.0
      %3093 = vmatpush1.msra.mxu0 %v2626
      %3094 = vmatprep.subr.mxu0 0.0
      %3095 = vmatpush1.msra.mxu0 %v2625
      %3096 = vmatprep.subr.mxu0 0.0
      %3097 = vmatpush1.msra.mxu0 %v2624
      %3098 = vmatprep.subr.mxu0 0.0
      %3099 = vmatpush1.msra.mxu0 %v2623
      %3100 = vmatprep.subr.mxu0 0.0
      %3101 = vmatpush1.msra.mxu0 %v2622
      %3102 = vmatprep.subr.mxu0 0.0
      %3103 = vmatpush1.msra.mxu0 %v2621
      %3104 = vmatprep.subr.mxu0 0.0
      %3105 = vmatpush1.msra.mxu0 %v2620
      %3106 = vmatprep.subr.mxu0 0.0
      %3107 = vmatpush2.msra.mxu0 0.0
      %3108 = vmatprep.subr.mxu0 0.0
      %3109 = vmatpush2.msra.mxu0 0.0
      %3110 = vmatprep.subr.mxu0 0.0
      %3111 = vmatpush2.msra.mxu0 0.0
      %3112 = vmatprep.subr.mxu0 0.0
      %3113 = vmatpush2.msra.mxu0 0.0
      %3114 = vmatprep.subr.mxu0 0.0
      %3115 = vmatpush2.msra.mxu0 0.0
      %3116 = vmatprep.subr.mxu0 0.0
      %3117 = vmatpush2.msra.mxu0 0.0
      %3118 = vmatprep.subr.mxu0 0.0
      %3119 = vmatpush2.msra.mxu0 0.0
      %3120 = vmatprep.subr.mxu0 0.0
      %3121 = vmatpush2.msra.mxu0 0.0
      %3122 = vmatprep.subr.mxu0 0.0
      %3123 = vmatpush2.msra.mxu0 0.0
      %3124 = vmatprep.subr.mxu0 0.0
      %3125 = vmatpush2.msra.mxu0 0.0
      %3126 = vmatprep.subr.mxu0 0.0
      %3127 = vmatpush2.msra.mxu0 0.0
      %3128 = vmatprep.subr.mxu0 0.0
      %3129 = vmatpush2.msra.mxu0 0.0
      %3130 = vmatprep.subr.mxu0 0.0
      %3131 = vmatpush2.msra.mxu0 0.0
      %3132 = vmatprep.subr.mxu0 0.0
      %3133 = vmatpush2.msra.mxu0 0.0
      %3134 = vmatprep.subr.mxu0 0.0
      %3135 = vmatpush2.msra.mxu0 0.0
      %3136 = vmatprep.subr.mxu0 0.0
      %3137 = vmatpush2.msra.mxu0 0.0
      %3138 = vmatprep.mubr.f32.mxu0 0.0
      %3139 = vmatmul.mubr.f32.gmra.mxu0 %v2854
      %v3140 = vpop.f32.mrf.mxu0
      %v3141 = vadd.f32 0.0, %v3140
      %v3142 = vpop.f32.mrf.mxu0
      %3143 = vdwg.mxu0
      %3144 = vmatprep.subr.mxu0 0.0
      %3145 = vmatpush1.msra.mxu0 0.0
      %3146 = vmatprep.subr.mxu0 0.0
      %3147 = vmatpush1.msra.mxu0 0.0
      %3148 = vmatprep.subr.mxu0 0.0
      %3149 = vmatpush1.msra.mxu0 0.0
      %3150 = vmatprep.subr.mxu0 0.0
      %3151 = vmatpush1.msra.mxu0 0.0
      %3152 = vmatprep.subr.mxu0 0.0
      %3153 = vmatpush1.msra.mxu0 0.0
      %3154 = vmatprep.subr.mxu0 0.0
      %3155 = vmatpush1.msra.mxu0 0.0
      %3156 = vmatprep.subr.mxu0 0.0
      %3157 = vmatpush1.msra.mxu0 %v2618
      %3158 = vmatprep.subr.mxu0 0.0
      %3159 = vmatpush1.msra.mxu0 %v2617
      %3160 = vmatprep.subr.mxu0 0.0
      %3161 = vmatpush1.msra.mxu0 %v2616
      %3162 = vmatprep.subr.mxu0 0.0
      %3163 = vmatpush1.msra.mxu0 %v2615
      %3164 = vmatprep.subr.mxu0 0.0
      %3165 = vmatpush1.msra.mxu0 %v2614
      %3166 = vmatprep.subr.mxu0 0.0
      %3167 = vmatpush1.msra.mxu0 %v2613
      %3168 = vmatprep.subr.mxu0 0.0
      %3169 = vmatpush1.msra.mxu0 %v2612
      %3170 = vmatprep.subr.mxu0 0.0
      %3171 = vmatpush1.msra.mxu0 %v2611
      %3172 = vmatprep.subr.mxu0 0.0
      %3173 = vmatpush1.msra.mxu0 %v2610
      %3174 = vmatprep.subr.mxu0 0.0
      %3175 = vmatpush1.msra.mxu0 %v2609
      %3176 = vmatprep.subr.mxu0 0.0
      %3177 = vmatpush2.msra.mxu0 0.0
      %3178 = vmatprep.subr.mxu0 0.0
      %3179 = vmatpush2.msra.mxu0 0.0
      %3180 = vmatprep.subr.mxu0 0.0
      %3181 = vmatpush2.msra.mxu0 0.0
      %3182 = vmatprep.subr.mxu0 0.0
      %3183 = vmatpush2.msra.mxu0 0.0
      %3184 = vmatprep.subr.mxu0 0.0
      %3185 = vmatpush2.msra.mxu0 0.0
      %3186 = vmatprep.subr.mxu0 0.0
      %3187 = vmatpush2.msra.mxu0 0.0
      %3188 = vmatprep.subr.mxu0 0.0
      %3189 = vmatpush2.msra.mxu0 0.0
      %3190 = vmatprep.subr.mxu0 0.0
      %3191 = vmatpush2.msra.mxu0 0.0
      %3192 = vmatprep.subr.mxu0 0.0
      %3193 = vmatpush2.msra.mxu0 0.0
      %3194 = vmatprep.subr.mxu0 0.0
      %3195 = vmatpush2.msra.mxu0 0.0
      %3196 = vmatprep.subr.mxu0 0.0
      %3197 = vmatpush2.msra.mxu0 0.0
      %3198 = vmatprep.subr.mxu0 0.0
      %3199 = vmatpush2.msra.mxu0 0.0
      %3200 = vmatprep.subr.mxu0 0.0
      %3201 = vmatpush2.msra.mxu0 0.0
      %3202 = vmatprep.subr.mxu0 0.0
      %3203 = vmatpush2.msra.mxu0 0.0
      %3204 = vmatprep.subr.mxu0 0.0
      %3205 = vmatpush2.msra.mxu0 0.0
      %3206 = vmatprep.subr.mxu0 0.0
      %3207 = vmatpush2.msra.mxu0 0.0
      %3208 = vmatprep.mubr.f32.mxu0 0.0
      %3209 = vmatmul.mubr.f32.gmra.mxu0 %v2927
      %v3210 = vpop.f32.mrf.mxu0
      %v3211 = vadd.f32 %v3141, %v3210
      %v3212 = vpop.f32.mrf.mxu0
      %3213 = vdwg.mxu0
      %3214 = vmatprep.subr.mxu0 0.0
      %3215 = vmatpush1.msra.mxu0 0.0
      %3216 = vmatprep.subr.mxu0 0.0
      %3217 = vmatpush1.msra.mxu0 0.0
      %3218 = vmatprep.subr.mxu0 0.0
      %3219 = vmatpush1.msra.mxu0 0.0
      %3220 = vmatprep.subr.mxu0 0.0
      %3221 = vmatpush1.msra.mxu0 0.0
      %3222 = vmatprep.subr.mxu0 0.0
      %3223 = vmatpush1.msra.mxu0 0.0
      %3224 = vmatprep.subr.mxu0 0.0
      %3225 = vmatpush1.msra.mxu0 0.0
      %3226 = vmatprep.subr.mxu0 0.0
      %3227 = vmatpush1.msra.mxu0 %v2780
      %3228 = vmatprep.subr.mxu0 0.0
      %3229 = vmatpush1.msra.mxu0 %v2779
      %3230 = vmatprep.subr.mxu0 0.0
      %3231 = vmatpush1.msra.mxu0 %v2778
      %3232 = vmatprep.subr.mxu0 0.0
      %3233 = vmatpush1.msra.mxu0 %v2777
      %3234 = vmatprep.subr.mxu0 0.0
      %3235 = vmatpush1.msra.mxu0 %v2776
      %3236 = vmatprep.subr.mxu0 0.0
      %3237 = vmatpush1.msra.mxu0 %v2775
      %3238 = vmatprep.subr.mxu0 0.0
      %3239 = vmatpush1.msra.mxu0 %v2774
      %3240 = vmatprep.subr.mxu0 0.0
      %3241 = vmatpush1.msra.mxu0 %v2773
      %3242 = vmatprep.subr.mxu0 0.0
      %3243 = vmatpush1.msra.mxu0 %v2772
      %3244 = vmatprep.subr.mxu0 0.0
      %3245 = vmatpush1.msra.mxu0 %v2771
      %3246 = vmatprep.subr.mxu0 0.0
      %3247 = vmatpush2.msra.mxu0 0.0
      %3248 = vmatprep.subr.mxu0 0.0
      %3249 = vmatpush2.msra.mxu0 0.0
      %3250 = vmatprep.subr.mxu0 0.0
      %3251 = vmatpush2.msra.mxu0 0.0
      %3252 = vmatprep.subr.mxu0 0.0
      %3253 = vmatpush2.msra.mxu0 0.0
      %3254 = vmatprep.subr.mxu0 0.0
      %3255 = vmatpush2.msra.mxu0 0.0
      %3256 = vmatprep.subr.mxu0 0.0
      %3257 = vmatpush2.msra.mxu0 0.0
      %3258 = vmatprep.subr.mxu0 0.0
      %3259 = vmatpush2.msra.mxu0 0.0
      %3260 = vmatprep.subr.mxu0 0.0
      %3261 = vmatpush2.msra.mxu0 0.0
      %3262 = vmatprep.subr.mxu0 0.0
      %3263 = vmatpush2.msra.mxu0 0.0
      %3264 = vmatprep.subr.mxu0 0.0
      %3265 = vmatpush2.msra.mxu0 0.0
      %3266 = vmatprep.subr.mxu0 0.0
      %3267 = vmatpush2.msra.mxu0 0.0
      %3268 = vmatprep.subr.mxu0 0.0
      %3269 = vmatpush2.msra.mxu0 0.0
      %3270 = vmatprep.subr.mxu0 0.0
      %3271 = vmatpush2.msra.mxu0 0.0
      %3272 = vmatprep.subr.mxu0 0.0
      %3273 = vmatpush2.msra.mxu0 0.0
      %3274 = vmatprep.subr.mxu0 0.0
      %3275 = vmatpush2.msra.mxu0 0.0
      %3276 = vmatprep.subr.mxu0 0.0
      %3277 = vmatpush2.msra.mxu0 0.0
      %3278 = vmatprep.mubr.f32.mxu0 0.0
      %3279 = vmatmul.mubr.f32.gmra.mxu0 %v3000
      %v3280 = vpop.f32.mrf.mxu0
      %v3281 = vadd.f32 0.0, %v3280
      %v3282 = vpop.f32.mrf.mxu0
      %3283 = vdwg.mxu0
      %v3284 = vadd.f32 %v3211, %v3281
      %v3285 = vmax.f32 %v3073, %v3284
      %v3286 = vld [vmem:[%s6] sm:$0x1]
      %v3288 = vlaneseq
      %v3289 = vshrl.u32 %v3288, 7
      %v3290 = vsub.s32 0, %v3289
      %v3291 = vrot.slane %v3286, %v3290
      %v3293 = vadd.f32 %v3285, %v3291
      %v3294 = vmax.f32 %v3293, 0.0
      %v3295 = vld [vmem:[%s7] sm:$0x1f]
      %vm3296 = vcmask 15360
      %v3298 = vsel %vm3296, %v3295, 0
      %vm3300 = vcmask 1041408
      %v3302 = vsel %vm3300, %v3294, 0
      %3304 = vmatprep.subr.mxu0 0.0
      %3305 = vmatpush1.msra.mxu0 0.0
      %3306 = vmatprep.subr.mxu0 0.0
      %3307 = vmatpush1.msra.mxu0 0.0
      %3308 = vmatprep.subr.mxu0 0.0
      %3309 = vmatpush1.msra.mxu0 0.0
      %3310 = vmatprep.subr.mxu0 0.0
      %3311 = vmatpush1.msra.mxu0 0.0
      %3312 = vmatprep.subr.mxu0 0.0
      %3313 = vmatpush1.msra.mxu0 0.0
      %3314 = vmatprep.subr.mxu0 0.0
      %3315 = vmatpush1.msra.mxu0 0.0
      %3316 = vmatprep.subr.mxu0 0.0
      %3317 = vmatpush1.msra.mxu0 0.0
      %3318 = vmatprep.subr.mxu0 0.0
      %3319 = vmatpush1.msra.mxu0 0.0
      %3320 = vmatprep.subr.mxu0 0.0
      %3321 = vmatpush1.msra.mxu0 0.0
      %3322 = vmatprep.subr.mxu0 0.0
      %3323 = vmatpush1.msra.mxu0 0.0
      %3324 = vmatprep.subr.mxu0 0.0
      %3325 = vmatpush1.msra.mxu0 0.0
      %3326 = vmatprep.subr.mxu0 0.0
      %3327 = vmatpush1.msra.mxu0 0.0
      %3328 = vmatprep.subr.mxu0 0.0
      %3329 = vmatpush1.msra.mxu0 0.0
      %3330 = vmatprep.subr.mxu0 0.0
      %3331 = vmatpush1.msra.mxu0 0.0
      %3332 = vmatprep.subr.mxu0 0.0
      %3333 = vmatpush1.msra.mxu0 0.0
      %3334 = vmatprep.subr.mxu0 0.0
      %3335 = vmatpush1.msra.mxu0 %v3302
      %3336 = vmatprep.subr.mxu0 0.0
      %3337 = vmatpush2.msra.mxu0 0.0
      %3338 = vmatprep.subr.mxu0 0.0
      %3339 = vmatpush2.msra.mxu0 0.0
      %3340 = vmatprep.subr.mxu0 0.0
      %3341 = vmatpush2.msra.mxu0 0.0
      %3342 = vmatprep.subr.mxu0 0.0
      %3343 = vmatpush2.msra.mxu0 0.0
      %3344 = vmatprep.subr.mxu0 0.0
      %3345 = vmatpush2.msra.mxu0 0.0
      %3346 = vmatprep.subr.mxu0 0.0
      %3347 = vmatpush2.msra.mxu0 0.0
      %3348 = vmatprep.subr.mxu0 0.0
      %3349 = vmatpush2.msra.mxu0 0.0
      %3350 = vmatprep.subr.mxu0 0.0
      %3351 = vmatpush2.msra.mxu0 0.0
      %3352 = vmatprep.subr.mxu0 0.0
      %3353 = vmatpush2.msra.mxu0 0.0
      %3354 = vmatprep.subr.mxu0 0.0
      %3355 = vmatpush2.msra.mxu0 0.0
      %3356 = vmatprep.subr.mxu0 0.0
      %3357 = vmatpush2.msra.mxu0 0.0
      %3358 = vmatprep.subr.mxu0 0.0
      %3359 = vmatpush2.msra.mxu0 0.0
      %3360 = vmatprep.subr.mxu0 0.0
      %3361 = vmatpush2.msra.mxu0 0.0
      %3362 = vmatprep.subr.mxu0 0.0
      %3363 = vmatpush2.msra.mxu0 0.0
      %3364 = vmatprep.subr.mxu0 0.0
      %3365 = vmatpush2.msra.mxu0 0.0
      %3366 = vmatprep.subr.mxu0 0.0
      %3367 = vmatpush2.msra.mxu0 0.0
      %3368 = vmatprep.mubr.f32.mxu0 0.0
      %3369 = vmatmul.mubr.f32.gmra.mxu0 %v3298
      %v3370 = vpop.f32.mrf.mxu0
      %v3371 = vadd.f32 0.0, %v3370
      %v3372 = vpop.f32.mrf.mxu0
      %3373 = vdwg.mxu0
      %s3374 = scalar_lea.vmem %s7, 8
      %v3375 = vld [vmem:[%s3374] sm:$0x1f]
      %v3377 = vsel %vm3296, %v3375, 0
      %3379 = vmatprep.subr.mxu0 0.0
      %3380 = vmatpush1.msra.mxu0 0.0
      %3381 = vmatprep.subr.mxu0 0.0
      %3382 = vmatpush1.msra.mxu0 0.0
      %3383 = vmatprep.subr.mxu0 0.0
      %3384 = vmatpush1.msra.mxu0 0.0
      %3385 = vmatprep.subr.mxu0 0.0
      %3386 = vmatpush1.msra.mxu0 0.0
      %3387 = vmatprep.subr.mxu0 0.0
      %3388 = vmatpush1.msra.mxu0 0.0
      %3389 = vmatprep.subr.mxu0 0.0
      %3390 = vmatpush1.msra.mxu0 0.0
      %3391 = vmatprep.subr.mxu0 0.0
      %3392 = vmatpush1.msra.mxu0 0.0
      %3393 = vmatprep.subr.mxu0 0.0
      %3394 = vmatpush1.msra.mxu0 0.0
      %3395 = vmatprep.subr.mxu0 0.0
      %3396 = vmatpush1.msra.mxu0 0.0
      %3397 = vmatprep.subr.mxu0 0.0
      %3398 = vmatpush1.msra.mxu0 0.0
      %3399 = vmatprep.subr.mxu0 0.0
      %3400 = vmatpush1.msra.mxu0 0.0
      %3401 = vmatprep.subr.mxu0 0.0
      %3402 = vmatpush1.msra.mxu0 0.0
      %3403 = vmatprep.subr.mxu0 0.0
      %3404 = vmatpush1.msra.mxu0 0.0
      %3405 = vmatprep.subr.mxu0 0.0
      %3406 = vmatpush1.msra.mxu0 0.0
      %3407 = vmatprep.subr.mxu0 0.0
      %3408 = vmatpush1.msra.mxu0 0.0
      %3409 = vmatprep.subr.mxu0 0.0
      %3410 = vmatpush1.msra.mxu0 %v3302
      %3411 = vmatprep.subr.mxu0 0.0
      %3412 = vmatpush2.msra.mxu0 0.0
      %3413 = vmatprep.subr.mxu0 0.0
      %3414 = vmatpush2.msra.mxu0 0.0
      %3415 = vmatprep.subr.mxu0 0.0
      %3416 = vmatpush2.msra.mxu0 0.0
      %3417 = vmatprep.subr.mxu0 0.0
      %3418 = vmatpush2.msra.mxu0 0.0
      %3419 = vmatprep.subr.mxu0 0.0
      %3420 = vmatpush2.msra.mxu0 0.0
      %3421 = vmatprep.subr.mxu0 0.0
      %3422 = vmatpush2.msra.mxu0 0.0
      %3423 = vmatprep.subr.mxu0 0.0
      %3424 = vmatpush2.msra.mxu0 0.0
      %3425 = vmatprep.subr.mxu0 0.0
      %3426 = vmatpush2.msra.mxu0 0.0
      %3427 = vmatprep.subr.mxu0 0.0
      %3428 = vmatpush2.msra.mxu0 0.0
      %3429 = vmatprep.subr.mxu0 0.0
      %3430 = vmatpush2.msra.mxu0 0.0
      %3431 = vmatprep.subr.mxu0 0.0
      %3432 = vmatpush2.msra.mxu0 0.0
      %3433 = vmatprep.subr.mxu0 0.0
      %3434 = vmatpush2.msra.mxu0 0.0
      %3435 = vmatprep.subr.mxu0 0.0
      %3436 = vmatpush2.msra.mxu0 0.0
      %3437 = vmatprep.subr.mxu0 0.0
      %3438 = vmatpush2.msra.mxu0 0.0
      %3439 = vmatprep.subr.mxu0 0.0
      %3440 = vmatpush2.msra.mxu0 0.0
      %3441 = vmatprep.subr.mxu0 0.0
      %3442 = vmatpush2.msra.mxu0 0.0
      %3443 = vmatprep.mubr.f32.mxu0 0.0
      %3444 = vmatmul.mubr.f32.gmra.mxu0 %v3377
      %v3445 = vpop.f32.mrf.mxu0
      %v3446 = vadd.f32 0.0, %v3445
      %v3447 = vpop.f32.mrf.mxu0
      %3448 = vdwg.mxu0
      %s3449 = scalar_lea.vmem %s7, 16
      %v3450 = vld [vmem:[%s3449] sm:$0x1f]
      %v3452 = vsel %vm3296, %v3450, 0
      %3454 = vmatprep.subr.mxu0 0.0
      %3455 = vmatpush1.msra.mxu0 0.0
      %3456 = vmatprep.subr.mxu0 0.0
      %3457 = vmatpush1.msra.mxu0 0.0
      %3458 = vmatprep.subr.mxu0 0.0
      %3459 = vmatpush1.msra.mxu0 0.0
      %3460 = vmatprep.subr.mxu0 0.0
      %3461 = vmatpush1.msra.mxu0 0.0
      %3462 = vmatprep.subr.mxu0 0.0
      %3463 = vmatpush1.msra.mxu0 0.0
      %3464 = vmatprep.subr.mxu0 0.0
      %3465 = vmatpush1.msra.mxu0 0.0
      %3466 = vmatprep.subr.mxu0 0.0
      %3467 = vmatpush1.msra.mxu0 0.0
      %3468 = vmatprep.subr.mxu0 0.0
      %3469 = vmatpush1.msra.mxu0 0.0
      %3470 = vmatprep.subr.mxu0 0.0
      %3471 = vmatpush1.msra.mxu0 0.0
      %3472 = vmatprep.subr.mxu0 0.0
      %3473 = vmatpush1.msra.mxu0 0.0
      %3474 = vmatprep.subr.mxu0 0.0
      %3475 = vmatpush1.msra.mxu0 0.0
      %3476 = vmatprep.subr.mxu0 0.0
      %3477 = vmatpush1.msra.mxu0 0.0
      %3478 = vmatprep.subr.mxu0 0.0
      %3479 = vmatpush1.msra.mxu0 0.0
      %3480 = vmatprep.subr.mxu0 0.0
      %3481 = vmatpush1.msra.mxu0 0.0
      %3482 = vmatprep.subr.mxu0 0.0
      %3483 = vmatpush1.msra.mxu0 0.0
      %3484 = vmatprep.subr.mxu0 0.0
      %3485 = vmatpush1.msra.mxu0 %v3302
      %3486 = vmatprep.subr.mxu0 0.0
      %3487 = vmatpush2.msra.mxu0 0.0
      %3488 = vmatprep.subr.mxu0 0.0
      %3489 = vmatpush2.msra.mxu0 0.0
      %3490 = vmatprep.subr.mxu0 0.0
      %3491 = vmatpush2.msra.mxu0 0.0
      %3492 = vmatprep.subr.mxu0 0.0
      %3493 = vmatpush2.msra.mxu0 0.0
      %3494 = vmatprep.subr.mxu0 0.0
      %3495 = vmatpush2.msra.mxu0 0.0
      %3496 = vmatprep.subr.mxu0 0.0
      %3497 = vmatpush2.msra.mxu0 0.0
      %3498 = vmatprep.subr.mxu0 0.0
      %3499 = vmatpush2.msra.mxu0 0.0
      %3500 = vmatprep.subr.mxu0 0.0
      %3501 = vmatpush2.msra.mxu0 0.0
      %3502 = vmatprep.subr.mxu0 0.0
      %3503 = vmatpush2.msra.mxu0 0.0
      %3504 = vmatprep.subr.mxu0 0.0
      %3505 = vmatpush2.msra.mxu0 0.0
      %3506 = vmatprep.subr.mxu0 0.0
      %3507 = vmatpush2.msra.mxu0 0.0
      %3508 = vmatprep.subr.mxu0 0.0
      %3509 = vmatpush2.msra.mxu0 0.0
      %3510 = vmatprep.subr.mxu0 0.0
      %3511 = vmatpush2.msra.mxu0 0.0
      %3512 = vmatprep.subr.mxu0 0.0
      %3513 = vmatpush2.msra.mxu0 0.0
      %3514 = vmatprep.subr.mxu0 0.0
      %3515 = vmatpush2.msra.mxu0 0.0
      %3516 = vmatprep.subr.mxu0 0.0
      %3517 = vmatpush2.msra.mxu0 0.0
      %3518 = vmatprep.mubr.f32.mxu0 0.0
      %3519 = vmatmul.mubr.f32.gmra.mxu0 %v3452
      %v3520 = vpop.f32.mrf.mxu0
      %v3521 = vadd.f32 0.0, %v3520
      %v3522 = vpop.f32.mrf.mxu0
      %3523 = vdwg.mxu0
      %v3524 = vld [vmem:[%s8] sm:$0xff]
      %v3525 = vld [vmem:[%s8 + $0x8] sm:$0xff]
      %s3526 = scalar_lea.vmem %s8, 16
      %v3527 = vld [vmem:[%s3526] sm:$0xff]
      %v3528 = vld [vmem:[%s3526 + $0x8] sm:$0xff]
      %vm3529 = vcmask 130048
      %v3531 = vsel %vm3529, %v3446, 0
      %3533 = vmatprep.subr.mxu0 0.0
      %3534 = vmatpush1.msra.mxu0 0.0
      %3535 = vmatprep.subr.mxu0 0.0
      %3536 = vmatpush1.msra.mxu0 0.0
      %3537 = vmatprep.subr.mxu0 0.0
      %3538 = vmatpush1.msra.mxu0 0.0
      %3539 = vmatprep.subr.mxu0 0.0
      %3540 = vmatpush1.msra.mxu0 0.0
      %3541 = vmatprep.subr.mxu0 0.0
      %3542 = vmatpush1.msra.mxu0 0.0
      %3543 = vmatprep.subr.mxu0 0.0
      %3544 = vmatpush1.msra.mxu0 0.0
      %3545 = vmatprep.subr.mxu0 0.0
      %3546 = vmatpush1.msra.mxu0 0.0
      %3547 = vmatprep.subr.mxu0 0.0
      %3548 = vmatpush1.msra.mxu0 0.0
      %3549 = vmatprep.subr.mxu0 0.0
      %3550 = vmatpush1.msra.mxu0 0.0
      %3551 = vmatprep.subr.mxu0 0.0
      %3552 = vmatpush1.msra.mxu0 0.0
      %3553 = vmatprep.subr.mxu0 0.0
      %3554 = vmatpush1.msra.mxu0 0.0
      %3555 = vmatprep.subr.mxu0 0.0
      %3556 = vmatpush1.msra.mxu0 0.0
      %3557 = vmatprep.subr.mxu0 0.0
      %3558 = vmatpush1.msra.mxu0 0.0
      %3559 = vmatprep.subr.mxu0 0.0
      %3560 = vmatpush1.msra.mxu0 0.0
      %3561 = vmatprep.subr.mxu0 0.0
      %3562 = vmatpush1.msra.mxu0 %v3528
      %3563 = vmatprep.subr.mxu0 0.0
      %3564 = vmatpush1.msra.mxu0 %v3527
      %3565 = vmatprep.subr.mxu0 0.0
      %3566 = vmatpush2.msra.mxu0 0.0
      %3567 = vmatprep.subr.mxu0 0.0
      %3568 = vmatpush2.msra.mxu0 0.0
      %3569 = vmatprep.subr.mxu0 0.0
      %3570 = vmatpush2.msra.mxu0 0.0
      %3571 = vmatprep.subr.mxu0 0.0
      %3572 = vmatpush2.msra.mxu0 0.0
      %3573 = vmatprep.subr.mxu0 0.0
      %3574 = vmatpush2.msra.mxu0 0.0
      %3575 = vmatprep.subr.mxu0 0.0
      %3576 = vmatpush2.msra.mxu0 0.0
      %3577 = vmatprep.subr.mxu0 0.0
      %3578 = vmatpush2.msra.mxu0 0.0
      %3579 = vmatprep.subr.mxu0 0.0
      %3580 = vmatpush2.msra.mxu0 0.0
      %3581 = vmatprep.subr.mxu0 0.0
      %3582 = vmatpush2.msra.mxu0 0.0
      %3583 = vmatprep.subr.mxu0 0.0
      %3584 = vmatpush2.msra.mxu0 0.0
      %3585 = vmatprep.subr.mxu0 0.0
      %3586 = vmatpush2.msra.mxu0 0.0
      %3587 = vmatprep.subr.mxu0 0.0
      %3588 = vmatpush2.msra.mxu0 0.0
      %3589 = vmatprep.subr.mxu0 0.0
      %3590 = vmatpush2.msra.mxu0 0.0
      %3591 = vmatprep.subr.mxu0 0.0
      %3592 = vmatpush2.msra.mxu0 0.0
      %3593 = vmatprep.subr.mxu0 0.0
      %3594 = vmatpush2.msra.mxu0 0.0
      %3595 = vmatprep.subr.mxu0 0.0
      %3596 = vmatpush2.msra.mxu0 0.0
      %3597 = vmatprep.mubr.f32.mxu0 0.0
      %3598 = vmatmul.mubr.f32.gmra.mxu0 %v3531
      %v3599 = vpop.f32.mrf.mxu0
      %v3600 = vadd.f32 0.0, %v3599
      %v3601 = vpop.f32.mrf.mxu0
      %3602 = vdwg.mxu0
      %v3604 = vsel %vm3529, %v3371, 0
      %3606 = vmatprep.subr.mxu0 0.0
      %3607 = vmatpush1.msra.mxu0 0.0
      %3608 = vmatprep.subr.mxu0 0.0
      %3609 = vmatpush1.msra.mxu0 0.0
      %3610 = vmatprep.subr.mxu0 0.0
      %3611 = vmatpush1.msra.mxu0 0.0
      %3612 = vmatprep.subr.mxu0 0.0
      %3613 = vmatpush1.msra.mxu0 0.0
      %3614 = vmatprep.subr.mxu0 0.0
      %3615 = vmatpush1.msra.mxu0 0.0
      %3616 = vmatprep.subr.mxu0 0.0
      %3617 = vmatpush1.msra.mxu0 0.0
      %3618 = vmatprep.subr.mxu0 0.0
      %3619 = vmatpush1.msra.mxu0 0.0
      %3620 = vmatprep.subr.mxu0 0.0
      %3621 = vmatpush1.msra.mxu0 0.0
      %3622 = vmatprep.subr.mxu0 0.0
      %3623 = vmatpush1.msra.mxu0 0.0
      %3624 = vmatprep.subr.mxu0 0.0
      %3625 = vmatpush1.msra.mxu0 0.0
      %3626 = vmatprep.subr.mxu0 0.0
      %3627 = vmatpush1.msra.mxu0 0.0
      %3628 = vmatprep.subr.mxu0 0.0
      %3629 = vmatpush1.msra.mxu0 0.0
      %3630 = vmatprep.subr.mxu0 0.0
      %3631 = vmatpush1.msra.mxu0 0.0
      %3632 = vmatprep.subr.mxu0 0.0
      %3633 = vmatpush1.msra.mxu0 0.0
      %3634 = vmatprep.subr.mxu0 0.0
      %3635 = vmatpush1.msra.mxu0 %v3525
      %3636 = vmatprep.subr.mxu0 0.0
      %3637 = vmatpush1.msra.mxu0 %v3524
      %3638 = vmatprep.subr.mxu0 0.0
      %3639 = vmatpush2.msra.mxu0 0.0
      %3640 = vmatprep.subr.mxu0 0.0
      %3641 = vmatpush2.msra.mxu0 0.0
      %3642 = vmatprep.subr.mxu0 0.0
      %3643 = vmatpush2.msra.mxu0 0.0
      %3644 = vmatprep.subr.mxu0 0.0
      %3645 = vmatpush2.msra.mxu0 0.0
      %3646 = vmatprep.subr.mxu0 0.0
      %3647 = vmatpush2.msra.mxu0 0.0
      %3648 = vmatprep.subr.mxu0 0.0
      %3649 = vmatpush2.msra.mxu0 0.0
      %3650 = vmatprep.subr.mxu0 0.0
      %3651 = vmatpush2.msra.mxu0 0.0
      %3652 = vmatprep.subr.mxu0 0.0
      %3653 = vmatpush2.msra.mxu0 0.0
      %3654 = vmatprep.subr.mxu0 0.0
      %3655 = vmatpush2.msra.mxu0 0.0
      %3656 = vmatprep.subr.mxu0 0.0
      %3657 = vmatpush2.msra.mxu0 0.0
      %3658 = vmatprep.subr.mxu0 0.0
      %3659 = vmatpush2.msra.mxu0 0.0
      %3660 = vmatprep.subr.mxu0 0.0
      %3661 = vmatpush2.msra.mxu0 0.0
      %3662 = vmatprep.subr.mxu0 0.0
      %3663 = vmatpush2.msra.mxu0 0.0
      %3664 = vmatprep.subr.mxu0 0.0
      %3665 = vmatpush2.msra.mxu0 0.0
      %3666 = vmatprep.subr.mxu0 0.0
      %3667 = vmatpush2.msra.mxu0 0.0
      %3668 = vmatprep.subr.mxu0 0.0
      %3669 = vmatpush2.msra.mxu0 0.0
      %3670 = vmatprep.mubr.f32.mxu0 0.0
      %3671 = vmatmul.mubr.f32.gmra.mxu0 %v3604
      %v3672 = vpop.f32.mrf.mxu0
      %v3673 = vadd.f32 %v3600, %v3672
      %v3674 = vpop.f32.mrf.mxu0
      %3675 = vdwg.mxu0
      %s3676 = scalar_lea.vmem %s8, 32
      %v3677 = vld [vmem:[%s3676] sm:$0xff]
      %v3678 = vld [vmem:[%s3676 + $0x8] sm:$0xff]
      %v3680 = vsel %vm3529, %v3521, 0
      %3682 = vmatprep.subr.mxu0 0.0
      %3683 = vmatpush1.msra.mxu0 0.0
      %3684 = vmatprep.subr.mxu0 0.0
      %3685 = vmatpush1.msra.mxu0 0.0
      %3686 = vmatprep.subr.mxu0 0.0
      %3687 = vmatpush1.msra.mxu0 0.0
      %3688 = vmatprep.subr.mxu0 0.0
      %3689 = vmatpush1.msra.mxu0 0.0
      %3690 = vmatprep.subr.mxu0 0.0
      %3691 = vmatpush1.msra.mxu0 0.0
      %3692 = vmatprep.subr.mxu0 0.0
      %3693 = vmatpush1.msra.mxu0 0.0
      %3694 = vmatprep.subr.mxu0 0.0
      %3695 = vmatpush1.msra.mxu0 0.0
      %3696 = vmatprep.subr.mxu0 0.0
      %3697 = vmatpush1.msra.mxu0 0.0
      %3698 = vmatprep.subr.mxu0 0.0
      %3699 = vmatpush1.msra.mxu0 0.0
      %3700 = vmatprep.subr.mxu0 0.0
      %3701 = vmatpush1.msra.mxu0 0.0
      %3702 = vmatprep.subr.mxu0 0.0
      %3703 = vmatpush1.msra.mxu0 0.0
      %3704 = vmatprep.subr.mxu0 0.0
      %3705 = vmatpush1.msra.mxu0 0.0
      %3706 = vmatprep.subr.mxu0 0.0
      %3707 = vmatpush1.msra.mxu0 0.0
      %3708 = vmatprep.subr.mxu0 0.0
      %3709 = vmatpush1.msra.mxu0 0.0
      %3710 = vmatprep.subr.mxu0 0.0
      %3711 = vmatpush1.msra.mxu0 %v3678
      %3712 = vmatprep.subr.mxu0 0.0
      %3713 = vmatpush1.msra.mxu0 %v3677
      %3714 = vmatprep.subr.mxu0 0.0
      %3715 = vmatpush2.msra.mxu0 0.0
      %3716 = vmatprep.subr.mxu0 0.0
      %3717 = vmatpush2.msra.mxu0 0.0
      %3718 = vmatprep.subr.mxu0 0.0
      %3719 = vmatpush2.msra.mxu0 0.0
      %3720 = vmatprep.subr.mxu0 0.0
      %3721 = vmatpush2.msra.mxu0 0.0
      %3722 = vmatprep.subr.mxu0 0.0
      %3723 = vmatpush2.msra.mxu0 0.0
      %3724 = vmatprep.subr.mxu0 0.0
      %3725 = vmatpush2.msra.mxu0 0.0
      %3726 = vmatprep.subr.mxu0 0.0
      %3727 = vmatpush2.msra.mxu0 0.0
      %3728 = vmatprep.subr.mxu0 0.0
      %3729 = vmatpush2.msra.mxu0 0.0
      %3730 = vmatprep.subr.mxu0 0.0
      %3731 = vmatpush2.msra.mxu0 0.0
      %3732 = vmatprep.subr.mxu0 0.0
      %3733 = vmatpush2.msra.mxu0 0.0
      %3734 = vmatprep.subr.mxu0 0.0
      %3735 = vmatpush2.msra.mxu0 0.0
      %3736 = vmatprep.subr.mxu0 0.0
      %3737 = vmatpush2.msra.mxu0 0.0
      %3738 = vmatprep.subr.mxu0 0.0
      %3739 = vmatpush2.msra.mxu0 0.0
      %3740 = vmatprep.subr.mxu0 0.0
      %3741 = vmatpush2.msra.mxu0 0.0
      %3742 = vmatprep.subr.mxu0 0.0
      %3743 = vmatpush2.msra.mxu0 0.0
      %3744 = vmatprep.subr.mxu0 0.0
      %3745 = vmatpush2.msra.mxu0 0.0
      %3746 = vmatprep.mubr.f32.mxu0 0.0
      %3747 = vmatmul.mubr.f32.gmra.mxu0 %v3680
      %v3748 = vpop.f32.mrf.mxu0
      %v3749 = vadd.f32 0.0, %v3748
      %v3750 = vpop.f32.mrf.mxu0
      %3751 = vdwg.mxu0
      %v3752 = vadd.f32 %v3673, %v3749
      %v3753 = vld [vmem:[%s9] sm:$0x1]
      %v3755 = vlaneseq
      %v3756 = vshrl.u32 %v3755, 7
      %v3757 = vsub.s32 0, %v3756
      %v3758 = vrot.slane %v3753, %v3757
      %v3760 = vadd.f32 %v3752, %v3758
      %v3761 = vmax.f32 %v3760, 0.0
      %v3762 = vld [vmem:[%s10] sm:$0xff]
      %v3763 = vld [vmem:[%s10 + $0x8] sm:$0x7f]
      %v3765 = vsel %vm1902, %v3762, 0
      %v3768 = vsel %vm1902, %v3763, 0
      %v3771 = vsel %vm1906, %v3761, 0
      %3773 = vmatprep.subr.mxu0 0.0
      %3774 = vmatpush1.msra.mxu0 0.0
      %3775 = vmatprep.subr.mxu0 0.0
      %3776 = vmatpush1.msra.mxu0 0.0
      %3777 = vmatprep.subr.mxu0 0.0
      %3778 = vmatpush1.msra.mxu0 0.0
      %3779 = vmatprep.subr.mxu0 0.0
      %3780 = vmatpush1.msra.mxu0 0.0
      %3781 = vmatprep.subr.mxu0 0.0
      %3782 = vmatpush1.msra.mxu0 0.0
      %3783 = vmatprep.subr.mxu0 0.0
      %3784 = vmatpush1.msra.mxu0 0.0
      %3785 = vmatprep.subr.mxu0 0.0
      %3786 = vmatpush1.msra.mxu0 0.0
      %3787 = vmatprep.subr.mxu0 0.0
      %3788 = vmatpush1.msra.mxu0 0.0
      %3789 = vmatprep.subr.mxu0 0.0
      %3790 = vmatpush1.msra.mxu0 0.0
      %3791 = vmatprep.subr.mxu0 0.0
      %3792 = vmatpush1.msra.mxu0 0.0
      %3793 = vmatprep.subr.mxu0 0.0
      %3794 = vmatpush1.msra.mxu0 0.0
      %3795 = vmatprep.subr.mxu0 0.0
      %3796 = vmatpush1.msra.mxu0 0.0
      %3797 = vmatprep.subr.mxu0 0.0
      %3798 = vmatpush1.msra.mxu0 0.0
      %3799 = vmatprep.subr.mxu0 0.0
      %3800 = vmatpush1.msra.mxu0 0.0
      %3801 = vmatprep.subr.mxu0 0.0
      %3802 = vmatpush1.msra.mxu0 0.0
      %3803 = vmatprep.subr.mxu0 0.0
      %3804 = vmatpush1.msra.mxu0 %v3771
      %3805 = vmatprep.subr.mxu0 0.0
      %3806 = vmatpush2.msra.mxu0 0.0
      %3807 = vmatprep.subr.mxu0 0.0
      %3808 = vmatpush2.msra.mxu0 0.0
      %3809 = vmatprep.subr.mxu0 0.0
      %3810 = vmatpush2.msra.mxu0 0.0
      %3811 = vmatprep.subr.mxu0 0.0
      %3812 = vmatpush2.msra.mxu0 0.0
      %3813 = vmatprep.subr.mxu0 0.0
      %3814 = vmatpush2.msra.mxu0 0.0
      %3815 = vmatprep.subr.mxu0 0.0
      %3816 = vmatpush2.msra.mxu0 0.0
      %3817 = vmatprep.subr.mxu0 0.0
      %3818 = vmatpush2.msra.mxu0 0.0
      %3819 = vmatprep.subr.mxu0 0.0
      %3820 = vmatpush2.msra.mxu0 0.0
      %3821 = vmatprep.subr.mxu0 0.0
      %3822 = vmatpush2.msra.mxu0 0.0
      %3823 = vmatprep.subr.mxu0 0.0
      %3824 = vmatpush2.msra.mxu0 0.0
      %3825 = vmatprep.subr.mxu0 0.0
      %3826 = vmatpush2.msra.mxu0 0.0
      %3827 = vmatprep.subr.mxu0 0.0
      %3828 = vmatpush2.msra.mxu0 0.0
      %3829 = vmatprep.subr.mxu0 0.0
      %3830 = vmatpush2.msra.mxu0 0.0
      %3831 = vmatprep.subr.mxu0 0.0
      %3832 = vmatpush2.msra.mxu0 0.0
      %3833 = vmatprep.subr.mxu0 0.0
      %3834 = vmatpush2.msra.mxu0 0.0
      %3835 = vmatprep.subr.mxu0 0.0
      %3836 = vmatpush2.msra.mxu0 0.0
      %3837 = vmatprep.mubr.f32.mxu0 0.0
      %3838 = vmatmul.mubr.f32.gmra.mxu0 %v3765
      %v3839 = vpop.f32.mrf.mxu0
      %v3840 = vadd.f32 0.0, %v3839
      %v3841 = vpop.f32.mrf.mxu0
      %3842 = vmatprep.mubr.f32.mxu0 0.0
      %3843 = vmatmul.mubr.f32.gmra.mxu0 %v3768
      %v3844 = vpop.f32.mrf.mxu0
      %v3845 = vadd.f32 0.0, %v3844
      %v3846 = vpop.f32.mrf.mxu0
      %3847 = vdwg.mxu0
      %s3848 = scalar_lea.vmem %s10, 16
      %v3849 = vld [vmem:[%s3848] sm:$0xff]
      %v3850 = vld [vmem:[%s3848 + $0x8] sm:$0x7f]
      %v3852 = vsel %vm1902, %v3849, 0
      %v3855 = vsel %vm1902, %v3850, 0
      %3857 = vmatprep.subr.mxu0 0.0
      %3858 = vmatpush1.msra.mxu0 0.0
      %3859 = vmatprep.subr.mxu0 0.0
      %3860 = vmatpush1.msra.mxu0 0.0
      %3861 = vmatprep.subr.mxu0 0.0
      %3862 = vmatpush1.msra.mxu0 0.0
      %3863 = vmatprep.subr.mxu0 0.0
      %3864 = vmatpush1.msra.mxu0 0.0
      %3865 = vmatprep.subr.mxu0 0.0
      %3866 = vmatpush1.msra.mxu0 0.0
      %3867 = vmatprep.subr.mxu0 0.0
      %3868 = vmatpush1.msra.mxu0 0.0
      %3869 = vmatprep.subr.mxu0 0.0
      %3870 = vmatpush1.msra.mxu0 0.0
      %3871 = vmatprep.subr.mxu0 0.0
      %3872 = vmatpush1.msra.mxu0 0.0
      %3873 = vmatprep.subr.mxu0 0.0
      %3874 = vmatpush1.msra.mxu0 0.0
      %3875 = vmatprep.subr.mxu0 0.0
      %3876 = vmatpush1.msra.mxu0 0.0
      %3877 = vmatprep.subr.mxu0 0.0
      %3878 = vmatpush1.msra.mxu0 0.0
      %3879 = vmatprep.subr.mxu0 0.0
      %3880 = vmatpush1.msra.mxu0 0.0
      %3881 = vmatprep.subr.mxu0 0.0
      %3882 = vmatpush1.msra.mxu0 0.0
      %3883 = vmatprep.subr.mxu0 0.0
      %3884 = vmatpush1.msra.mxu0 0.0
      %3885 = vmatprep.subr.mxu0 0.0
      %3886 = vmatpush1.msra.mxu0 0.0
      %3887 = vmatprep.subr.mxu0 0.0
      %3888 = vmatpush1.msra.mxu0 %v3771
      %3889 = vmatprep.subr.mxu0 0.0
      %3890 = vmatpush2.msra.mxu0 0.0
      %3891 = vmatprep.subr.mxu0 0.0
      %3892 = vmatpush2.msra.mxu0 0.0
      %3893 = vmatprep.subr.mxu0 0.0
      %3894 = vmatpush2.msra.mxu0 0.0
      %3895 = vmatprep.subr.mxu0 0.0
      %3896 = vmatpush2.msra.mxu0 0.0
      %3897 = vmatprep.subr.mxu0 0.0
      %3898 = vmatpush2.msra.mxu0 0.0
      %3899 = vmatprep.subr.mxu0 0.0
      %3900 = vmatpush2.msra.mxu0 0.0
      %3901 = vmatprep.subr.mxu0 0.0
      %3902 = vmatpush2.msra.mxu0 0.0
      %3903 = vmatprep.subr.mxu0 0.0
      %3904 = vmatpush2.msra.mxu0 0.0
      %3905 = vmatprep.subr.mxu0 0.0
      %3906 = vmatpush2.msra.mxu0 0.0
      %3907 = vmatprep.subr.mxu0 0.0
      %3908 = vmatpush2.msra.mxu0 0.0
      %3909 = vmatprep.subr.mxu0 0.0
      %3910 = vmatpush2.msra.mxu0 0.0
      %3911 = vmatprep.subr.mxu0 0.0
      %3912 = vmatpush2.msra.mxu0 0.0
      %3913 = vmatprep.subr.mxu0 0.0
      %3914 = vmatpush2.msra.mxu0 0.0
      %3915 = vmatprep.subr.mxu0 0.0
      %3916 = vmatpush2.msra.mxu0 0.0
      %3917 = vmatprep.subr.mxu0 0.0
      %3918 = vmatpush2.msra.mxu0 0.0
      %3919 = vmatprep.subr.mxu0 0.0
      %3920 = vmatpush2.msra.mxu0 0.0
      %3921 = vmatprep.mubr.f32.mxu0 0.0
      %3922 = vmatmul.mubr.f32.gmra.mxu0 %v3852
      %v3923 = vpop.f32.mrf.mxu0
      %v3924 = vadd.f32 0.0, %v3923
      %v3925 = vpop.f32.mrf.mxu0
      %3926 = vmatprep.mubr.f32.mxu0 0.0
      %3927 = vmatmul.mubr.f32.gmra.mxu0 %v3855
      %v3928 = vpop.f32.mrf.mxu0
      %v3929 = vadd.f32 0.0, %v3928
      %v3930 = vpop.f32.mrf.mxu0
      %3931 = vdwg.mxu0
      %s3932 = scalar_lea.vmem %s10, 32
      %v3933 = vld [vmem:[%s3932] sm:$0xff]
      %v3934 = vld [vmem:[%s3932 + $0x8] sm:$0x7f]
      %v3936 = vsel %vm1902, %v3933, 0
      %v3939 = vsel %vm1902, %v3934, 0
      %3941 = vmatprep.subr.mxu0 0.0
      %3942 = vmatpush1.msra.mxu0 0.0
      %3943 = vmatprep.subr.mxu0 0.0
      %3944 = vmatpush1.msra.mxu0 0.0
      %3945 = vmatprep.subr.mxu0 0.0
      %3946 = vmatpush1.msra.mxu0 0.0
      %3947 = vmatprep.subr.mxu0 0.0
      %3948 = vmatpush1.msra.mxu0 0.0
      %3949 = vmatprep.subr.mxu0 0.0
      %3950 = vmatpush1.msra.mxu0 0.0
      %3951 = vmatprep.subr.mxu0 0.0
      %3952 = vmatpush1.msra.mxu0 0.0
      %3953 = vmatprep.subr.mxu0 0.0
      %3954 = vmatpush1.msra.mxu0 0.0
      %3955 = vmatprep.subr.mxu0 0.0
      %3956 = vmatpush1.msra.mxu0 0.0
      %3957 = vmatprep.subr.mxu0 0.0
      %3958 = vmatpush1.msra.mxu0 0.0
      %3959 = vmatprep.subr.mxu0 0.0
      %3960 = vmatpush1.msra.mxu0 0.0
      %3961 = vmatprep.subr.mxu0 0.0
      %3962 = vmatpush1.msra.mxu0 0.0
      %3963 = vmatprep.subr.mxu0 0.0
      %3964 = vmatpush1.msra.mxu0 0.0
      %3965 = vmatprep.subr.mxu0 0.0
      %3966 = vmatpush1.msra.mxu0 0.0
      %3967 = vmatprep.subr.mxu0 0.0
      %3968 = vmatpush1.msra.mxu0 0.0
      %3969 = vmatprep.subr.mxu0 0.0
      %3970 = vmatpush1.msra.mxu0 0.0
      %3971 = vmatprep.subr.mxu0 0.0
      %3972 = vmatpush1.msra.mxu0 %v3771
      %3973 = vmatprep.subr.mxu0 0.0
      %3974 = vmatpush2.msra.mxu0 0.0
      %3975 = vmatprep.subr.mxu0 0.0
      %3976 = vmatpush2.msra.mxu0 0.0
      %3977 = vmatprep.subr.mxu0 0.0
      %3978 = vmatpush2.msra.mxu0 0.0
      %3979 = vmatprep.subr.mxu0 0.0
      %3980 = vmatpush2.msra.mxu0 0.0
      %3981 = vmatprep.subr.mxu0 0.0
      %3982 = vmatpush2.msra.mxu0 0.0
      %3983 = vmatprep.subr.mxu0 0.0
      %3984 = vmatpush2.msra.mxu0 0.0
      %3985 = vmatprep.subr.mxu0 0.0
      %3986 = vmatpush2.msra.mxu0 0.0
      %3987 = vmatprep.subr.mxu0 0.0
      %3988 = vmatpush2.msra.mxu0 0.0
      %3989 = vmatprep.subr.mxu0 0.0
      %3990 = vmatpush2.msra.mxu0 0.0
      %3991 = vmatprep.subr.mxu0 0.0
      %3992 = vmatpush2.msra.mxu0 0.0
      %3993 = vmatprep.subr.mxu0 0.0
      %3994 = vmatpush2.msra.mxu0 0.0
      %3995 = vmatprep.subr.mxu0 0.0
      %3996 = vmatpush2.msra.mxu0 0.0
      %3997 = vmatprep.subr.mxu0 0.0
      %3998 = vmatpush2.msra.mxu0 0.0
      %3999 = vmatprep.subr.mxu0 0.0
      %4000 = vmatpush2.msra.mxu0 0.0
      %4001 = vmatprep.subr.mxu0 0.0
      %4002 = vmatpush2.msra.mxu0 0.0
      %4003 = vmatprep.subr.mxu0 0.0
      %4004 = vmatpush2.msra.mxu0 0.0
      %4005 = vmatprep.mubr.f32.mxu0 0.0
      %4006 = vmatmul.mubr.f32.gmra.mxu0 %v3936
      %v4007 = vpop.f32.mrf.mxu0
      %v4008 = vadd.f32 0.0, %v4007
      %v4009 = vpop.f32.mrf.mxu0
      %4010 = vmatprep.mubr.f32.mxu0 0.0
      %4011 = vmatmul.mubr.f32.gmra.mxu0 %v3939
      %v4012 = vpop.f32.mrf.mxu0
      %v4013 = vadd.f32 0.0, %v4012
      %v4014 = vpop.f32.mrf.mxu0
      %4015 = vdwg.mxu0
      %s4016 = scalar_lea.vmem %s10, 48
      %v4017 = vld [vmem:[%s4016] sm:$0xff]
      %v4018 = vld [vmem:[%s4016 + $0x8] sm:$0x7f]
      %v4020 = vsel %vm1902, %v4017, 0
      %v4023 = vsel %vm1902, %v4018, 0
      %4025 = vmatprep.subr.mxu0 0.0
      %4026 = vmatpush1.msra.mxu0 0.0
      %4027 = vmatprep.subr.mxu0 0.0
      %4028 = vmatpush1.msra.mxu0 0.0
      %4029 = vmatprep.subr.mxu0 0.0
      %4030 = vmatpush1.msra.mxu0 0.0
      %4031 = vmatprep.subr.mxu0 0.0
      %4032 = vmatpush1.msra.mxu0 0.0
      %4033 = vmatprep.subr.mxu0 0.0
      %4034 = vmatpush1.msra.mxu0 0.0
      %4035 = vmatprep.subr.mxu0 0.0
      %4036 = vmatpush1.msra.mxu0 0.0
      %4037 = vmatprep.subr.mxu0 0.0
      %4038 = vmatpush1.msra.mxu0 0.0
      %4039 = vmatprep.subr.mxu0 0.0
      %4040 = vmatpush1.msra.mxu0 0.0
      %4041 = vmatprep.subr.mxu0 0.0
      %4042 = vmatpush1.msra.mxu0 0.0
      %4043 = vmatprep.subr.mxu0 0.0
      %4044 = vmatpush1.msra.mxu0 0.0
      %4045 = vmatprep.subr.mxu0 0.0
      %4046 = vmatpush1.msra.mxu0 0.0
      %4047 = vmatprep.subr.mxu0 0.0
      %4048 = vmatpush1.msra.mxu0 0.0
      %4049 = vmatprep.subr.mxu0 0.0
      %4050 = vmatpush1.msra.mxu0 0.0
      %4051 = vmatprep.subr.mxu0 0.0
      %4052 = vmatpush1.msra.mxu0 0.0
      %4053 = vmatprep.subr.mxu0 0.0
      %4054 = vmatpush1.msra.mxu0 0.0
      %4055 = vmatprep.subr.mxu0 0.0
      %4056 = vmatpush1.msra.mxu0 %v3771
      %4057 = vmatprep.subr.mxu0 0.0
      %4058 = vmatpush2.msra.mxu0 0.0
      %4059 = vmatprep.subr.mxu0 0.0
      %4060 = vmatpush2.msra.mxu0 0.0
      %4061 = vmatprep.subr.mxu0 0.0
      %4062 = vmatpush2.msra.mxu0 0.0
      %4063 = vmatprep.subr.mxu0 0.0
      %4064 = vmatpush2.msra.mxu0 0.0
      %4065 = vmatprep.subr.mxu0 0.0
      %4066 = vmatpush2.msra.mxu0 0.0
      %4067 = vmatprep.subr.mxu0 0.0
      %4068 = vmatpush2.msra.mxu0 0.0
      %4069 = vmatprep.subr.mxu0 0.0
      %4070 = vmatpush2.msra.mxu0 0.0
      %4071 = vmatprep.subr.mxu0 0.0
      %4072 = vmatpush2.msra.mxu0 0.0
      %4073 = vmatprep.subr.mxu0 0.0
      %4074 = vmatpush2.msra.mxu0 0.0
      %4075 = vmatprep.subr.mxu0 0.0
      %4076 = vmatpush2.msra.mxu0 0.0
      %4077 = vmatprep.subr.mxu0 0.0
      %4078 = vmatpush2.msra.mxu0 0.0
      %4079 = vmatprep.subr.mxu0 0.0
      %4080 = vmatpush2.msra.mxu0 0.0
      %4081 = vmatprep.subr.mxu0 0.0
      %4082 = vmatpush2.msra.mxu0 0.0
      %4083 = vmatprep.subr.mxu0 0.0
      %4084 = vmatpush2.msra.mxu0 0.0
      %4085 = vmatprep.subr.mxu0 0.0
      %4086 = vmatpush2.msra.mxu0 0.0
      %4087 = vmatprep.subr.mxu0 0.0
      %4088 = vmatpush2.msra.mxu0 0.0
      %4089 = vmatprep.mubr.f32.mxu0 0.0
      %4090 = vmatmul.mubr.f32.gmra.mxu0 %v4020
      %v4091 = vpop.f32.mrf.mxu0
      %v4092 = vadd.f32 0.0, %v4091
      %v4093 = vpop.f32.mrf.mxu0
      %4094 = vmatprep.mubr.f32.mxu0 0.0
      %4095 = vmatmul.mubr.f32.gmra.mxu0 %v4023
      %v4096 = vpop.f32.mrf.mxu0
      %v4097 = vadd.f32 0.0, %v4096
      %v4098 = vpop.f32.mrf.mxu0
      %4099 = vdwg.mxu0
      %s4100 = scalar_lea.vmem %s10, 64
      %v4101 = vld [vmem:[%s4100] sm:$0xff]
      %v4102 = vld [vmem:[%s4100 + $0x8] sm:$0x7f]
      %v4104 = vsel %vm1902, %v4101, 0
      %v4107 = vsel %vm1902, %v4102, 0
      %4109 = vmatprep.subr.mxu0 0.0
      %4110 = vmatpush1.msra.mxu0 0.0
      %4111 = vmatprep.subr.mxu0 0.0
      %4112 = vmatpush1.msra.mxu0 0.0
      %4113 = vmatprep.subr.mxu0 0.0
      %4114 = vmatpush1.msra.mxu0 0.0
      %4115 = vmatprep.subr.mxu0 0.0
      %4116 = vmatpush1.msra.mxu0 0.0
      %4117 = vmatprep.subr.mxu0 0.0
      %4118 = vmatpush1.msra.mxu0 0.0
      %4119 = vmatprep.subr.mxu0 0.0
      %4120 = vmatpush1.msra.mxu0 0.0
      %4121 = vmatprep.subr.mxu0 0.0
      %4122 = vmatpush1.msra.mxu0 0.0
      %4123 = vmatprep.subr.mxu0 0.0
      %4124 = vmatpush1.msra.mxu0 0.0
      %4125 = vmatprep.subr.mxu0 0.0
      %4126 = vmatpush1.msra.mxu0 0.0
      %4127 = vmatprep.subr.mxu0 0.0
      %4128 = vmatpush1.msra.mxu0 0.0
      %4129 = vmatprep.subr.mxu0 0.0
      %4130 = vmatpush1.msra.mxu0 0.0
      %4131 = vmatprep.subr.mxu0 0.0
      %4132 = vmatpush1.msra.mxu0 0.0
      %4133 = vmatprep.subr.mxu0 0.0
      %4134 = vmatpush1.msra.mxu0 0.0
      %4135 = vmatprep.subr.mxu0 0.0
      %4136 = vmatpush1.msra.mxu0 0.0
      %4137 = vmatprep.subr.mxu0 0.0
      %4138 = vmatpush1.msra.mxu0 0.0
      %4139 = vmatprep.subr.mxu0 0.0
      %4140 = vmatpush1.msra.mxu0 %v3771
      %4141 = vmatprep.subr.mxu0 0.0
      %4142 = vmatpush2.msra.mxu0 0.0
      %4143 = vmatprep.subr.mxu0 0.0
      %4144 = vmatpush2.msra.mxu0 0.0
      %4145 = vmatprep.subr.mxu0 0.0
      %4146 = vmatpush2.msra.mxu0 0.0
      %4147 = vmatprep.subr.mxu0 0.0
      %4148 = vmatpush2.msra.mxu0 0.0
      %4149 = vmatprep.subr.mxu0 0.0
      %4150 = vmatpush2.msra.mxu0 0.0
      %4151 = vmatprep.subr.mxu0 0.0
      %4152 = vmatpush2.msra.mxu0 0.0
      %4153 = vmatprep.subr.mxu0 0.0
      %4154 = vmatpush2.msra.mxu0 0.0
      %4155 = vmatprep.subr.mxu0 0.0
      %4156 = vmatpush2.msra.mxu0 0.0
      %4157 = vmatprep.subr.mxu0 0.0
      %4158 = vmatpush2.msra.mxu0 0.0
      %4159 = vmatprep.subr.mxu0 0.0
      %4160 = vmatpush2.msra.mxu0 0.0
      %4161 = vmatprep.subr.mxu0 0.0
      %4162 = vmatpush2.msra.mxu0 0.0
      %4163 = vmatprep.subr.mxu0 0.0
      %4164 = vmatpush2.msra.mxu0 0.0
      %4165 = vmatprep.subr.mxu0 0.0
      %4166 = vmatpush2.msra.mxu0 0.0
      %4167 = vmatprep.subr.mxu0 0.0
      %4168 = vmatpush2.msra.mxu0 0.0
      %4169 = vmatprep.subr.mxu0 0.0
      %4170 = vmatpush2.msra.mxu0 0.0
      %4171 = vmatprep.subr.mxu0 0.0
      %4172 = vmatpush2.msra.mxu0 0.0
      %4173 = vmatprep.mubr.f32.mxu0 0.0
      %4174 = vmatmul.mubr.f32.gmra.mxu0 %v4104
      %v4175 = vpop.f32.mrf.mxu0
      %v4176 = vadd.f32 0.0, %v4175
      %v4177 = vpop.f32.mrf.mxu0
      %4178 = vmatprep.mubr.f32.mxu0 0.0
      %4179 = vmatmul.mubr.f32.gmra.mxu0 %v4107
      %v4180 = vpop.f32.mrf.mxu0
      %v4181 = vadd.f32 0.0, %v4180
      %v4182 = vpop.f32.mrf.mxu0
      %4183 = vdwg.mxu0
      %v4184 = vld [vmem:[%s11] sm:$0xff]
      %v4185 = vld [vmem:[%s11 + $0x8] sm:$0xff]
      %v4186 = vld [vmem:[%s11 + $0x10] sm:$0xff]
      %v4187 = vld [vmem:[%s11 + $0x18] sm:$0xff]
      %v4188 = vld [vmem:[%s11 + $0x20] sm:$0xff]
      %v4189 = vld [vmem:[%s11 + $0x28] sm:$0xff]
      %v4190 = vld [vmem:[%s11 + $0x30] sm:$0xff]
      %v4191 = vld [vmem:[%s11 + $0x38] sm:$0xff]
      %v4192 = vld [vmem:[%s11 + $0x40] sm:$0xff]
      %v4193 = vld [vmem:[%s11 + $0x48] sm:$0xff]
      %s4194 = scalar_lea.vmem %s11, 80
      %v4195 = vld [vmem:[%s4194] sm:$0xff]
      %v4196 = vld [vmem:[%s4194 + $0x8] sm:$0xff]
      %v4197 = vld [vmem:[%s4194 + $0x10] sm:$0xff]
      %v4198 = vld [vmem:[%s4194 + $0x18] sm:$0xff]
      %v4199 = vld [vmem:[%s4194 + $0x20] sm:$0xff]
      %v4200 = vld [vmem:[%s4194 + $0x28] sm:$0xff]
      %v4201 = vld [vmem:[%s4194 + $0x30] sm:$0xff]
      %v4202 = vld [vmem:[%s4194 + $0x38] sm:$0xff]
      %v4203 = vld [vmem:[%s4194 + $0x40] sm:$0xff]
      %v4204 = vld [vmem:[%s4194 + $0x48] sm:$0xff]
      %v4206 = vsel %vm2376, %v3924, 0
      %v4209 = vsel %vm2376, %v3929, 0
      %4211 = vmatprep.subr.mxu0 0.0
      %4212 = vmatpush1.msra.mxu0 0.0
      %4213 = vmatprep.subr.mxu0 0.0
      %4214 = vmatpush1.msra.mxu0 0.0
      %4215 = vmatprep.subr.mxu0 0.0
      %4216 = vmatpush1.msra.mxu0 0.0
      %4217 = vmatprep.subr.mxu0 0.0
      %4218 = vmatpush1.msra.mxu0 0.0
      %4219 = vmatprep.subr.mxu0 0.0
      %4220 = vmatpush1.msra.mxu0 0.0
      %4221 = vmatprep.subr.mxu0 0.0
      %4222 = vmatpush1.msra.mxu0 0.0
      %4223 = vmatprep.subr.mxu0 0.0
      %4224 = vmatpush1.msra.mxu0 %v4204
      %4225 = vmatprep.subr.mxu0 0.0
      %4226 = vmatpush1.msra.mxu0 %v4203
      %4227 = vmatprep.subr.mxu0 0.0
      %4228 = vmatpush1.msra.mxu0 %v4202
      %4229 = vmatprep.subr.mxu0 0.0
      %4230 = vmatpush1.msra.mxu0 %v4201
      %4231 = vmatprep.subr.mxu0 0.0
      %4232 = vmatpush1.msra.mxu0 %v4200
      %4233 = vmatprep.subr.mxu0 0.0
      %4234 = vmatpush1.msra.mxu0 %v4199
      %4235 = vmatprep.subr.mxu0 0.0
      %4236 = vmatpush1.msra.mxu0 %v4198
      %4237 = vmatprep.subr.mxu0 0.0
      %4238 = vmatpush1.msra.mxu0 %v4197
      %4239 = vmatprep.subr.mxu0 0.0
      %4240 = vmatpush1.msra.mxu0 %v4196
      %4241 = vmatprep.subr.mxu0 0.0
      %4242 = vmatpush1.msra.mxu0 %v4195
      %4243 = vmatprep.subr.mxu0 0.0
      %4244 = vmatpush2.msra.mxu0 0.0
      %4245 = vmatprep.subr.mxu0 0.0
      %4246 = vmatpush2.msra.mxu0 0.0
      %4247 = vmatprep.subr.mxu0 0.0
      %4248 = vmatpush2.msra.mxu0 0.0
      %4249 = vmatprep.subr.mxu0 0.0
      %4250 = vmatpush2.msra.mxu0 0.0
      %4251 = vmatprep.subr.mxu0 0.0
      %4252 = vmatpush2.msra.mxu0 0.0
      %4253 = vmatprep.subr.mxu0 0.0
      %4254 = vmatpush2.msra.mxu0 0.0
      %4255 = vmatprep.subr.mxu0 0.0
      %4256 = vmatpush2.msra.mxu0 0.0
      %4257 = vmatprep.subr.mxu0 0.0
      %4258 = vmatpush2.msra.mxu0 0.0
      %4259 = vmatprep.subr.mxu0 0.0
      %4260 = vmatpush2.msra.mxu0 0.0
      %4261 = vmatprep.subr.mxu0 0.0
      %4262 = vmatpush2.msra.mxu0 0.0
      %4263 = vmatprep.subr.mxu0 0.0
      %4264 = vmatpush2.msra.mxu0 0.0
      %4265 = vmatprep.subr.mxu0 0.0
      %4266 = vmatpush2.msra.mxu0 0.0
      %4267 = vmatprep.subr.mxu0 0.0
      %4268 = vmatpush2.msra.mxu0 0.0
      %4269 = vmatprep.subr.mxu0 0.0
      %4270 = vmatpush2.msra.mxu0 0.0
      %4271 = vmatprep.subr.mxu0 0.0
      %4272 = vmatpush2.msra.mxu0 0.0
      %4273 = vmatprep.subr.mxu0 0.0
      %4274 = vmatpush2.msra.mxu0 0.0
      %4275 = vmatprep.mubr.f32.mxu0 0.0
      %4276 = vmatmul.mubr.f32.gmra.mxu0 %v4206
      %v4277 = vpop.f32.mrf.mxu0
      %v4278 = vadd.f32 0.0, %v4277
      %v4279 = vpop.f32.mrf.mxu0
      %4280 = vmatprep.mubr.f32.mxu0 0.0
      %4281 = vmatmul.mubr.f32.gmra.mxu0 %v4209
      %v4282 = vpop.f32.mrf.mxu0
      %v4283 = vadd.f32 0.0, %v4282
      %v4284 = vpop.f32.mrf.mxu0
      %4285 = vdwg.mxu0
      %v4287 = vsel %vm2376, %v3840, 0
      %v4290 = vsel %vm2376, %v3845, 0
      %4292 = vmatprep.subr.mxu0 0.0
      %4293 = vmatpush1.msra.mxu0 0.0
      %4294 = vmatprep.subr.mxu0 0.0
      %4295 = vmatpush1.msra.mxu0 0.0
      %4296 = vmatprep.subr.mxu0 0.0
      %4297 = vmatpush1.msra.mxu0 0.0
      %4298 = vmatprep.subr.mxu0 0.0
      %4299 = vmatpush1.msra.mxu0 0.0
      %4300 = vmatprep.subr.mxu0 0.0
      %4301 = vmatpush1.msra.mxu0 0.0
      %4302 = vmatprep.subr.mxu0 0.0
      %4303 = vmatpush1.msra.mxu0 0.0
      %4304 = vmatprep.subr.mxu0 0.0
      %4305 = vmatpush1.msra.mxu0 %v4193
      %4306 = vmatprep.subr.mxu0 0.0
      %4307 = vmatpush1.msra.mxu0 %v4192
      %4308 = vmatprep.subr.mxu0 0.0
      %4309 = vmatpush1.msra.mxu0 %v4191
      %4310 = vmatprep.subr.mxu0 0.0
      %4311 = vmatpush1.msra.mxu0 %v4190
      %4312 = vmatprep.subr.mxu0 0.0
      %4313 = vmatpush1.msra.mxu0 %v4189
      %4314 = vmatprep.subr.mxu0 0.0
      %4315 = vmatpush1.msra.mxu0 %v4188
      %4316 = vmatprep.subr.mxu0 0.0
      %4317 = vmatpush1.msra.mxu0 %v4187
      %4318 = vmatprep.subr.mxu0 0.0
      %4319 = vmatpush1.msra.mxu0 %v4186
      %4320 = vmatprep.subr.mxu0 0.0
      %4321 = vmatpush1.msra.mxu0 %v4185
      %4322 = vmatprep.subr.mxu0 0.0
      %4323 = vmatpush1.msra.mxu0 %v4184
      %4324 = vmatprep.subr.mxu0 0.0
      %4325 = vmatpush2.msra.mxu0 0.0
      %4326 = vmatprep.subr.mxu0 0.0
      %4327 = vmatpush2.msra.mxu0 0.0
      %4328 = vmatprep.subr.mxu0 0.0
      %4329 = vmatpush2.msra.mxu0 0.0
      %4330 = vmatprep.subr.mxu0 0.0
      %4331 = vmatpush2.msra.mxu0 0.0
      %4332 = vmatprep.subr.mxu0 0.0
      %4333 = vmatpush2.msra.mxu0 0.0
      %4334 = vmatprep.subr.mxu0 0.0
      %4335 = vmatpush2.msra.mxu0 0.0
      %4336 = vmatprep.subr.mxu0 0.0
      %4337 = vmatpush2.msra.mxu0 0.0
      %4338 = vmatprep.subr.mxu0 0.0
      %4339 = vmatpush2.msra.mxu0 0.0
      %4340 = vmatprep.subr.mxu0 0.0
      %4341 = vmatpush2.msra.mxu0 0.0
      %4342 = vmatprep.subr.mxu0 0.0
      %4343 = vmatpush2.msra.mxu0 0.0
      %4344 = vmatprep.subr.mxu0 0.0
      %4345 = vmatpush2.msra.mxu0 0.0
      %4346 = vmatprep.subr.mxu0 0.0
      %4347 = vmatpush2.msra.mxu0 0.0
      %4348 = vmatprep.subr.mxu0 0.0
      %4349 = vmatpush2.msra.mxu0 0.0
      %4350 = vmatprep.subr.mxu0 0.0
      %4351 = vmatpush2.msra.mxu0 0.0
      %4352 = vmatprep.subr.mxu0 0.0
      %4353 = vmatpush2.msra.mxu0 0.0
      %4354 = vmatprep.subr.mxu0 0.0
      %4355 = vmatpush2.msra.mxu0 0.0
      %4356 = vmatprep.mubr.f32.mxu0 0.0
      %4357 = vmatmul.mubr.f32.gmra.mxu0 %v4287
      %v4358 = vpop.f32.mrf.mxu0
      %v4359 = vadd.f32 %v4278, %v4358
      %v4360 = vpop.f32.mrf.mxu0
      %4361 = vmatprep.mubr.f32.mxu0 0.0
      %4362 = vmatmul.mubr.f32.gmra.mxu0 %v4290
      %v4363 = vpop.f32.mrf.mxu0
      %v4364 = vadd.f32 %v4283, %v4363
      %v4365 = vpop.f32.mrf.mxu0
      %4366 = vdwg.mxu0
      %s4367 = scalar_lea.vmem %s11, 160
      %v4368 = vld [vmem:[%s4367] sm:$0xff]
      %v4369 = vld [vmem:[%s4367 + $0x8] sm:$0xff]
      %v4370 = vld [vmem:[%s4367 + $0x10] sm:$0xff]
      %v4371 = vld [vmem:[%s4367 + $0x18] sm:$0xff]
      %v4372 = vld [vmem:[%s4367 + $0x20] sm:$0xff]
      %v4373 = vld [vmem:[%s4367 + $0x28] sm:$0xff]
      %v4374 = vld [vmem:[%s4367 + $0x30] sm:$0xff]
      %v4375 = vld [vmem:[%s4367 + $0x38] sm:$0xff]
      %v4376 = vld [vmem:[%s4367 + $0x40] sm:$0xff]
      %v4377 = vld [vmem:[%s4367 + $0x48] sm:$0xff]
      %v4379 = vsel %vm2376, %v4008, 0
      %v4382 = vsel %vm2376, %v4013, 0
      %4384 = vmatprep.subr.mxu0 0.0
      %4385 = vmatpush1.msra.mxu0 0.0
      %4386 = vmatprep.subr.mxu0 0.0
      %4387 = vmatpush1.msra.mxu0 0.0
      %4388 = vmatprep.subr.mxu0 0.0
      %4389 = vmatpush1.msra.mxu0 0.0
      %4390 = vmatprep.subr.mxu0 0.0
      %4391 = vmatpush1.msra.mxu0 0.0
      %4392 = vmatprep.subr.mxu0 0.0
      %4393 = vmatpush1.msra.mxu0 0.0
      %4394 = vmatprep.subr.mxu0 0.0
      %4395 = vmatpush1.msra.mxu0 0.0
      %4396 = vmatprep.subr.mxu0 0.0
      %4397 = vmatpush1.msra.mxu0 %v4377
      %4398 = vmatprep.subr.mxu0 0.0
      %4399 = vmatpush1.msra.mxu0 %v4376
      %4400 = vmatprep.subr.mxu0 0.0
      %4401 = vmatpush1.msra.mxu0 %v4375
      %4402 = vmatprep.subr.mxu0 0.0
      %4403 = vmatpush1.msra.mxu0 %v4374
      %4404 = vmatprep.subr.mxu0 0.0
      %4405 = vmatpush1.msra.mxu0 %v4373
      %4406 = vmatprep.subr.mxu0 0.0
      %4407 = vmatpush1.msra.mxu0 %v4372
      %4408 = vmatprep.subr.mxu0 0.0
      %4409 = vmatpush1.msra.mxu0 %v4371
      %4410 = vmatprep.subr.mxu0 0.0
      %4411 = vmatpush1.msra.mxu0 %v4370
      %4412 = vmatprep.subr.mxu0 0.0
      %4413 = vmatpush1.msra.mxu0 %v4369
      %4414 = vmatprep.subr.mxu0 0.0
      %4415 = vmatpush1.msra.mxu0 %v4368
      %4416 = vmatprep.subr.mxu0 0.0
      %4417 = vmatpush2.msra.mxu0 0.0
      %4418 = vmatprep.subr.mxu0 0.0
      %4419 = vmatpush2.msra.mxu0 0.0
      %4420 = vmatprep.subr.mxu0 0.0
      %4421 = vmatpush2.msra.mxu0 0.0
      %4422 = vmatprep.subr.mxu0 0.0
      %4423 = vmatpush2.msra.mxu0 0.0
      %4424 = vmatprep.subr.mxu0 0.0
      %4425 = vmatpush2.msra.mxu0 0.0
      %4426 = vmatprep.subr.mxu0 0.0
      %4427 = vmatpush2.msra.mxu0 0.0
      %4428 = vmatprep.subr.mxu0 0.0
      %4429 = vmatpush2.msra.mxu0 0.0
      %4430 = vmatprep.subr.mxu0 0.0
      %4431 = vmatpush2.msra.mxu0 0.0
      %4432 = vmatprep.subr.mxu0 0.0
      %4433 = vmatpush2.msra.mxu0 0.0
      %4434 = vmatprep.subr.mxu0 0.0
      %4435 = vmatpush2.msra.mxu0 0.0
      %4436 = vmatprep.subr.mxu0 0.0
      %4437 = vmatpush2.msra.mxu0 0.0
      %4438 = vmatprep.subr.mxu0 0.0
      %4439 = vmatpush2.msra.mxu0 0.0
      %4440 = vmatprep.subr.mxu0 0.0
      %4441 = vmatpush2.msra.mxu0 0.0
      %4442 = vmatprep.subr.mxu0 0.0
      %4443 = vmatpush2.msra.mxu0 0.0
      %4444 = vmatprep.subr.mxu0 0.0
      %4445 = vmatpush2.msra.mxu0 0.0
      %4446 = vmatprep.subr.mxu0 0.0
      %4447 = vmatpush2.msra.mxu0 0.0
      %4448 = vmatprep.mubr.f32.mxu0 0.0
      %4449 = vmatmul.mubr.f32.gmra.mxu0 %v4379
      %v4450 = vpop.f32.mrf.mxu0
      %v4451 = vadd.f32 0.0, %v4450
      %v4452 = vpop.f32.mrf.mxu0
      %4453 = vmatprep.mubr.f32.mxu0 0.0
      %4454 = vmatmul.mubr.f32.gmra.mxu0 %v4382
      %v4455 = vpop.f32.mrf.mxu0
      %v4456 = vadd.f32 0.0, %v4455
      %v4457 = vpop.f32.mrf.mxu0
      %4458 = vdwg.mxu0
      %v4459 = vadd.f32 %v4359, %v4451
      %v4460 = vadd.f32 %v4364, %v4456
      %s4461 = scalar_lea.vmem %s11, 240
      %v4462 = vld [vmem:[%s4461] sm:$0xff]
      %v4463 = vld [vmem:[%s4461 + $0x8] sm:$0xff]
      %v4464 = vld [vmem:[%s4461 + $0x10] sm:$0xff]
      %v4465 = vld [vmem:[%s4461 + $0x18] sm:$0xff]
      %v4466 = vld [vmem:[%s4461 + $0x20] sm:$0xff]
      %v4467 = vld [vmem:[%s4461 + $0x28] sm:$0xff]
      %v4468 = vld [vmem:[%s4461 + $0x30] sm:$0xff]
      %v4469 = vld [vmem:[%s4461 + $0x38] sm:$0xff]
      %v4470 = vld [vmem:[%s4461 + $0x40] sm:$0xff]
      %v4471 = vld [vmem:[%s4461 + $0x48] sm:$0xff]
      %v4473 = vsel %vm2376, %v4092, 0
      %v4476 = vsel %vm2376, %v4097, 0
      %4478 = vmatprep.subr.mxu0 0.0
      %4479 = vmatpush1.msra.mxu0 0.0
      %4480 = vmatprep.subr.mxu0 0.0
      %4481 = vmatpush1.msra.mxu0 0.0
      %4482 = vmatprep.subr.mxu0 0.0
      %4483 = vmatpush1.msra.mxu0 0.0
      %4484 = vmatprep.subr.mxu0 0.0
      %4485 = vmatpush1.msra.mxu0 0.0
      %4486 = vmatprep.subr.mxu0 0.0
      %4487 = vmatpush1.msra.mxu0 0.0
      %4488 = vmatprep.subr.mxu0 0.0
      %4489 = vmatpush1.msra.mxu0 0.0
      %4490 = vmatprep.subr.mxu0 0.0
      %4491 = vmatpush1.msra.mxu0 %v4471
      %4492 = vmatprep.subr.mxu0 0.0
      %4493 = vmatpush1.msra.mxu0 %v4470
      %4494 = vmatprep.subr.mxu0 0.0
      %4495 = vmatpush1.msra.mxu0 %v4469
      %4496 = vmatprep.subr.mxu0 0.0
      %4497 = vmatpush1.msra.mxu0 %v4468
      %4498 = vmatprep.subr.mxu0 0.0
      %4499 = vmatpush1.msra.mxu0 %v4467
      %4500 = vmatprep.subr.mxu0 0.0
      %4501 = vmatpush1.msra.mxu0 %v4466
      %4502 = vmatprep.subr.mxu0 0.0
      %4503 = vmatpush1.msra.mxu0 %v4465
      %4504 = vmatprep.subr.mxu0 0.0
      %4505 = vmatpush1.msra.mxu0 %v4464
      %4506 = vmatprep.subr.mxu0 0.0
      %4507 = vmatpush1.msra.mxu0 %v4463
      %4508 = vmatprep.subr.mxu0 0.0
      %4509 = vmatpush1.msra.mxu0 %v4462
      %4510 = vmatprep.subr.mxu0 0.0
      %4511 = vmatpush2.msra.mxu0 0.0
      %4512 = vmatprep.subr.mxu0 0.0
      %4513 = vmatpush2.msra.mxu0 0.0
      %4514 = vmatprep.subr.mxu0 0.0
      %4515 = vmatpush2.msra.mxu0 0.0
      %4516 = vmatprep.subr.mxu0 0.0
      %4517 = vmatpush2.msra.mxu0 0.0
      %4518 = vmatprep.subr.mxu0 0.0
      %4519 = vmatpush2.msra.mxu0 0.0
      %4520 = vmatprep.subr.mxu0 0.0
      %4521 = vmatpush2.msra.mxu0 0.0
      %4522 = vmatprep.subr.mxu0 0.0
      %4523 = vmatpush2.msra.mxu0 0.0
      %4524 = vmatprep.subr.mxu0 0.0
      %4525 = vmatpush2.msra.mxu0 0.0
      %4526 = vmatprep.subr.mxu0 0.0
      %4527 = vmatpush2.msra.mxu0 0.0
      %4528 = vmatprep.subr.mxu0 0.0
      %4529 = vmatpush2.msra.mxu0 0.0
      %4530 = vmatprep.subr.mxu0 0.0
      %4531 = vmatpush2.msra.mxu0 0.0
      %4532 = vmatprep.subr.mxu0 0.0
      %4533 = vmatpush2.msra.mxu0 0.0
      %4534 = vmatprep.subr.mxu0 0.0
      %4535 = vmatpush2.msra.mxu0 0.0
      %4536 = vmatprep.subr.mxu0 0.0
      %4537 = vmatpush2.msra.mxu0 0.0
      %4538 = vmatprep.subr.mxu0 0.0
      %4539 = vmatpush2.msra.mxu0 0.0
      %4540 = vmatprep.subr.mxu0 0.0
      %4541 = vmatpush2.msra.mxu0 0.0
      %4542 = vmatprep.mubr.f32.mxu0 0.0
      %4543 = vmatmul.mubr.f32.gmra.mxu0 %v4473
      %v4544 = vpop.f32.mrf.mxu0
      %v4545 = vadd.f32 0.0, %v4544
      %v4546 = vpop.f32.mrf.mxu0
      %4547 = vmatprep.mubr.f32.mxu0 0.0
      %4548 = vmatmul.mubr.f32.gmra.mxu0 %v4476
      %v4549 = vpop.f32.mrf.mxu0
      %v4550 = vadd.f32 0.0, %v4549
      %v4551 = vpop.f32.mrf.mxu0
      %4552 = vdwg.mxu0
      %v4553 = vadd.f32 %v4459, %v4545
      %v4554 = vadd.f32 %v4460, %v4550
      %s4555 = scalar_lea.vmem %s11, 320
      %v4556 = vld [vmem:[%s4555] sm:$0xff]
      %v4557 = vld [vmem:[%s4555 + $0x8] sm:$0xff]
      %v4558 = vld [vmem:[%s4555 + $0x10] sm:$0xff]
      %v4559 = vld [vmem:[%s4555 + $0x18] sm:$0xff]
      %v4560 = vld [vmem:[%s4555 + $0x20] sm:$0xff]
      %v4561 = vld [vmem:[%s4555 + $0x28] sm:$0xff]
      %v4562 = vld [vmem:[%s4555 + $0x30] sm:$0xff]
      %v4563 = vld [vmem:[%s4555 + $0x38] sm:$0xff]
      %v4564 = vld [vmem:[%s4555 + $0x40] sm:$0xff]
      %v4565 = vld [vmem:[%s4555 + $0x48] sm:$0xff]
      %v4567 = vsel %vm2376, %v4176, 0
      %v4570 = vsel %vm2376, %v4181, 0
      %4572 = vmatprep.subr.mxu0 0.0
      %4573 = vmatpush1.msra.mxu0 0.0
      %4574 = vmatprep.subr.mxu0 0.0
      %4575 = vmatpush1.msra.mxu0 0.0
      %4576 = vmatprep.subr.mxu0 0.0
      %4577 = vmatpush1.msra.mxu0 0.0
      %4578 = vmatprep.subr.mxu0 0.0
      %4579 = vmatpush1.msra.mxu0 0.0
      %4580 = vmatprep.subr.mxu0 0.0
      %4581 = vmatpush1.msra.mxu0 0.0
      %4582 = vmatprep.subr.mxu0 0.0
      %4583 = vmatpush1.msra.mxu0 0.0
      %4584 = vmatprep.subr.mxu0 0.0
      %4585 = vmatpush1.msra.mxu0 %v4565
      %4586 = vmatprep.subr.mxu0 0.0
      %4587 = vmatpush1.msra.mxu0 %v4564
      %4588 = vmatprep.subr.mxu0 0.0
      %4589 = vmatpush1.msra.mxu0 %v4563
      %4590 = vmatprep.subr.mxu0 0.0
      %4591 = vmatpush1.msra.mxu0 %v4562
      %4592 = vmatprep.subr.mxu0 0.0
      %4593 = vmatpush1.msra.mxu0 %v4561
      %4594 = vmatprep.subr.mxu0 0.0
      %4595 = vmatpush1.msra.mxu0 %v4560
      %4596 = vmatprep.subr.mxu0 0.0
      %4597 = vmatpush1.msra.mxu0 %v4559
      %4598 = vmatprep.subr.mxu0 0.0
      %4599 = vmatpush1.msra.mxu0 %v4558
      %4600 = vmatprep.subr.mxu0 0.0
      %4601 = vmatpush1.msra.mxu0 %v4557
      %4602 = vmatprep.subr.mxu0 0.0
      %4603 = vmatpush1.msra.mxu0 %v4556
      %4604 = vmatprep.subr.mxu0 0.0
      %4605 = vmatpush2.msra.mxu0 0.0
      %4606 = vmatprep.subr.mxu0 0.0
      %4607 = vmatpush2.msra.mxu0 0.0
      %4608 = vmatprep.subr.mxu0 0.0
      %4609 = vmatpush2.msra.mxu0 0.0
      %4610 = vmatprep.subr.mxu0 0.0
      %4611 = vmatpush2.msra.mxu0 0.0
      %4612 = vmatprep.subr.mxu0 0.0
      %4613 = vmatpush2.msra.mxu0 0.0
      %4614 = vmatprep.subr.mxu0 0.0
      %4615 = vmatpush2.msra.mxu0 0.0
      %4616 = vmatprep.subr.mxu0 0.0
      %4617 = vmatpush2.msra.mxu0 0.0
      %4618 = vmatprep.subr.mxu0 0.0
      %4619 = vmatpush2.msra.mxu0 0.0
      %4620 = vmatprep.subr.mxu0 0.0
      %4621 = vmatpush2.msra.mxu0 0.0
      %4622 = vmatprep.subr.mxu0 0.0
      %4623 = vmatpush2.msra.mxu0 0.0
      %4624 = vmatprep.subr.mxu0 0.0
      %4625 = vmatpush2.msra.mxu0 0.0
      %4626 = vmatprep.subr.mxu0 0.0
      %4627 = vmatpush2.msra.mxu0 0.0
      %4628 = vmatprep.subr.mxu0 0.0
      %4629 = vmatpush2.msra.mxu0 0.0
      %4630 = vmatprep.subr.mxu0 0.0
      %4631 = vmatpush2.msra.mxu0 0.0
      %4632 = vmatprep.subr.mxu0 0.0
      %4633 = vmatpush2.msra.mxu0 0.0
      %4634 = vmatprep.subr.mxu0 0.0
      %4635 = vmatpush2.msra.mxu0 0.0
      %4636 = vmatprep.mubr.f32.mxu0 0.0
      %4637 = vmatmul.mubr.f32.gmra.mxu0 %v4567
      %v4638 = vpop.f32.mrf.mxu0
      %v4639 = vadd.f32 0.0, %v4638
      %v4640 = vpop.f32.mrf.mxu0
      %4641 = vmatprep.mubr.f32.mxu0 0.0
      %4642 = vmatmul.mubr.f32.gmra.mxu0 %v4570
      %v4643 = vpop.f32.mrf.mxu0
      %v4644 = vadd.f32 0.0, %v4643
      %v4645 = vpop.f32.mrf.mxu0
      %4646 = vdwg.mxu0
      %v4647 = vadd.f32 %v4553, %v4639
      %v4648 = vadd.f32 %v4554, %v4644
      %v4649 = vld [vmem:[%s12] sm:$0x1]
      %v4651 = vlaneseq
      %v4652 = vshrl.u32 %v4651, 7
      %v4653 = vsub.s32 0, %v4652
      %v4654 = vrot.slane %v4649, %v4653
      %v4656 = vadd.f32 %v4647, %v4654
      %v4657 = vadd.f32 %v4648, %v4654
      %v4658 = vmax.f32 %v4656, 0.0
      %v4659 = vmax.f32 %v4657, 0.0
      %v4660 = vld [vmem:[%s13] sm:$0xff]
      %v4661 = vld [vmem:[%s13 + $0x8] sm:$0xff]
      %v4662 = vld [vmem:[%s13 + $0x10] sm:$0xff]
      %v4663 = vld [vmem:[%s13 + $0x18] sm:$0xf]
      %vm4664 = vcmask 121856
      %v4666 = vsel %vm4664, %v4660, 0
      %v4669 = vsel %vm4664, %v4661, 0
      %v4672 = vsel %vm4664, %v4662, 0
      %v4675 = vsel %vm4664, %v4663, 0
      %vm4677 = vcmask 1046528
      %v4679 = vsel %vm4677, %v4659, 0
      %4681 = vmatprep.subr.mxu0 0.0
      %4682 = vmatpush1.msra.mxu0 0.0
      %4683 = vmatprep.subr.mxu0 0.0
      %4684 = vmatpush1.msra.mxu0 0.0
      %4685 = vmatprep.subr.mxu0 0.0
      %4686 = vmatpush1.msra.mxu0 0.0
      %4687 = vmatprep.subr.mxu0 0.0
      %4688 = vmatpush1.msra.mxu0 0.0
      %4689 = vmatprep.subr.mxu0 0.0
      %4690 = vmatpush1.msra.mxu0 0.0
      %4691 = vmatprep.subr.mxu0 0.0
      %4692 = vmatpush1.msra.mxu0 0.0
      %4693 = vmatprep.subr.mxu0 0.0
      %4694 = vmatpush1.msra.mxu0 0.0
      %4695 = vmatprep.subr.mxu0 0.0
      %4696 = vmatpush1.msra.mxu0 0.0
      %4697 = vmatprep.subr.mxu0 0.0
      %4698 = vmatpush1.msra.mxu0 0.0
      %4699 = vmatprep.subr.mxu0 0.0
      %4700 = vmatpush1.msra.mxu0 0.0
      %4701 = vmatprep.subr.mxu0 0.0
      %4702 = vmatpush1.msra.mxu0 0.0
      %4703 = vmatprep.subr.mxu0 0.0
      %4704 = vmatpush1.msra.mxu0 0.0
      %4705 = vmatprep.subr.mxu0 0.0
      %4706 = vmatpush1.msra.mxu0 0.0
      %4707 = vmatprep.subr.mxu0 0.0
      %4708 = vmatpush1.msra.mxu0 0.0
      %4709 = vmatprep.subr.mxu0 0.0
      %4710 = vmatpush1.msra.mxu0 %v4679
      %4711 = vmatprep.subr.mxu0 0.0
      %4712 = vmatpush1.msra.mxu0 %v4658
      %4713 = vmatprep.subr.mxu0 0.0
      %4714 = vmatpush2.msra.mxu0 0.0
      %4715 = vmatprep.subr.mxu0 0.0
      %4716 = vmatpush2.msra.mxu0 0.0
      %4717 = vmatprep.subr.mxu0 0.0
      %4718 = vmatpush2.msra.mxu0 0.0
      %4719 = vmatprep.subr.mxu0 0.0
      %4720 = vmatpush2.msra.mxu0 0.0
      %4721 = vmatprep.subr.mxu0 0.0
      %4722 = vmatpush2.msra.mxu0 0.0
      %4723 = vmatprep.subr.mxu0 0.0
      %4724 = vmatpush2.msra.mxu0 0.0
      %4725 = vmatprep.subr.mxu0 0.0
      %4726 = vmatpush2.msra.mxu0 0.0
      %4727 = vmatprep.subr.mxu0 0.0
      %4728 = vmatpush2.msra.mxu0 0.0
      %4729 = vmatprep.subr.mxu0 0.0
      %4730 = vmatpush2.msra.mxu0 0.0
      %4731 = vmatprep.subr.mxu0 0.0
      %4732 = vmatpush2.msra.mxu0 0.0
      %4733 = vmatprep.subr.mxu0 0.0
      %4734 = vmatpush2.msra.mxu0 0.0
      %4735 = vmatprep.subr.mxu0 0.0
      %4736 = vmatpush2.msra.mxu0 0.0
      %4737 = vmatprep.subr.mxu0 0.0
      %4738 = vmatpush2.msra.mxu0 0.0
      %4739 = vmatprep.subr.mxu0 0.0
      %4740 = vmatpush2.msra.mxu0 0.0
      %4741 = vmatprep.subr.mxu0 0.0
      %4742 = vmatpush2.msra.mxu0 0.0
      %4743 = vmatprep.subr.mxu0 0.0
      %4744 = vmatpush2.msra.mxu0 0.0
      %4745 = vmatprep.mubr.f32.mxu0 0.0
      %4746 = vmatmul.mubr.f32.gmra.mxu0 %v4666
      %v4747 = vpop.f32.mrf.mxu0
      %v4748 = vadd.f32 0.0, %v4747
      %v4749 = vpop.f32.mrf.mxu0
      %4750 = vmatprep.mubr.f32.mxu0 0.0
      %4751 = vmatmul.mubr.f32.gmra.mxu0 %v4669
      %v4752 = vpop.f32.mrf.mxu0
      %v4753 = vadd.f32 0.0, %v4752
      %v4754 = vpop.f32.mrf.mxu0
      %4755 = vmatprep.mubr.f32.mxu0 0.0
      %4756 = vmatmul.mubr.f32.gmra.mxu0 %v4672
      %v4757 = vpop.f32.mrf.mxu0
      %v4758 = vadd.f32 0.0, %v4757
      %v4759 = vpop.f32.mrf.mxu0
      %4760 = vmatprep.mubr.f32.mxu0 0.0
      %4761 = vmatmul.mubr.f32.gmra.mxu0 %v4675
      %v4762 = vpop.f32.mrf.mxu0
      %v4763 = vadd.f32 0.0, %v4762
      %v4764 = vpop.f32.mrf.mxu0
      %4765 = vdwg.mxu0
      %s4766 = scalar_lea.vmem %s13, 32
      %v4767 = vld [vmem:[%s4766] sm:$0xff]
      %v4768 = vld [vmem:[%s4766 + $0x8] sm:$0xff]
      %v4769 = vld [vmem:[%s4766 + $0x10] sm:$0xff]
      %v4770 = vld [vmem:[%s4766 + $0x18] sm:$0xf]
      %v4772 = vsel %vm4664, %v4767, 0
      %v4775 = vsel %vm4664, %v4768, 0
      %v4778 = vsel %vm4664, %v4769, 0
      %v4781 = vsel %vm4664, %v4770, 0
      %4783 = vmatprep.subr.mxu0 0.0
      %4784 = vmatpush1.msra.mxu0 0.0
      %4785 = vmatprep.subr.mxu0 0.0
      %4786 = vmatpush1.msra.mxu0 0.0
      %4787 = vmatprep.subr.mxu0 0.0
      %4788 = vmatpush1.msra.mxu0 0.0
      %4789 = vmatprep.subr.mxu0 0.0
      %4790 = vmatpush1.msra.mxu0 0.0
      %4791 = vmatprep.subr.mxu0 0.0
      %4792 = vmatpush1.msra.mxu0 0.0
      %4793 = vmatprep.subr.mxu0 0.0
      %4794 = vmatpush1.msra.mxu0 0.0
      %4795 = vmatprep.subr.mxu0 0.0
      %4796 = vmatpush1.msra.mxu0 0.0
      %4797 = vmatprep.subr.mxu0 0.0
      %4798 = vmatpush1.msra.mxu0 0.0
      %4799 = vmatprep.subr.mxu0 0.0
      %4800 = vmatpush1.msra.mxu0 0.0
      %4801 = vmatprep.subr.mxu0 0.0
      %4802 = vmatpush1.msra.mxu0 0.0
      %4803 = vmatprep.subr.mxu0 0.0
      %4804 = vmatpush1.msra.mxu0 0.0
      %4805 = vmatprep.subr.mxu0 0.0
      %4806 = vmatpush1.msra.mxu0 0.0
      %4807 = vmatprep.subr.mxu0 0.0
      %4808 = vmatpush1.msra.mxu0 0.0
      %4809 = vmatprep.subr.mxu0 0.0
      %4810 = vmatpush1.msra.mxu0 0.0
      %4811 = vmatprep.subr.mxu0 0.0
      %4812 = vmatpush1.msra.mxu0 %v4679
      %4813 = vmatprep.subr.mxu0 0.0
      %4814 = vmatpush1.msra.mxu0 %v4658
      %4815 = vmatprep.subr.mxu0 0.0
      %4816 = vmatpush2.msra.mxu0 0.0
      %4817 = vmatprep.subr.mxu0 0.0
      %4818 = vmatpush2.msra.mxu0 0.0
      %4819 = vmatprep.subr.mxu0 0.0
      %4820 = vmatpush2.msra.mxu0 0.0
      %4821 = vmatprep.subr.mxu0 0.0
      %4822 = vmatpush2.msra.mxu0 0.0
      %4823 = vmatprep.subr.mxu0 0.0
      %4824 = vmatpush2.msra.mxu0 0.0
      %4825 = vmatprep.subr.mxu0 0.0
      %4826 = vmatpush2.msra.mxu0 0.0
      %4827 = vmatprep.subr.mxu0 0.0
      %4828 = vmatpush2.msra.mxu0 0.0
      %4829 = vmatprep.subr.mxu0 0.0
      %4830 = vmatpush2.msra.mxu0 0.0
      %4831 = vmatprep.subr.mxu0 0.0
      %4832 = vmatpush2.msra.mxu0 0.0
      %4833 = vmatprep.subr.mxu0 0.0
      %4834 = vmatpush2.msra.mxu0 0.0
      %4835 = vmatprep.subr.mxu0 0.0
      %4836 = vmatpush2.msra.mxu0 0.0
      %4837 = vmatprep.subr.mxu0 0.0
      %4838 = vmatpush2.msra.mxu0 0.0
      %4839 = vmatprep.subr.mxu0 0.0
      %4840 = vmatpush2.msra.mxu0 0.0
      %4841 = vmatprep.subr.mxu0 0.0
      %4842 = vmatpush2.msra.mxu0 0.0
      %4843 = vmatprep.subr.mxu0 0.0
      %4844 = vmatpush2.msra.mxu0 0.0
      %4845 = vmatprep.subr.mxu0 0.0
      %4846 = vmatpush2.msra.mxu0 0.0
      %4847 = vmatprep.mubr.f32.mxu0 0.0
      %4848 = vmatmul.mubr.f32.gmra.mxu0 %v4772
      %v4849 = vpop.f32.mrf.mxu0
      %v4850 = vadd.f32 0.0, %v4849
      %v4851 = vpop.f32.mrf.mxu0
      %4852 = vmatprep.mubr.f32.mxu0 0.0
      %4853 = vmatmul.mubr.f32.gmra.mxu0 %v4775
      %v4854 = vpop.f32.mrf.mxu0
      %v4855 = vadd.f32 0.0, %v4854
      %v4856 = vpop.f32.mrf.mxu0
      %4857 = vmatprep.mubr.f32.mxu0 0.0
      %4858 = vmatmul.mubr.f32.gmra.mxu0 %v4778
      %v4859 = vpop.f32.mrf.mxu0
      %v4860 = vadd.f32 0.0, %v4859
      %v4861 = vpop.f32.mrf.mxu0
      %4862 = vmatprep.mubr.f32.mxu0 0.0
      %4863 = vmatmul.mubr.f32.gmra.mxu0 %v4781
      %v4864 = vpop.f32.mrf.mxu0
      %v4865 = vadd.f32 0.0, %v4864
      %v4866 = vpop.f32.mrf.mxu0
      %4867 = vdwg.mxu0
      %v4868 = vld [vmem:[%s14] sm:$0xff]
      %v4869 = vld [vmem:[%s14 + $0x8] sm:$0xff]
      %v4870 = vld [vmem:[%s14 + $0x10] sm:$0xff]
      %v4871 = vld [vmem:[%s14 + $0x18] sm:$0xff]
      %v4872 = vld [vmem:[%s14 + $0x20] sm:$0xff]
      %v4873 = vld [vmem:[%s14 + $0x28] sm:$0xff]
      %v4874 = vld [vmem:[%s14 + $0x30] sm:$0xff]
      %v4875 = vld [vmem:[%s14 + $0x38] sm:$0xff]
      %v4876 = vld [vmem:[%s14 + $0x40] sm:$0xff]
      %v4877 = vld [vmem:[%s14 + $0x48] sm:$0xff]
      %v4878 = vld [vmem:[%s14 + $0x50] sm:$0xff]
      %v4879 = vld [vmem:[%s14 + $0x58] sm:$0xff]
      %v4880 = vld [vmem:[%s14 + $0x60] sm:$0xff]
      %v4881 = vld [vmem:[%s14 + $0x68] sm:$0xff]
      %v4882 = vld [vmem:[%s14 + $0x70] sm:$0xff]
      %s4883 = scalar_lea.vmem %s14, 120
      %v4884 = vld [vmem:[%s4883] sm:$0xff]
      %v4885 = vld [vmem:[%s4883 + $0x8] sm:$0xff]
      %v4886 = vld [vmem:[%s4883 + $0x10] sm:$0xff]
      %v4887 = vld [vmem:[%s4883 + $0x18] sm:$0xff]
      %v4888 = vld [vmem:[%s4883 + $0x20] sm:$0xff]
      %v4889 = vld [vmem:[%s4883 + $0x28] sm:$0xff]
      %v4890 = vld [vmem:[%s4883 + $0x30] sm:$0xff]
      %v4891 = vld [vmem:[%s4883 + $0x38] sm:$0xff]
      %v4892 = vld [vmem:[%s4883 + $0x40] sm:$0xff]
      %v4893 = vld [vmem:[%s4883 + $0x48] sm:$0xff]
      %v4894 = vld [vmem:[%s4883 + $0x50] sm:$0xff]
      %v4895 = vld [vmem:[%s4883 + $0x58] sm:$0xff]
      %v4896 = vld [vmem:[%s4883 + $0x60] sm:$0xff]
      %v4897 = vld [vmem:[%s4883 + $0x68] sm:$0xff]
      %v4898 = vld [vmem:[%s4883 + $0x70] sm:$0xff]
      %vm4899 = vcmask 982016
      %v4901 = vsel %vm4899, %v4850, 0
      %v4904 = vsel %vm4899, %v4855, 0
      %v4907 = vsel %vm4899, %v4860, 0
      %v4910 = vsel %vm4899, %v4865, 0
      %4912 = vmatprep.subr.mxu0 0.0
      %4913 = vmatpush1.msra.mxu0 0.0
      %4914 = vmatprep.subr.mxu0 0.0
      %4915 = vmatpush1.msra.mxu0 %v4898
      %4916 = vmatprep.subr.mxu0 0.0
      %4917 = vmatpush1.msra.mxu0 %v4897
      %4918 = vmatprep.subr.mxu0 0.0
      %4919 = vmatpush1.msra.mxu0 %v4896
      %4920 = vmatprep.subr.mxu0 0.0
      %4921 = vmatpush1.msra.mxu0 %v4895
      %4922 = vmatprep.subr.mxu0 0.0
      %4923 = vmatpush1.msra.mxu0 %v4894
      %4924 = vmatprep.subr.mxu0 0.0
      %4925 = vmatpush1.msra.mxu0 %v4893
      %4926 = vmatprep.subr.mxu0 0.0
      %4927 = vmatpush1.msra.mxu0 %v4892
      %4928 = vmatprep.subr.mxu0 0.0
      %4929 = vmatpush1.msra.mxu0 %v4891
      %4930 = vmatprep.subr.mxu0 0.0
      %4931 = vmatpush1.msra.mxu0 %v4890
      %4932 = vmatprep.subr.mxu0 0.0
      %4933 = vmatpush1.msra.mxu0 %v4889
      %4934 = vmatprep.subr.mxu0 0.0
      %4935 = vmatpush1.msra.mxu0 %v4888
      %4936 = vmatprep.subr.mxu0 0.0
      %4937 = vmatpush1.msra.mxu0 %v4887
      %4938 = vmatprep.subr.mxu0 0.0
      %4939 = vmatpush1.msra.mxu0 %v4886
      %4940 = vmatprep.subr.mxu0 0.0
      %4941 = vmatpush1.msra.mxu0 %v4885
      %4942 = vmatprep.subr.mxu0 0.0
      %4943 = vmatpush1.msra.mxu0 %v4884
      %4944 = vmatprep.subr.mxu0 0.0
      %4945 = vmatpush2.msra.mxu0 0.0
      %4946 = vmatprep.subr.mxu0 0.0
      %4947 = vmatpush2.msra.mxu0 0.0
      %4948 = vmatprep.subr.mxu0 0.0
      %4949 = vmatpush2.msra.mxu0 0.0
      %4950 = vmatprep.subr.mxu0 0.0
      %4951 = vmatpush2.msra.mxu0 0.0
      %4952 = vmatprep.subr.mxu0 0.0
      %4953 = vmatpush2.msra.mxu0 0.0
      %4954 = vmatprep.subr.mxu0 0.0
      %4955 = vmatpush2.msra.mxu0 0.0
      %4956 = vmatprep.subr.mxu0 0.0
      %4957 = vmatpush2.msra.mxu0 0.0
      %4958 = vmatprep.subr.mxu0 0.0
      %4959 = vmatpush2.msra.mxu0 0.0
      %4960 = vmatprep.subr.mxu0 0.0
      %4961 = vmatpush2.msra.mxu0 0.0
      %4962 = vmatprep.subr.mxu0 0.0
      %4963 = vmatpush2.msra.mxu0 0.0
      %4964 = vmatprep.subr.mxu0 0.0
      %4965 = vmatpush2.msra.mxu0 0.0
      %4966 = vmatprep.subr.mxu0 0.0
      %4967 = vmatpush2.msra.mxu0 0.0
      %4968 = vmatprep.subr.mxu0 0.0
      %4969 = vmatpush2.msra.mxu0 0.0
      %4970 = vmatprep.subr.mxu0 0.0
      %4971 = vmatpush2.msra.mxu0 0.0
      %4972 = vmatprep.subr.mxu0 0.0
      %4973 = vmatpush2.msra.mxu0 0.0
      %4974 = vmatprep.subr.mxu0 0.0
      %4975 = vmatpush2.msra.mxu0 0.0
      %4976 = vmatprep.mubr.f32.mxu0 0.0
      %4977 = vmatmul.mubr.f32.gmra.mxu0 %v4901
      %v4978 = vpop.f32.mrf.mxu0
      %v4979 = vadd.f32 0.0, %v4978
      %v4980 = vpop.f32.mrf.mxu0
      %4981 = vmatprep.mubr.f32.mxu0 0.0
      %4982 = vmatmul.mubr.f32.gmra.mxu0 %v4904
      %v4983 = vpop.f32.mrf.mxu0
      %v4984 = vadd.f32 0.0, %v4983
      %v4985 = vpop.f32.mrf.mxu0
      %4986 = vmatprep.mubr.f32.mxu0 0.0
      %4987 = vmatmul.mubr.f32.gmra.mxu0 %v4907
      %v4988 = vpop.f32.mrf.mxu0
      %v4989 = vadd.f32 0.0, %v4988
      %v4990 = vpop.f32.mrf.mxu0
      %4991 = vmatprep.mubr.f32.mxu0 0.0
      %4992 = vmatmul.mubr.f32.gmra.mxu0 %v4910
      %v4993 = vpop.f32.mrf.mxu0
      %v4994 = vadd.f32 0.0, %v4993
      %v4995 = vpop.f32.mrf.mxu0
      %4996 = vdwg.mxu0
      %v4998 = vsel %vm4899, %v4748, 0
      %v5001 = vsel %vm4899, %v4753, 0
      %v5004 = vsel %vm4899, %v4758, 0
      %v5007 = vsel %vm4899, %v4763, 0
      %5009 = vmatprep.subr.mxu0 0.0
      %5010 = vmatpush1.msra.mxu0 0.0
      %5011 = vmatprep.subr.mxu0 0.0
      %5012 = vmatpush1.msra.mxu0 %v4882
      %5013 = vmatprep.subr.mxu0 0.0
      %5014 = vmatpush1.msra.mxu0 %v4881
      %5015 = vmatprep.subr.mxu0 0.0
      %5016 = vmatpush1.msra.mxu0 %v4880
      %5017 = vmatprep.subr.mxu0 0.0
      %5018 = vmatpush1.msra.mxu0 %v4879
      %5019 = vmatprep.subr.mxu0 0.0
      %5020 = vmatpush1.msra.mxu0 %v4878
      %5021 = vmatprep.subr.mxu0 0.0
      %5022 = vmatpush1.msra.mxu0 %v4877
      %5023 = vmatprep.subr.mxu0 0.0
      %5024 = vmatpush1.msra.mxu0 %v4876
      %5025 = vmatprep.subr.mxu0 0.0
      %5026 = vmatpush1.msra.mxu0 %v4875
      %5027 = vmatprep.subr.mxu0 0.0
      %5028 = vmatpush1.msra.mxu0 %v4874
      %5029 = vmatprep.subr.mxu0 0.0
      %5030 = vmatpush1.msra.mxu0 %v4873
      %5031 = vmatprep.subr.mxu0 0.0
      %5032 = vmatpush1.msra.mxu0 %v4872
      %5033 = vmatprep.subr.mxu0 0.0
      %5034 = vmatpush1.msra.mxu0 %v4871
      %5035 = vmatprep.subr.mxu0 0.0
      %5036 = vmatpush1.msra.mxu0 %v4870
      %5037 = vmatprep.subr.mxu0 0.0
      %5038 = vmatpush1.msra.mxu0 %v4869
      %5039 = vmatprep.subr.mxu0 0.0
      %5040 = vmatpush1.msra.mxu0 %v4868
      %5041 = vmatprep.subr.mxu0 0.0
      %5042 = vmatpush2.msra.mxu0 0.0
      %5043 = vmatprep.subr.mxu0 0.0
      %5044 = vmatpush2.msra.mxu0 0.0
      %5045 = vmatprep.subr.mxu0 0.0
      %5046 = vmatpush2.msra.mxu0 0.0
      %5047 = vmatprep.subr.mxu0 0.0
      %5048 = vmatpush2.msra.mxu0 0.0
      %5049 = vmatprep.subr.mxu0 0.0
      %5050 = vmatpush2.msra.mxu0 0.0
      %5051 = vmatprep.subr.mxu0 0.0
      %5052 = vmatpush2.msra.mxu0 0.0
      %5053 = vmatprep.subr.mxu0 0.0
      %5054 = vmatpush2.msra.mxu0 0.0
      %5055 = vmatprep.subr.mxu0 0.0
      %5056 = vmatpush2.msra.mxu0 0.0
      %5057 = vmatprep.subr.mxu0 0.0
      %5058 = vmatpush2.msra.mxu0 0.0
      %5059 = vmatprep.subr.mxu0 0.0
      %5060 = vmatpush2.msra.mxu0 0.0
      %5061 = vmatprep.subr.mxu0 0.0
      %5062 = vmatpush2.msra.mxu0 0.0
      %5063 = vmatprep.subr.mxu0 0.0
      %5064 = vmatpush2.msra.mxu0 0.0
      %5065 = vmatprep.subr.mxu0 0.0
      %5066 = vmatpush2.msra.mxu0 0.0
      %5067 = vmatprep.subr.mxu0 0.0
      %5068 = vmatpush2.msra.mxu0 0.0
      %5069 = vmatprep.subr.mxu0 0.0
      %5070 = vmatpush2.msra.mxu0 0.0
      %5071 = vmatprep.subr.mxu0 0.0
      %5072 = vmatpush2.msra.mxu0 0.0
      %5073 = vmatprep.mubr.f32.mxu0 0.0
      %5074 = vmatmul.mubr.f32.gmra.mxu0 %v4998
      %v5075 = vpop.f32.mrf.mxu0
      %v5076 = vadd.f32 %v4979, %v5075
      %v5077 = vpop.f32.mrf.mxu0
      %5078 = vmatprep.mubr.f32.mxu0 0.0
      %5079 = vmatmul.mubr.f32.gmra.mxu0 %v5001
      %v5080 = vpop.f32.mrf.mxu0
      %v5081 = vadd.f32 %v4984, %v5080
      %v5082 = vpop.f32.mrf.mxu0
      %5083 = vmatprep.mubr.f32.mxu0 0.0
      %5084 = vmatmul.mubr.f32.gmra.mxu0 %v5004
      %v5085 = vpop.f32.mrf.mxu0
      %v5086 = vadd.f32 %v4989, %v5085
      %v5087 = vpop.f32.mrf.mxu0
      %5088 = vmatprep.mubr.f32.mxu0 0.0
      %5089 = vmatmul.mubr.f32.gmra.mxu0 %v5007
      %v5090 = vpop.f32.mrf.mxu0
      %v5091 = vadd.f32 %v4994, %v5090
      %v5092 = vpop.f32.mrf.mxu0
      %5093 = vdwg.mxu0
      %v5094 = vld [vmem:[%s15] sm:$0x1]
      %v5096 = vlaneseq
      %v5097 = vshrl.u32 %v5096, 7
      %v5098 = vsub.s32 0, %v5097
      %v5099 = vrot.slane %v5094, %v5098
      %v5101 = vadd.f32 %v5076, %v5099
      %v5102 = vadd.f32 %v5081, %v5099
      %v5103 = vadd.f32 %v5086, %v5099
      %v5104 = vadd.f32 %v5091, %v5099
      %v5105 = vtanh.pop %v5101
      %v5106 = vtanh.pop %v5102
      %v5107 = vtanh.pop %v5103
      %v5108 = vtanh.pop %v5104
      %5109 = vst.msk [vmem:[%s521] sm:$0xff] %vm527, %v5105
      %5110 = vst.msk [vmem:[%s521 + $0x8] sm:$0xff] %vm527, %v5106
      %5111 = vst.msk [vmem:[%s521 + $0x10] sm:$0xff] %vm527, %v5107
      %vm5112 = vcmask 224256
      %5113 = vst.msk [vmem:[%s521 + $0x18] sm:$0xf] %vm5112, %v5108
      %p5114 = scmp.lt.s32.totalorder %s27, 1
      %s5115 = scalar_select %p5114, %s27, 1
      %s5116 = smul.addr %s5115, 4
      %s5117 = smul.addr %s5116, 8
      %s5118 = scalar_lea.vmem %s16, %s5117
      // Predicated region
      $region85: #{autoencoder2d_forward.1} parent=83 // pred_check
        %p5119 = pneg %p386
      $region86: #{autoencoder2d_forward.1} parent=83 // pred_check_branch
        %5121 = sbr.rel (%p5119) target = $region88
      $region87: #{autoencoder2d_forward.1} parent=83 // pred_region
        _
      $region88: #{autoencoder2d_forward.1} parent=83 // pred_fallthru
        _
    $region84: #{autoencoder2d_forward.1} parent=5 // pred_fallthru
      _
    %p5122 = scmp.le.s32.totalorder 2, %s22
    // Predicated region
    $region89: #{autoencoder2d_forward.1} parent=5 // pred_check
      %p5123 = pneg %p5122
    $region90: #{autoencoder2d_forward.1} parent=5 // pred_check_branch
      %5125 = sbr.rel (%p5123) target = $region92
    $region91: #{autoencoder2d_forward.1} parent=5 // pred_region
      %s5126 = ssub.s32 %s22, 2
      // Predicated region
      $region93: #{autoencoder2d_forward.1} parent=91 // pred_check
        %p5127 = pneg %p392
      $region94: #{autoencoder2d_forward.1} parent=91 // pred_check_branch
        %5129 = sbr.rel (%p5127) target = $region96
      $region95: #{autoencoder2d_forward.1} parent=91 // pred_region
        %p5130 = scmp.lt.s32.totalorder %s28, 1
        %s5131 = scalar_select %p5130, %s28, 1
        %s5132 = smul.addr %s5131, 4
        %s5133 = smul.addr %s5132, 8
        %s5134 = scalar_lea.vmem %s16, %s5133
      $region96: #{autoencoder2d_forward.1} parent=91 // pred_fallthru
        _
    $region92: #{autoencoder2d_forward.1} parent=5 // pred_fallthru
      _
  $region6: #{autoencoder2d_forward.1} parent=0 // loop_footer
    %s26 = sadd.s32 1, %s22
  $region7: #{autoencoder2d_forward.1} parent=0 // loop_footer_branch
    %21 = sbr.rel target = $region3
  $region8: #{autoencoder2d_forward.1} parent=0 // loop_exit
    _

</llo_original>
